<compile_context>
chip_gen: v7x
topology: tpu7x:2x2x1
jax: 0.10.0
libtpu: 0.0.40
codegen_flags: <defaults>
</compile_context>

<pallas_src>
import functools

import jax
import jax.numpy as jnp
from jax.experimental import pallas as pl
from jax.experimental.pallas import tpu as pltpu

_LANE = 128


def _basic_block_kernel(xpad_ref, w1_ref, w2_ref, s1_ref, b1_ref, s2_ref, b2_ref,
                        o_ref, pad_ref, *, H, W, Cp, no_relu):
    """One batch element per grid step.

    xpad_ref : (1, H+2, W+2, Cp)  spatially + channel padded NHWC input (compute dtype)
    w*_ref   : (9*Cp, Cp)         im2col weights, K ordered (ky*3+kx)*Cp + cin
    s*/b*    : (1, Cp)            folded inference-mode BN scale / bias (f32)
    o_ref    : (1, H*W, Cp)       output (input dtype), lane-dense (Cp % 128 == 0)
    pad_ref  : (H+2, W+2, Cp)     VMEM scratch used to spatially re-pad h1 for conv2
    """
    HW = H * W
    cdt = pad_ref.dtype

    def conv3x3(tap, w_ref):
        # im2col: concatenate the 9 shifted taps along the contraction (lane) axis and
        # do a single (HW, 9*Cp) x (9*Cp, Cp) MXU matmul with f32 accumulation.
        lhs = jnp.concatenate(
            [tap(k // 3, k % 3).reshape(HW, Cp) for k in range(9)], axis=-1)
        return jnp.dot(lhs, w_ref[...], preferred_element_type=jnp.float32)

    # conv1 -> bn1 -> relu  (taps are static slices of the pre-padded input block)
    h1 = conv3x3(lambda dy, dx: xpad_ref[0, dy:dy + H, dx:dx + W, :], w1_ref)
    h1 = jnp.maximum(h1 * s1_ref[...] + b1_ref[...], 0.0)

    # residual = interior of the padded input
    residual = xpad_ref[0, 1:H + 1, 1:W + 1, :].reshape(HW, Cp).astype(jnp.float32)

    # spatially re-pad h1 into the VMEM scratch (zero border) for conv2's taps
    pad_ref[...] = jnp.zeros_like(pad_ref)
    pad_ref[1:H + 1, 1:W + 1, :] = h1.reshape(H, W, Cp).astype(cdt)

    # conv2 -> bn2 -> +residual -> (relu)
    h2 = conv3x3(lambda dy, dx: pad_ref[dy:dy + H, dx:dx + W, :], w2_ref)
    out = h2 * s2_ref[...] + b2_ref[...] + residual
    if not no_relu:
        out = jnp.maximum(out, 0.0)
    o_ref[0] = out.astype(o_ref.dtype)


def basic_block_pallas(x_nchw, params, *, no_relu=False, eps=1e-5,
                       compute_dtype=jnp.bfloat16):
    N, C, H, W = x_nchw.shape
    HW = H * W
    Cp = ((C + _LANE - 1) // _LANE) * _LANE   # lane-dense channel count

    # NCHW -> NHWC, zero-pad channels to Cp and space by 1 (the conv's zero padding).
    x_nhwc = jnp.transpose(x_nchw, (0, 2, 3, 1))
    x_pad = jnp.pad(x_nhwc, ((0, 0), (1, 1), (1, 1), (0, Cp - C)))
    x_pad = x_pad.astype(compute_dtype)

    def fold_bn(gamma, beta, mean, var):
        scale = gamma / jnp.sqrt(var + eps)
        bias = beta - mean * scale
        scale = jnp.pad(scale, (0, Cp - C)).reshape(1, Cp).astype(jnp.float32)
        bias = jnp.pad(bias, (0, Cp - C)).reshape(1, Cp).astype(jnp.float32)
        return scale, bias

    def fold_w(w):
        # PyTorch (Cout, Cin, kh, kw) -> (kh, kw, Cin, Cout) -> pad channels -> (9*Cp, Cp)
        w = jnp.transpose(w, (2, 3, 1, 0))
        w = jnp.pad(w, ((0, 0), (0, 0), (0, Cp - C), (0, Cp - C)))
        return w.reshape(9 * Cp, Cp).astype(compute_dtype)

    w1f, w2f = fold_w(params["w1"]), fold_w(params["w2"])
    s1, b1 = fold_bn(*params["bn1"])
    s2, b2 = fold_bn(*params["bn2"])

    kernel = functools.partial(_basic_block_kernel, H=H, W=W, Cp=Cp, no_relu=no_relu)

    out_flat = pl.pallas_call(
        kernel,
        out_shape=jax.ShapeDtypeStruct((N, HW, Cp), x_nchw.dtype),
        grid=(N,),
        in_specs=[
            pl.BlockSpec((1, H + 2, W + 2, Cp), lambda n: (n, 0, 0, 0)),  # padded x
            pl.BlockSpec((9 * Cp, Cp), lambda n: (0, 0)),                 # w1 (im2col)
            pl.BlockSpec((9 * Cp, Cp), lambda n: (0, 0)),                 # w2 (im2col)
            pl.BlockSpec((1, Cp), lambda n: (0, 0)),                      # bn1 scale
            pl.BlockSpec((1, Cp), lambda n: (0, 0)),                      # bn1 bias
            pl.BlockSpec((1, Cp), lambda n: (0, 0)),                      # bn2 scale
            pl.BlockSpec((1, Cp), lambda n: (0, 0)),                      # bn2 bias
        ],
        out_specs=pl.BlockSpec((1, HW, Cp), lambda n: (n, 0, 0)),
        scratch_shapes=[pltpu.VMEM((H + 2, W + 2, Cp), compute_dtype)],
        compiler_params=pltpu.CompilerParams(
            dimension_semantics=("parallel",)),   # batch split across TCs on v7x
    )(x_pad, w1f, w2f, s1, b1, s2, b2)

    out_nhwc = out_flat.reshape(N, H, W, Cp)[..., :C]
    return jnp.transpose(out_nhwc, (0, 3, 1, 2))


# ----------------------- pure-JAX reference (NCHW, like PyTorch) ---------------------
def basic_block_ref(x, params, *, no_relu=False, eps=1e-5):
    def conv(x, w):
        return jax.lax.conv_general_dilated(
            x, w, window_strides=(1, 1), padding=((1, 1), (1, 1)),
            dimension_numbers=("NCHW", "OIHW", "NCHW"))

    def bn(x, gbmv):
        g, b, m, v = gbmv
        g = g[None, :, None, None]
        b = b[None, :, None, None]
        m = m[None, :, None, None]
        v = v[None, :, None, None]
        return (x - m) / jnp.sqrt(v + eps) * g + b

    out = jax.nn.relu(bn(conv(x, params["w1"]), params["bn1"]))
    out = bn(conv(out, params["w2"]), params["bn2"])
    out = out + x  # downsample is None
    return out if no_relu else jax.nn.relu(out)


if __name__ == "__main__":
    key = jax.random.PRNGKey(0)
    ks = jax.random.split(key, 12)

    N, C, H, W = 2, 4, 16, 16  # inplanes = planes = 4, stride = 1, downsample = None
    x = jax.random.normal(ks[0], (N, C, H, W), jnp.float32)

    params = {
        "w1": jax.random.normal(ks[1], (C, C, 3, 3), jnp.float32) * 0.2,
        "w2": jax.random.normal(ks[2], (C, C, 3, 3), jnp.float32) * 0.2,
        "bn1": (1.0 + 0.1 * jax.random.normal(ks[3], (C,), jnp.float32),      # gamma
                0.1 * jax.random.normal(ks[4], (C,), jnp.float32),            # beta
                0.05 * jax.random.normal(ks[5], (C,), jnp.float32),           # running_mean
                0.5 + jnp.abs(jax.random.normal(ks[6], (C,), jnp.float32))),  # running_var
        "bn2": (1.0 + 0.1 * jax.random.normal(ks[7], (C,), jnp.float32),
                0.1 * jax.random.normal(ks[8], (C,), jnp.float32),
                0.05 * jax.random.normal(ks[9], (C,), jnp.float32),
                0.5 + jnp.abs(jax.random.normal(ks[10], (C,), jnp.float32))),
    }

    ref = jax.block_until_ready(basic_block_ref(x, params, no_relu=False))

    # f32 compute path: tight numerical check against the reference.
    out_f32 = jax.block_until_ready(
        basic_block_pallas(x, params, no_relu=False, compute_dtype=jnp.float32))
    assert out_f32.shape == (N, C, H, W), out_f32.shape
    assert jnp.allclose(out_f32, ref, atol=1e-4, rtol=1e-4), \
        float(jnp.max(jnp.abs(out_f32 - ref)))

    # bf16 MXU-operand path (performance default): loose check.
    out_bf16 = jax.block_until_ready(
        basic_block_pallas(x, params, no_relu=False, compute_dtype=jnp.bfloat16))
    assert out_bf16.shape == (N, C, H, W), out_bf16.shape
    assert jnp.allclose(out_bf16, ref, atol=1e-1, rtol=1e-1), \
        float(jnp.max(jnp.abs(out_bf16 - ref)))

    print("KERNEL_OK")
</pallas_src>

<mosaic_0001>
module attributes {stable_mosaic.version = 11 : i64} {
  func.func @_basic_block_kernel(%arg0: i32, %arg1: memref<1x18x18x128xf32, #tpu.memory_space<vmem>>, %arg2: memref<1152x128xf32, #tpu.memory_space<vmem>>, %arg3: memref<1152x128xf32, #tpu.memory_space<vmem>>, %arg4: memref<1x128xf32, #tpu.memory_space<vmem>>, %arg5: memref<1x128xf32, #tpu.memory_space<vmem>>, %arg6: memref<1x128xf32, #tpu.memory_space<vmem>>, %arg7: memref<1x128xf32, #tpu.memory_space<vmem>>, %arg8: memref<1x256x128xf32, #tpu.memory_space<vmem>>, %arg9: memref<18x18x128xf32, #tpu.memory_space<vmem>>) attributes {dimension_semantics = [#tpu.dimension_semantics<parallel>], iteration_bounds = array<i64: 2>, scalar_prefetch = 0 : i64, scratch_operands = 1 : i64, tpu.core_type = #tpu.core_type<tc>, window_params = [{transform_indices = @transform_0, window_bounds = array<i64: 1, 18, 18, 128>}, {pipeline_mode = #tpu.pipeline_mode<synchronous>, transform_indices = @transform_1, window_bounds = array<i64: 1152, 128>}, {pipeline_mode = #tpu.pipeline_mode<synchronous>, transform_indices = @transform_2, window_bounds = array<i64: 1152, 128>}, {pipeline_mode = #tpu.pipeline_mode<synchronous>, transform_indices = @transform_3, window_bounds = array<i64: 1, 128>}, {pipeline_mode = #tpu.pipeline_mode<synchronous>, transform_indices = @transform_4, window_bounds = array<i64: 1, 128>}, {pipeline_mode = #tpu.pipeline_mode<synchronous>, transform_indices = @transform_5, window_bounds = array<i64: 1, 128>}, {pipeline_mode = #tpu.pipeline_mode<synchronous>, transform_indices = @transform_6, window_bounds = array<i64: 1, 128>}, {transform_indices = @transform_7, window_bounds = array<i64: 1, 256, 128>}]} {
    %c0 = arith.constant 0 : index
    %c0_0 = arith.constant 0 : index
    %c0_1 = arith.constant 0 : index
    %c0_2 = arith.constant 0 : index
    %0 = vector.load %arg1[%c0, %c0_0, %c0_1, %c0_2] : memref<1x18x18x128xf32, #tpu.memory_space<vmem>>, vector<1x16x16x128xf32>
    %1 = vector.shape_cast %0 : vector<1x16x16x128xf32> to vector<16x16x128xf32>
    %2 = vector.shape_cast %1 : vector<16x16x128xf32> to vector<256x128xf32>
    %c0_3 = arith.constant 0 : index
    %c0_4 = arith.constant 0 : index
    %c1 = arith.constant 1 : index
    %c0_5 = arith.constant 0 : index
    %3 = vector.load %arg1[%c0_3, %c0_4, %c1, %c0_5] : memref<1x18x18x128xf32, #tpu.memory_space<vmem>>, vector<1x16x16x128xf32>
    %4 = vector.shape_cast %3 : vector<1x16x16x128xf32> to vector<16x16x128xf32>
    %5 = vector.shape_cast %4 : vector<16x16x128xf32> to vector<256x128xf32>
    %c0_6 = arith.constant 0 : index
    %c0_7 = arith.constant 0 : index
    %c2 = arith.constant 2 : index
    %c0_8 = arith.constant 0 : index
    %6 = vector.load %arg1[%c0_6, %c0_7, %c2, %c0_8] : memref<1x18x18x128xf32, #tpu.memory_space<vmem>>, vector<1x16x16x128xf32>
    %7 = vector.shape_cast %6 : vector<1x16x16x128xf32> to vector<16x16x128xf32>
    %8 = vector.shape_cast %7 : vector<16x16x128xf32> to vector<256x128xf32>
    %c0_9 = arith.constant 0 : index
    %c1_10 = arith.constant 1 : index
    %c0_11 = arith.constant 0 : index
    %c0_12 = arith.constant 0 : index
    %9 = vector.load %arg1[%c0_9, %c1_10, %c0_11, %c0_12] : memref<1x18x18x128xf32, #tpu.memory_space<vmem>>, vector<1x16x16x128xf32>
    %10 = vector.shape_cast %9 : vector<1x16x16x128xf32> to vector<16x16x128xf32>
    %11 = vector.shape_cast %10 : vector<16x16x128xf32> to vector<256x128xf32>
    %c0_13 = arith.constant 0 : index
    %c1_14 = arith.constant 1 : index
    %c1_15 = arith.constant 1 : index
    %c0_16 = arith.constant 0 : index
    %12 = vector.load %arg1[%c0_13, %c1_14, %c1_15, %c0_16] : memref<1x18x18x128xf32, #tpu.memory_space<vmem>>, vector<1x16x16x128xf32>
    %13 = vector.shape_cast %12 : vector<1x16x16x128xf32> to vector<16x16x128xf32>
    %14 = vector.shape_cast %13 : vector<16x16x128xf32> to vector<256x128xf32>
    %c0_17 = arith.constant 0 : index
    %c1_18 = arith.constant 1 : index
    %c2_19 = arith.constant 2 : index
    %c0_20 = arith.constant 0 : index
    %15 = vector.load %arg1[%c0_17, %c1_18, %c2_19, %c0_20] : memref<1x18x18x128xf32, #tpu.memory_space<vmem>>, vector<1x16x16x128xf32>
    %16 = vector.shape_cast %15 : vector<1x16x16x128xf32> to vector<16x16x128xf32>
    %17 = vector.shape_cast %16 : vector<16x16x128xf32> to vector<256x128xf32>
    %c0_21 = arith.constant 0 : index
    %c2_22 = arith.constant 2 : index
    %c0_23 = arith.constant 0 : index
    %c0_24 = arith.constant 0 : index
    %18 = vector.load %arg1[%c0_21, %c2_22, %c0_23, %c0_24] : memref<1x18x18x128xf32, #tpu.memory_space<vmem>>, vector<1x16x16x128xf32>
    %19 = vector.shape_cast %18 : vector<1x16x16x128xf32> to vector<16x16x128xf32>
    %20 = vector.shape_cast %19 : vector<16x16x128xf32> to vector<256x128xf32>
    %c0_25 = arith.constant 0 : index
    %c2_26 = arith.constant 2 : index
    %c1_27 = arith.constant 1 : index
    %c0_28 = arith.constant 0 : index
    %21 = vector.load %arg1[%c0_25, %c2_26, %c1_27, %c0_28] : memref<1x18x18x128xf32, #tpu.memory_space<vmem>>, vector<1x16x16x128xf32>
    %22 = vector.shape_cast %21 : vector<1x16x16x128xf32> to vector<16x16x128xf32>
    %23 = vector.shape_cast %22 : vector<16x16x128xf32> to vector<256x128xf32>
    %c0_29 = arith.constant 0 : index
    %c2_30 = arith.constant 2 : index
    %c2_31 = arith.constant 2 : index
    %c0_32 = arith.constant 0 : index
    %24 = vector.load %arg1[%c0_29, %c2_30, %c2_31, %c0_32] : memref<1x18x18x128xf32, #tpu.memory_space<vmem>>, vector<1x16x16x128xf32>
    %25 = vector.shape_cast %24 : vector<1x16x16x128xf32> to vector<16x16x128xf32>
    %26 = vector.shape_cast %25 : vector<16x16x128xf32> to vector<256x128xf32>
    %27 = tpu.concatenate %2, %5, %8, %11, %14, %17, %20, %23, %26 in 1 : vector<256x128xf32>, vector<256x128xf32>, vector<256x128xf32>, vector<256x128xf32>, vector<256x128xf32>, vector<256x128xf32>, vector<256x128xf32>, vector<256x128xf32>, vector<256x128xf32> -> vector<256x1152xf32>
    %c0_33 = arith.constant 0 : index
    %c0_34 = arith.constant 0 : index
    %28 = vector.load %arg2[%c0_33, %c0_34] : memref<1152x128xf32, #tpu.memory_space<vmem>>, vector<1152x128xf32>
    %cst = arith.constant dense<0.000000e+00> : vector<256x128xf32>
    %29 = tpu.matmul %27, %28, %cst {dimension_numbers = #tpu.dot_dimension_numbers<[1], [0], [0], [1], [0, 0, 1, 1], [], []>} : vector<256x1152xf32>, vector<1152x128xf32>, vector<256x128xf32> -> vector<256x128xf32>
    %c0_35 = arith.constant 0 : index
    %c0_36 = arith.constant 0 : index
    %30 = vector.load %arg4[%c0_35, %c0_36] : memref<1x128xf32, #tpu.memory_space<vmem>>, vector<1x128xf32>
    %31 = vector.broadcast %30 : vector<1x128xf32> to vector<256x128xf32>
    %32 = arith.mulf %29, %31 : vector<256x128xf32>
    %c0_37 = arith.constant 0 : index
    %c0_38 = arith.constant 0 : index
    %33 = vector.load %arg5[%c0_37, %c0_38] : memref<1x128xf32, #tpu.memory_space<vmem>>, vector<1x128xf32>
    %34 = vector.broadcast %33 : vector<1x128xf32> to vector<256x128xf32>
    %35 = arith.addf %32, %34 : vector<256x128xf32>
    %cst_39 = arith.constant 0.000000e+00 : f32
    %36 = vector.broadcast %cst_39 : f32 to vector<256x128xf32>
    %37 = arith.maximumf %35, %36 : vector<256x128xf32>
    %c0_40 = arith.constant 0 : index
    %c1_41 = arith.constant 1 : index
    %c1_42 = arith.constant 1 : index
    %c0_43 = arith.constant 0 : index
    %38 = vector.load %arg1[%c0_40, %c1_41, %c1_42, %c0_43] : memref<1x18x18x128xf32, #tpu.memory_space<vmem>>, vector<1x16x16x128xf32>
    %39 = vector.shape_cast %38 : vector<1x16x16x128xf32> to vector<16x16x128xf32>
    %40 = vector.shape_cast %39 : vector<16x16x128xf32> to vector<256x128xf32>
    %cst_44 = arith.constant 0.000000e+00 : f32
    %41 = vector.broadcast %cst_44 : f32 to vector<18x18x128xf32>
    %c0_45 = arith.constant 0 : index
    %c0_46 = arith.constant 0 : index
    %c0_47 = arith.constant 0 : index
    %42 = vector.load %arg9[%c0_45, %c0_46, %c0_47] : memref<18x18x128xf32, #tpu.memory_space<vmem>>, vector<18x18x128xf32>
    tpu.vector_store %arg9[%c0_45, %c0_46, %c0_47], %41 {strides = array<i32>} : memref<18x18x128xf32, #tpu.memory_space<vmem>>, vector<18x18x128xf32>,
    %43 = vector.shape_cast %37 : vector<256x128xf32> to vector<16x16x128xf32>
    %c1_48 = arith.constant 1 : index
    %c1_49 = arith.constant 1 : index
    %c0_50 = arith.constant 0 : index
    %44 = vector.load %arg9[%c1_48, %c1_49, %c0_50] : memref<18x18x128xf32, #tpu.memory_space<vmem>>, vector<16x16x128xf32>
    tpu.vector_store %arg9[%c1_48, %c1_49, %c0_50], %43 {strides = array<i32>} : memref<18x18x128xf32, #tpu.memory_space<vmem>>, vector<16x16x128xf32>,
    %c0_51 = arith.constant 0 : index
    %c0_52 = arith.constant 0 : index
    %c0_53 = arith.constant 0 : index
    %45 = vector.load %arg9[%c0_51, %c0_52, %c0_53] : memref<18x18x128xf32, #tpu.memory_space<vmem>>, vector<16x16x128xf32>
    %46 = vector.shape_cast %45 : vector<16x16x128xf32> to vector<256x128xf32>
    %c0_54 = arith.constant 0 : index
    %c1_55 = arith.constant 1 : index
    %c0_56 = arith.constant 0 : index
    %47 = vector.load %arg9[%c0_54, %c1_55, %c0_56] : memref<18x18x128xf32, #tpu.memory_space<vmem>>, vector<16x16x128xf32>
    %48 = vector.shape_cast %47 : vector<16x16x128xf32> to vector<256x128xf32>
    %c0_57 = arith.constant 0 : index
    %c2_58 = arith.constant 2 : index
    %c0_59 = arith.constant 0 : index
    %49 = vector.load %arg9[%c0_57, %c2_58, %c0_59] : memref<18x18x128xf32, #tpu.memory_space<vmem>>, vector<16x16x128xf32>
    %50 = vector.shape_cast %49 : vector<16x16x128xf32> to vector<256x128xf32>
    %c1_60 = arith.constant 1 : index
    %c0_61 = arith.constant 0 : index
    %c0_62 = arith.constant 0 : index
    %51 = vector.load %arg9[%c1_60, %c0_61, %c0_62] : memref<18x18x128xf32, #tpu.memory_space<vmem>>, vector<16x16x128xf32>
    %52 = vector.shape_cast %51 : vector<16x16x128xf32> to vector<256x128xf32>
    %c1_63 = arith.constant 1 : index
    %c1_64 = arith.constant 1 : index
    %c0_65 = arith.constant 0 : index
    %53 = vector.load %arg9[%c1_63, %c1_64, %c0_65] : memref<18x18x128xf32, #tpu.memory_space<vmem>>, vector<16x16x128xf32>
    %54 = vector.shape_cast %53 : vector<16x16x128xf32> to vector<256x128xf32>
    %c1_66 = arith.constant 1 : index
    %c2_67 = arith.constant 2 : index
    %c0_68 = arith.constant 0 : index
    %55 = vector.load %arg9[%c1_66, %c2_67, %c0_68] : memref<18x18x128xf32, #tpu.memory_space<vmem>>, vector<16x16x128xf32>
    %56 = vector.shape_cast %55 : vector<16x16x128xf32> to vector<256x128xf32>
    %c2_69 = arith.constant 2 : index
    %c0_70 = arith.constant 0 : index
    %c0_71 = arith.constant 0 : index
    %57 = vector.load %arg9[%c2_69, %c0_70, %c0_71] : memref<18x18x128xf32, #tpu.memory_space<vmem>>, vector<16x16x128xf32>
    %58 = vector.shape_cast %57 : vector<16x16x128xf32> to vector<256x128xf32>
    %c2_72 = arith.constant 2 : index
    %c1_73 = arith.constant 1 : index
    %c0_74 = arith.constant 0 : index
    %59 = vector.load %arg9[%c2_72, %c1_73, %c0_74] : memref<18x18x128xf32, #tpu.memory_space<vmem>>, vector<16x16x128xf32>
    %60 = vector.shape_cast %59 : vector<16x16x128xf32> to vector<256x128xf32>
    %c2_75 = arith.constant 2 : index
    %c2_76 = arith.constant 2 : index
    %c0_77 = arith.constant 0 : index
    %61 = vector.load %arg9[%c2_75, %c2_76, %c0_77] : memref<18x18x128xf32, #tpu.memory_space<vmem>>, vector<16x16x128xf32>
    %62 = vector.shape_cast %61 : vector<16x16x128xf32> to vector<256x128xf32>
    %63 = tpu.concatenate %46, %48, %50, %52, %54, %56, %58, %60, %62 in 1 : vector<256x128xf32>, vector<256x128xf32>, vector<256x128xf32>, vector<256x128xf32>, vector<256x128xf32>, vector<256x128xf32>, vector<256x128xf32>, vector<256x128xf32>, vector<256x128xf32> -> vector<256x1152xf32>
    %c0_78 = arith.constant 0 : index
    %c0_79 = arith.constant 0 : index
    %64 = vector.load %arg3[%c0_78, %c0_79] : memref<1152x128xf32, #tpu.memory_space<vmem>>, vector<1152x128xf32>
    %cst_80 = arith.constant dense<0.000000e+00> : vector<256x128xf32>
    %65 = tpu.matmul %63, %64, %cst_80 {dimension_numbers = #tpu.dot_dimension_numbers<[1], [0], [0], [1], [0, 0, 1, 1], [], []>} : vector<256x1152xf32>, vector<1152x128xf32>, vector<256x128xf32> -> vector<256x128xf32>
    %c0_81 = arith.constant 0 : index
    %c0_82 = arith.constant 0 : index
    %66 = vector.load %arg6[%c0_81, %c0_82] : memref<1x128xf32, #tpu.memory_space<vmem>>, vector<1x128xf32>
    %67 = vector.broadcast %66 : vector<1x128xf32> to vector<256x128xf32>
    %68 = arith.mulf %65, %67 : vector<256x128xf32>
    %c0_83 = arith.constant 0 : index
    %c0_84 = arith.constant 0 : index
    %69 = vector.load %arg7[%c0_83, %c0_84] : memref<1x128xf32, #tpu.memory_space<vmem>>, vector<1x128xf32>
    %70 = vector.broadcast %69 : vector<1x128xf32> to vector<256x128xf32>
    %71 = arith.addf %68, %70 : vector<256x128xf32>
    %72 = arith.addf %71, %40 : vector<256x128xf32>
    %cst_85 = arith.constant 0.000000e+00 : f32
    %73 = vector.broadcast %cst_85 : f32 to vector<256x128xf32>
    %74 = arith.maximumf %72, %73 : vector<256x128xf32>
    %c0_86 = arith.constant 0 : index
    %c0_87 = arith.constant 0 : index
    %c0_88 = arith.constant 0 : index
    %75 = vector.load %arg8[%c0_86, %c0_87, %c0_88] : memref<1x256x128xf32, #tpu.memory_space<vmem>>, vector<1x256x128xf32>
    %76 = vector.shape_cast %75 : vector<1x256x128xf32> to vector<256x128xf32>
    %77 = vector.shape_cast %74 : vector<256x128xf32> to vector<1x256x128xf32>
    tpu.vector_store %arg8[%c0_86, %c0_87, %c0_88], %77 {strides = array<i32>} : memref<1x256x128xf32, #tpu.memory_space<vmem>>, vector<1x256x128xf32>,
    return
  }
  func.func @transform_0(%arg0: i32) -> (i32, i32, i32, i32) {
    %c0_i32 = arith.constant 0 : i32
    %c0_i32_0 = arith.constant 0 : i32
    %c0_i32_1 = arith.constant 0 : i32
    %c0_i32_2 = arith.constant 0 : i32
    return %arg0, %c0_i32, %c0_i32_0, %c0_i32_1 : i32, i32, i32, i32
  }
  func.func @transform_1(%arg0: i32) -> (i32, i32) {
    %c0_i32 = arith.constant 0 : i32
    %c0_i32_0 = arith.constant 0 : i32
    %c0_i32_1 = arith.constant 0 : i32
    return %c0_i32, %c0_i32_0 : i32, i32
  }
  func.func @transform_2(%arg0: i32) -> (i32, i32) {
    %c0_i32 = arith.constant 0 : i32
    %c0_i32_0 = arith.constant 0 : i32
    %c0_i32_1 = arith.constant 0 : i32
    return %c0_i32, %c0_i32_0 : i32, i32
  }
  func.func @transform_3(%arg0: i32) -> (i32, i32) {
    %c0_i32 = arith.constant 0 : i32
    %c0_i32_0 = arith.constant 0 : i32
    %c0_i32_1 = arith.constant 0 : i32
    return %c0_i32, %c0_i32_0 : i32, i32
  }
  func.func @transform_4(%arg0: i32) -> (i32, i32) {
    %c0_i32 = arith.constant 0 : i32
    %c0_i32_0 = arith.constant 0 : i32
    %c0_i32_1 = arith.constant 0 : i32
    return %c0_i32, %c0_i32_0 : i32, i32
  }
  func.func @transform_5(%arg0: i32) -> (i32, i32) {
    %c0_i32 = arith.constant 0 : i32
    %c0_i32_0 = arith.constant 0 : i32
    %c0_i32_1 = arith.constant 0 : i32
    return %c0_i32, %c0_i32_0 : i32, i32
  }
  func.func @transform_6(%arg0: i32) -> (i32, i32) {
    %c0_i32 = arith.constant 0 : i32
    %c0_i32_0 = arith.constant 0 : i32
    %c0_i32_1 = arith.constant 0 : i32
    return %c0_i32, %c0_i32_0 : i32, i32
  }
  func.func @transform_7(%arg0: i32) -> (i32, i32, i32) {
    %c0_i32 = arith.constant 0 : i32
    %c0_i32_0 = arith.constant 0 : i32
    %c0_i32_1 = arith.constant 0 : i32
    return %arg0, %c0_i32, %c0_i32_0 : i32, i32, i32
  }
}

</mosaic_0001>

<llo_original>
// kernel: tpu_custom_call.1
$region0: #{tpu_custom_call.1}
  #allocation0 [shape = 'u32[]', space=smem, size = 0x4, offset = 0x4, fixed_abs, tag = 'smem constant byte address 0x4 - core index']
  #allocation1 [shape = 'u32[144,128]{1,0:T(1,128)}', space=vmem, size = 0x12000, scoped, tag = 'internal scratch']
  #allocation2 [shape = 'f32[18,18,128]{2,1,0:T(8,128)}', space=vmem, size = 0x36000, scoped, tag = 'scratch operand']
  %s0 = inlined_call_operand.vmem [shape: f32[2,18,18,128], index: 0, kind: input, shape index: {}]
  %s1 = inlined_call_operand.vmem [shape: f32[1152,128], index: 1, kind: input, shape index: {}]
  %s2 = inlined_call_operand.hbm [shape: f32[1152,128], index: 2, kind: input, shape index: {}]
  %s3 = inlined_call_operand.vmem [shape: f32[1,128], index: 3, kind: input, shape index: {}]
  %s4 = inlined_call_operand.vmem [shape: f32[1,128], index: 4, kind: input, shape index: {}]
  %s5 = inlined_call_operand.vmem [shape: f32[1,128], index: 5, kind: input, shape index: {}]
  %s6 = inlined_call_operand.vmem [shape: f32[1,128], index: 6, kind: input, shape index: {}]
  %s7 = inlined_call_operand.hbm [shape: f32[2,256,128], index: 7, kind: output, shape index: {}]
  %s8 = sld [smem:[#allocation0]]
  $region65: #{tpu_custom_call.1} parent=0
    _
  %s10 = ssub.s32 1, %s8
  %s11 = scalar_select 0, %s10, %s8
  $region1: #{tpu_custom_call.1} parent=0
    #allocation3 [shape = 'u8[589824]{0}', space=vmem, size = 0x90000, scoped, tag = 'input window, operand 2, single buffered']
    #allocation4 [shape = 's32[2]{0}', space=sflag, size = 0x8, scoped, tag = 'scoped memory for tpu_custom_call.1']
    #allocation5 [shape = 's32[2]{0}', space=sflag, size = 0x8, scoped, tag = 'scoped memory for tpu_custom_call.1']
    #allocation6 [shape = 'u8[262144]{0}', space=vmem, size = 0x40000, scoped, tag = 'output window, operand 0']
    %12 = vsyncpa [#allocation4], 0
    %13 = vsyncpa [#allocation5], 0
    %s14 = scalar_lea.sflag [#allocation5], 1
    %15 = vsyncpa %s14, 0
    loop: start=0, step=1, limit=4
    $region2: #{tpu_custom_call.1} parent=1 // loop_pre_header
      _
    $region3: #{tpu_custom_call.1} parent=1 // loop_header
      %s17 = sphi 0, %s21
      %p18 = scmp.ge.s32.totalorder %s17, 4
      %s27 = sphi 0, %s29
      %s30 = sphi 0, %s27
      %s31 = sphi 0, %s30
      %s47 = sphi 0, %s31
      %s51 = sphi 0, %s51
      %s53 = sphi 0, %s51
      %s54 = sphi 0, %s53
      %s68 = sphi 0, %s54
      %s72 = sphi 0, %s72
      %s74 = sphi 0, %s72
      %s75 = sphi 0, %s74
      %s89 = sphi 0, %s75
      %s93 = sphi 0, %s93
      %s95 = sphi 0, %s93
      %s96 = sphi 0, %s95
      %s110 = sphi 0, %s96
      %s114 = sphi 0, %s114
      %s116 = sphi 0, %s114
      %s117 = sphi 0, %s116
      %s131 = sphi 0, %s117
      %s135 = sphi 0, %s135
      %s137 = sphi 0, %s135
      %s138 = sphi 0, %s137
      %s152 = sphi 0, %s138
      %s156 = sphi 0, %s156
      %s158 = sphi 0, %s156
      %s159 = sphi 0, %s158
      %s173 = sphi 0, %s159
      %s179 = sphi 0, %s181
      %s182 = sphi 0, %s179
      %s183 = sphi 0, %s182
      %s199 = sphi 0, %s183
    $region4: #{tpu_custom_call.1} parent=1 // loop_header_branch
      %20 = sbr.rel (%p18) target = $region8
    $region5: #{tpu_custom_call.1} parent=1 // loop_body
      %s22 = ssub.s32 %s17, 1
      %s23 = ssub.s32 %s17, 2
      %s24 = sadd.s32 %s17, 1
      %s25 = ssub.s32 %s17, %s24
      %p26 = scmp.eq.s32.totalorder %s25, 0
      %s28 = sadd.s32 %s27, 1
      %s29 = scalar_select %p26, %s27, %s28
      %p32 = pneg %p26
      %p33 = scmp.eq.s32.totalorder %s17, 1
      %p34 = por %p32, %p33
      %p35 = scmp.ne.s32.totalorder %s27, %s30
      %p36 = scmp.eq.s32.totalorder %s17, 0
      %p37 = por %p35, %p36
      %p38 = scmp.ne.s32.totalorder %s27, %s30
      %p39 = scmp.eq.s32.totalorder %s22, 1
      %p40 = por %p38, %p39
      %p41 = scmp.ne.s32.totalorder %s30, %s31
      %p42 = scmp.eq.s32.totalorder %s22, 0
      %p43 = por %p41, %p42
      %p44 = scmp.ne.s32.totalorder %s30, %s31
      %p45 = scmp.eq.s32.totalorder %s23, 1
      %p46 = por %p44, %p45
      %p48 = scmp.ne.s32.totalorder %s31, %s47
      %p49 = scmp.eq.s32.totalorder %s23, 0
      %p50 = por %p48, %p49
      %s52 = sadd.s32 %s51, 1
      %p55 = scmp.eq.s32.totalorder %s17, 1
      %p56 = scmp.ne.s32.totalorder %s51, %s53
      %p57 = scmp.eq.s32.totalorder %s17, 0
      %p58 = por %p56, %p57
      %p59 = scmp.ne.s32.totalorder %s51, %s53
      %p60 = scmp.eq.s32.totalorder %s22, 1
      %p61 = por %p59, %p60
      %p62 = scmp.ne.s32.totalorder %s53, %s54
      %p63 = scmp.eq.s32.totalorder %s22, 0
      %p64 = por %p62, %p63
      %p65 = scmp.ne.s32.totalorder %s53, %s54
      %p66 = scmp.eq.s32.totalorder %s23, 1
      %p67 = por %p65, %p66
      %p69 = scmp.ne.s32.totalorder %s54, %s68
      %p70 = scmp.eq.s32.totalorder %s23, 0
      %p71 = por %p69, %p70
      %s73 = sadd.s32 %s72, 1
      %p76 = scmp.eq.s32.totalorder %s17, 1
      %p77 = scmp.ne.s32.totalorder %s72, %s74
      %p78 = scmp.eq.s32.totalorder %s17, 0
      %p79 = por %p77, %p78
      %p80 = scmp.ne.s32.totalorder %s72, %s74
      %p81 = scmp.eq.s32.totalorder %s22, 1
      %p82 = por %p80, %p81
      %p83 = scmp.ne.s32.totalorder %s74, %s75
      %p84 = scmp.eq.s32.totalorder %s22, 0
      %p85 = por %p83, %p84
      %p86 = scmp.ne.s32.totalorder %s74, %s75
      %p87 = scmp.eq.s32.totalorder %s23, 1
      %p88 = por %p86, %p87
      %p90 = scmp.ne.s32.totalorder %s75, %s89
      %p91 = scmp.eq.s32.totalorder %s23, 0
      %p92 = por %p90, %p91
      %s94 = sadd.s32 %s93, 1
      %p97 = scmp.eq.s32.totalorder %s17, 1
      %p98 = scmp.ne.s32.totalorder %s93, %s95
      %p99 = scmp.eq.s32.totalorder %s17, 0
      %p100 = por %p98, %p99
      %p101 = scmp.ne.s32.totalorder %s93, %s95
      %p102 = scmp.eq.s32.totalorder %s22, 1
      %p103 = por %p101, %p102
      %p104 = scmp.ne.s32.totalorder %s95, %s96
      %p105 = scmp.eq.s32.totalorder %s22, 0
      %p106 = por %p104, %p105
      %p107 = scmp.ne.s32.totalorder %s95, %s96
      %p108 = scmp.eq.s32.totalorder %s23, 1
      %p109 = por %p107, %p108
      %p111 = scmp.ne.s32.totalorder %s96, %s110
      %p112 = scmp.eq.s32.totalorder %s23, 0
      %p113 = por %p111, %p112
      %s115 = sadd.s32 %s114, 1
      %p118 = scmp.eq.s32.totalorder %s17, 1
      %p119 = scmp.ne.s32.totalorder %s114, %s116
      %p120 = scmp.eq.s32.totalorder %s17, 0
      %p121 = por %p119, %p120
      %p122 = scmp.ne.s32.totalorder %s114, %s116
      %p123 = scmp.eq.s32.totalorder %s22, 1
      %p124 = por %p122, %p123
      %p125 = scmp.ne.s32.totalorder %s116, %s117
      %p126 = scmp.eq.s32.totalorder %s22, 0
      %p127 = por %p125, %p126
      %p128 = scmp.ne.s32.totalorder %s116, %s117
      %p129 = scmp.eq.s32.totalorder %s23, 1
      %p130 = por %p128, %p129
      %p132 = scmp.ne.s32.totalorder %s117, %s131
      %p133 = scmp.eq.s32.totalorder %s23, 0
      %p134 = por %p132, %p133
      %s136 = sadd.s32 %s135, 1
      %p139 = scmp.eq.s32.totalorder %s17, 1
      %p140 = scmp.ne.s32.totalorder %s135, %s137
      %p141 = scmp.eq.s32.totalorder %s17, 0
      %p142 = por %p140, %p141
      %p143 = scmp.ne.s32.totalorder %s135, %s137
      %p144 = scmp.eq.s32.totalorder %s22, 1
      %p145 = por %p143, %p144
      %p146 = scmp.ne.s32.totalorder %s137, %s138
      %p147 = scmp.eq.s32.totalorder %s22, 0
      %p148 = por %p146, %p147
      %p149 = scmp.ne.s32.totalorder %s137, %s138
      %p150 = scmp.eq.s32.totalorder %s23, 1
      %p151 = por %p149, %p150
      %p153 = scmp.ne.s32.totalorder %s138, %s152
      %p154 = scmp.eq.s32.totalorder %s23, 0
      %p155 = por %p153, %p154
      %s157 = sadd.s32 %s156, 1
      %p160 = scmp.eq.s32.totalorder %s17, 1
      %p161 = scmp.ne.s32.totalorder %s156, %s158
      %p162 = scmp.eq.s32.totalorder %s17, 0
      %p163 = por %p161, %p162
      %p164 = scmp.ne.s32.totalorder %s156, %s158
      %p165 = scmp.eq.s32.totalorder %s22, 1
      %p166 = por %p164, %p165
      %p167 = scmp.ne.s32.totalorder %s158, %s159
      %p168 = scmp.eq.s32.totalorder %s22, 0
      %p169 = por %p167, %p168
      %p170 = scmp.ne.s32.totalorder %s158, %s159
      %p171 = scmp.eq.s32.totalorder %s23, 1
      %p172 = por %p170, %p171
      %p174 = scmp.ne.s32.totalorder %s159, %s173
      %p175 = scmp.eq.s32.totalorder %s23, 0
      %p176 = por %p174, %p175
      %s177 = ssub.s32 %s17, %s24
      %p178 = scmp.eq.s32.totalorder %s177, 0
      %s180 = sadd.s32 %s179, 1
      %s181 = scalar_select %p178, %s179, %s180
      %p184 = pneg %p178
      %p185 = scmp.eq.s32.totalorder %s17, 1
      %p186 = por %p184, %p185
      %p187 = scmp.ne.s32.totalorder %s179, %s182
      %p188 = scmp.eq.s32.totalorder %s17, 0
      %p189 = por %p187, %p188
      %p190 = scmp.ne.s32.totalorder %s179, %s182
      %p191 = scmp.eq.s32.totalorder %s22, 1
      %p192 = por %p190, %p191
      %p193 = scmp.ne.s32.totalorder %s182, %s183
      %p194 = scmp.eq.s32.totalorder %s22, 0
      %p195 = por %p193, %p194
      %p196 = scmp.ne.s32.totalorder %s182, %s183
      %p197 = scmp.eq.s32.totalorder %s23, 1
      %p198 = por %p196, %p197
      %p200 = scmp.ne.s32.totalorder %s183, %s199
      %p201 = scmp.eq.s32.totalorder %s23, 0
      %p202 = por %p200, %p201
      %p203 = scmp.le.s32.totalorder 1, %s17
      %p204 = scmp.lt.s32.totalorder %s17, 3
      %p205 = pnand %p203, %p204
      %p206 = pneg %p205
      // Predicated region
      $region9: #{tpu_custom_call.1} parent=5 // pred_check
        _
      $region10: #{tpu_custom_call.1} parent=5 // pred_check_branch
        %208 = sbr.rel (%p205) target = $region12
      $region11: #{tpu_custom_call.1} parent=5 // pred_region
        %s209 = ssub.s32 %s17, 1
        // Predicated region
        $region13: #{tpu_custom_call.1} parent=11 // pred_check
          %p210 = pneg %p64
        $region14: #{tpu_custom_call.1} parent=11 // pred_check_branch
          %212 = sbr.rel (%p210) target = $region16
        $region15: #{tpu_custom_call.1} parent=11 // pred_region
          _
        $region16: #{tpu_custom_call.1} parent=11 // pred_fallthru
          _
        // Predicated region
        $region17: #{tpu_custom_call.1} parent=11 // pred_check
          %p213 = pneg %p85
        $region18: #{tpu_custom_call.1} parent=11 // pred_check_branch
          %215 = sbr.rel (%p213) target = $region20
        $region19: #{tpu_custom_call.1} parent=11 // pred_region
          %s217 = ssub.s32 18432, 18432
          %218 = vsyncadd [#allocation4], %s217
          %s219 = sshll.u32 [#allocation3], 4
          %s220 = int_to_ptr.vmem [resolvable:$true] %s219
          %225 = dma.hbm_to_vmem [thread:$0]  %s2, 18432, %s220, [#allocation4], 128, 128, 8
        $region20: #{tpu_custom_call.1} parent=11 // pred_fallthru
          _
        // Predicated region
        $region21: #{tpu_custom_call.1} parent=11 // pred_check
          %p226 = pneg %p106
        $region22: #{tpu_custom_call.1} parent=11 // pred_check_branch
          %228 = sbr.rel (%p226) target = $region24
        $region23: #{tpu_custom_call.1} parent=11 // pred_region
          _
        $region24: #{tpu_custom_call.1} parent=11 // pred_fallthru
          _
        // Predicated region
        $region25: #{tpu_custom_call.1} parent=11 // pred_check
          %p229 = pneg %p127
        $region26: #{tpu_custom_call.1} parent=11 // pred_check_branch
          %231 = sbr.rel (%p229) target = $region28
        $region27: #{tpu_custom_call.1} parent=11 // pred_region
          _
        $region28: #{tpu_custom_call.1} parent=11 // pred_fallthru
          _
        // Predicated region
        $region29: #{tpu_custom_call.1} parent=11 // pred_check
          %p232 = pneg %p148
        $region30: #{tpu_custom_call.1} parent=11 // pred_check_branch
          %234 = sbr.rel (%p232) target = $region32
        $region31: #{tpu_custom_call.1} parent=11 // pred_region
          _
        $region32: #{tpu_custom_call.1} parent=11 // pred_fallthru
          _
        // Predicated region
        $region33: #{tpu_custom_call.1} parent=11 // pred_check
          %p235 = pneg %p169
        $region34: #{tpu_custom_call.1} parent=11 // pred_check_branch
          %237 = sbr.rel (%p235) target = $region36
        $region35: #{tpu_custom_call.1} parent=11 // pred_region
          _
        $region36: #{tpu_custom_call.1} parent=11 // pred_fallthru
          _
      $region12: #{tpu_custom_call.1} parent=5 // pred_fallthru
        _
      %p238 = scmp.lt.s32.totalorder %s17, 2
      // Predicated region
      $region37: #{tpu_custom_call.1} parent=5 // pred_check
        %p239 = pneg %p238
      $region38: #{tpu_custom_call.1} parent=5 // pred_check_branch
        %241 = sbr.rel (%p239) target = $region40
      $region39: #{tpu_custom_call.1} parent=5 // pred_region
        // Predicated region
        $region41: #{tpu_custom_call.1} parent=39 // pred_check
          %p242 = pneg %p37
        $region42: #{tpu_custom_call.1} parent=39 // pred_check_branch
          %244 = sbr.rel (%p242) target = $region44
        $region43: #{tpu_custom_call.1} parent=39 // pred_region
          %p245 = scmp.lt.s32.totalorder %s17, 1
          %s246 = scalar_select %p245, %s17, 1
          %s247 = smul.addr %s246, 54
          %s248 = smul.addr %s247, 8
          %s249 = scalar_lea.vmem %s0, %s248
        $region44: #{tpu_custom_call.1} parent=39 // pred_fallthru
          _
      $region40: #{tpu_custom_call.1} parent=5 // pred_fallthru
        _
      %p250 = scmp.le.s32.totalorder 1, %s17
      %p251 = scmp.lt.s32.totalorder %s17, 3
      %p252 = pnand %p250, %p251
      %p253 = pneg %p252
      // Predicated region
      $region45: #{tpu_custom_call.1} parent=5 // pred_check
        _
      $region46: #{tpu_custom_call.1} parent=5 // pred_check_branch
        %255 = sbr.rel (%p252) target = $region48
      $region47: #{tpu_custom_call.1} parent=5 // pred_region
        %s256 = ssub.s32 %s17, 1
        // Predicated region
        $region49: #{tpu_custom_call.1} parent=47 // pred_check
          %p257 = pneg %p85
        $region50: #{tpu_custom_call.1} parent=47 // pred_check_branch
          %259 = sbr.rel (%p257) target = $region52
        $region51: #{tpu_custom_call.1} parent=47 // pred_region
          %260 = dma.done [#allocation4], 18432
        $region52: #{tpu_custom_call.1} parent=47 // pred_fallthru
          _
        %p261 = scmp.lt.s32.totalorder %s22, 1
        %s262 = scalar_select %p261, %s22, 1
        %s263 = smul.addr %s262, 54
        %s264 = smul.addr %s263, 8
        %s265 = scalar_lea.vmem %s0, %s264
        %p266 = pneg %p43
        %p267 = pneg %p40
        %p268 = pneg %p64
        %p269 = pneg %p61
        %p270 = pneg %p85
        %p271 = pneg %p82
        %p272 = pneg %p106
        %p273 = pneg %p103
        %p274 = pneg %p127
        %p275 = pneg %p124
        %p276 = pneg %p148
        %p277 = pneg %p145
        %p278 = pneg %p169
        %p279 = pneg %p166
        %p280 = pneg %p195
        %p281 = pneg %p192
        %s282 = sand.u32 %s182, 1
        %s283 = scalar_lea.sflag [#allocation5], %s282
        %s284 = sand.u32 %s182, 1
        %s285 = smul.addr %s284, 256
        %s286 = scalar_lea.vmem [#allocation6], %s285
        %p287 = scmp.lt.s32.totalorder %s22, 1
        %s288 = scalar_select %p287, %s22, 1
        %s289 = smul.addr %s288, 54
        %s290 = smul.addr %s289, 8
        %s291 = scalar_lea.vmem %s0, %s290
        %v292 = vld [vmem:[%s291] sm:$0xff]
        %v293 = vld [vmem:[%s291 + $0x8] sm:$0xff]
        %v294 = vld [vmem:[%s291 + $0x18] sm:$0xff]
        %v295 = vld [vmem:[%s291 + $0x20] sm:$0xff]
        %v296 = vld [vmem:[%s291 + $0x30] sm:$0xff]
        %v297 = vld [vmem:[%s291 + $0x38] sm:$0xff]
        %v298 = vld [vmem:[%s291 + $0x48] sm:$0xff]
        %v299 = vld [vmem:[%s291 + $0x50] sm:$0xff]
        %v300 = vld [vmem:[%s291 + $0x60] sm:$0xff]
        %v301 = vld [vmem:[%s291 + $0x68] sm:$0xff]
        %v302 = vld [vmem:[%s291 + $0x78] sm:$0xff]
        %v303 = vld [vmem:[%s291 + $0x80] sm:$0xff]
        %v304 = vld [vmem:[%s291 + $0x90] sm:$0xff]
        %v305 = vld [vmem:[%s291 + $0x98] sm:$0xff]
        %v306 = vld [vmem:[%s291 + $0xa8] sm:$0xff]
        %v307 = vld [vmem:[%s291 + $0xb0] sm:$0xff]
        %v308 = vld [vmem:[%s291 + $0xc0] sm:$0xff]
        %v309 = vld [vmem:[%s291 + $0xc8] sm:$0xff]
        %v310 = vld [vmem:[%s291 + $0xd8] sm:$0xff]
        %v311 = vld [vmem:[%s291 + $0xe0] sm:$0xff]
        %v312 = vld [vmem:[%s291 + $0xf0] sm:$0xff]
        %v313 = vld [vmem:[%s291 + $0xf8] sm:$0xff]
        %v314 = vld [vmem:[%s291 + $0x108] sm:$0xff]
        %v315 = vld [vmem:[%s291 + $0x110] sm:$0xff]
        %v316 = vld [vmem:[%s291 + $0x120] sm:$0xff]
        %v317 = vld [vmem:[%s291 + $0x128] sm:$0xff]
        %v318 = vld [vmem:[%s291 + $0x138] sm:$0xff]
        %v319 = vld [vmem:[%s291 + $0x140] sm:$0xff]
        %v320 = vld [vmem:[%s291 + $0x150] sm:$0xff]
        %v321 = vld [vmem:[%s291 + $0x158] sm:$0xff]
        %v322 = vld [vmem:[%s291 + $0x168] sm:$0xff]
        %v323 = vld [vmem:[%s291 + $0x170] sm:$0xff]
        %v324 = vld [vmem:[%s291 + $0x1] sm:$0xff]
        %v325 = vld [vmem:[%s291 + $0x9] sm:$0xff]
        %v326 = vld [vmem:[%s291 + $0x19] sm:$0xff]
        %v327 = vld [vmem:[%s291 + $0x21] sm:$0xff]
        %v328 = vld [vmem:[%s291 + $0x31] sm:$0xff]
        %v329 = vld [vmem:[%s291 + $0x39] sm:$0xff]
        %v330 = vld [vmem:[%s291 + $0x49] sm:$0xff]
        %v331 = vld [vmem:[%s291 + $0x51] sm:$0xff]
        %v332 = vld [vmem:[%s291 + $0x61] sm:$0xff]
        %v333 = vld [vmem:[%s291 + $0x69] sm:$0xff]
        %v334 = vld [vmem:[%s291 + $0x79] sm:$0xff]
        %v335 = vld [vmem:[%s291 + $0x81] sm:$0xff]
        %v336 = vld [vmem:[%s291 + $0x91] sm:$0xff]
        %v337 = vld [vmem:[%s291 + $0x99] sm:$0xff]
        %v338 = vld [vmem:[%s291 + $0xa9] sm:$0xff]
        %v339 = vld [vmem:[%s291 + $0xb1] sm:$0xff]
        %v340 = vld [vmem:[%s291 + $0xc1] sm:$0xff]
        %v341 = vld [vmem:[%s291 + $0xc9] sm:$0xff]
        %v342 = vld [vmem:[%s291 + $0xd9] sm:$0xff]
        %v343 = vld [vmem:[%s291 + $0xe1] sm:$0xff]
        %v344 = vld [vmem:[%s291 + $0xf1] sm:$0xff]
        %v345 = vld [vmem:[%s291 + $0xf9] sm:$0xff]
        %v346 = vld [vmem:[%s291 + $0x109] sm:$0xff]
        %v347 = vld [vmem:[%s291 + $0x111] sm:$0xff]
        %v348 = vld [vmem:[%s291 + $0x121] sm:$0xff]
        %v349 = vld [vmem:[%s291 + $0x129] sm:$0xff]
        %v350 = vld [vmem:[%s291 + $0x139] sm:$0xff]
        %v351 = vld [vmem:[%s291 + $0x141] sm:$0xff]
        %v352 = vld [vmem:[%s291 + $0x151] sm:$0xff]
        %v353 = vld [vmem:[%s291 + $0x159] sm:$0xff]
        %v354 = vld [vmem:[%s291 + $0x169] sm:$0xff]
        %v355 = vld [vmem:[%s291 + $0x171] sm:$0xff]
        %v356 = vld [vmem:[%s291 + $0x2] sm:$0xff]
        %v357 = vld [vmem:[%s291 + $0xa] sm:$0xff]
        %v358 = vld [vmem:[%s291 + $0x1a] sm:$0xff]
        %v359 = vld [vmem:[%s291 + $0x22] sm:$0xff]
        %v360 = vld [vmem:[%s291 + $0x32] sm:$0xff]
        %v361 = vld [vmem:[%s291 + $0x3a] sm:$0xff]
        %v362 = vld [vmem:[%s291 + $0x4a] sm:$0xff]
        %v363 = vld [vmem:[%s291 + $0x52] sm:$0xff]
        %v364 = vld [vmem:[%s291 + $0x62] sm:$0xff]
        %v365 = vld [vmem:[%s291 + $0x6a] sm:$0xff]
        %v366 = vld [vmem:[%s291 + $0x7a] sm:$0xff]
        %v367 = vld [vmem:[%s291 + $0x82] sm:$0xff]
        %v368 = vld [vmem:[%s291 + $0x92] sm:$0xff]
        %v369 = vld [vmem:[%s291 + $0x9a] sm:$0xff]
        %v370 = vld [vmem:[%s291 + $0xaa] sm:$0xff]
        %v371 = vld [vmem:[%s291 + $0xb2] sm:$0xff]
        %v372 = vld [vmem:[%s291 + $0xc2] sm:$0xff]
        %v373 = vld [vmem:[%s291 + $0xca] sm:$0xff]
        %v374 = vld [vmem:[%s291 + $0xda] sm:$0xff]
        %v375 = vld [vmem:[%s291 + $0xe2] sm:$0xff]
        %v376 = vld [vmem:[%s291 + $0xf2] sm:$0xff]
        %v377 = vld [vmem:[%s291 + $0xfa] sm:$0xff]
        %v378 = vld [vmem:[%s291 + $0x10a] sm:$0xff]
        %v379 = vld [vmem:[%s291 + $0x112] sm:$0xff]
        %v380 = vld [vmem:[%s291 + $0x122] sm:$0xff]
        %v381 = vld [vmem:[%s291 + $0x12a] sm:$0xff]
        %v382 = vld [vmem:[%s291 + $0x13a] sm:$0xff]
        %v383 = vld [vmem:[%s291 + $0x142] sm:$0xff]
        %v384 = vld [vmem:[%s291 + $0x152] sm:$0xff]
        %v385 = vld [vmem:[%s291 + $0x15a] sm:$0xff]
        %v386 = vld [vmem:[%s291 + $0x16a] sm:$0xff]
        %v387 = vld [vmem:[%s291 + $0x172] sm:$0xff]
        %s388 = scalar_lea.vmem %s291, 24
        %v389 = vld [vmem:[%s388] sm:$0xff]
        %v390 = vld [vmem:[%s388 + $0x8] sm:$0xff]
        %v391 = vld [vmem:[%s388 + $0x18] sm:$0xff]
        %v392 = vld [vmem:[%s388 + $0x20] sm:$0xff]
        %v393 = vld [vmem:[%s388 + $0x30] sm:$0xff]
        %v394 = vld [vmem:[%s388 + $0x38] sm:$0xff]
        %v395 = vld [vmem:[%s388 + $0x48] sm:$0xff]
        %v396 = vld [vmem:[%s388 + $0x50] sm:$0xff]
        %v397 = vld [vmem:[%s388 + $0x60] sm:$0xff]
        %v398 = vld [vmem:[%s388 + $0x68] sm:$0xff]
        %v399 = vld [vmem:[%s388 + $0x78] sm:$0xff]
        %v400 = vld [vmem:[%s388 + $0x80] sm:$0xff]
        %v401 = vld [vmem:[%s388 + $0x90] sm:$0xff]
        %v402 = vld [vmem:[%s388 + $0x98] sm:$0xff]
        %v403 = vld [vmem:[%s388 + $0xa8] sm:$0xff]
        %v404 = vld [vmem:[%s388 + $0xb0] sm:$0xff]
        %v405 = vld [vmem:[%s388 + $0xc0] sm:$0xff]
        %v406 = vld [vmem:[%s388 + $0xc8] sm:$0xff]
        %v407 = vld [vmem:[%s388 + $0xd8] sm:$0xff]
        %v408 = vld [vmem:[%s388 + $0xe0] sm:$0xff]
        %v409 = vld [vmem:[%s388 + $0xf0] sm:$0xff]
        %v410 = vld [vmem:[%s388 + $0xf8] sm:$0xff]
        %v411 = vld [vmem:[%s388 + $0x108] sm:$0xff]
        %v412 = vld [vmem:[%s388 + $0x110] sm:$0xff]
        %v413 = vld [vmem:[%s388 + $0x120] sm:$0xff]
        %v414 = vld [vmem:[%s388 + $0x128] sm:$0xff]
        %v415 = vld [vmem:[%s388 + $0x138] sm:$0xff]
        %v416 = vld [vmem:[%s388 + $0x140] sm:$0xff]
        %v417 = vld [vmem:[%s388 + $0x150] sm:$0xff]
        %v418 = vld [vmem:[%s388 + $0x158] sm:$0xff]
        %v419 = vld [vmem:[%s388 + $0x168] sm:$0xff]
        %v420 = vld [vmem:[%s388 + $0x170] sm:$0xff]
        %v421 = vld [vmem:[%s388 + $0x1] sm:$0xff]
        %v422 = vld [vmem:[%s388 + $0x9] sm:$0xff]
        %v423 = vld [vmem:[%s388 + $0x19] sm:$0xff]
        %v424 = vld [vmem:[%s388 + $0x21] sm:$0xff]
        %v425 = vld [vmem:[%s388 + $0x31] sm:$0xff]
        %v426 = vld [vmem:[%s388 + $0x39] sm:$0xff]
        %v427 = vld [vmem:[%s388 + $0x49] sm:$0xff]
        %v428 = vld [vmem:[%s388 + $0x51] sm:$0xff]
        %v429 = vld [vmem:[%s388 + $0x61] sm:$0xff]
        %v430 = vld [vmem:[%s388 + $0x69] sm:$0xff]
        %v431 = vld [vmem:[%s388 + $0x79] sm:$0xff]
        %v432 = vld [vmem:[%s388 + $0x81] sm:$0xff]
        %v433 = vld [vmem:[%s388 + $0x91] sm:$0xff]
        %v434 = vld [vmem:[%s388 + $0x99] sm:$0xff]
        %v435 = vld [vmem:[%s388 + $0xa9] sm:$0xff]
        %v436 = vld [vmem:[%s388 + $0xb1] sm:$0xff]
        %v437 = vld [vmem:[%s388 + $0xc1] sm:$0xff]
        %v438 = vld [vmem:[%s388 + $0xc9] sm:$0xff]
        %v439 = vld [vmem:[%s388 + $0xd9] sm:$0xff]
        %v440 = vld [vmem:[%s388 + $0xe1] sm:$0xff]
        %v441 = vld [vmem:[%s388 + $0xf1] sm:$0xff]
        %v442 = vld [vmem:[%s388 + $0xf9] sm:$0xff]
        %v443 = vld [vmem:[%s388 + $0x109] sm:$0xff]
        %v444 = vld [vmem:[%s388 + $0x111] sm:$0xff]
        %v445 = vld [vmem:[%s388 + $0x121] sm:$0xff]
        %v446 = vld [vmem:[%s388 + $0x129] sm:$0xff]
        %v447 = vld [vmem:[%s388 + $0x139] sm:$0xff]
        %v448 = vld [vmem:[%s388 + $0x141] sm:$0xff]
        %v449 = vld [vmem:[%s388 + $0x151] sm:$0xff]
        %v450 = vld [vmem:[%s388 + $0x159] sm:$0xff]
        %v451 = vld [vmem:[%s388 + $0x169] sm:$0xff]
        %v452 = vld [vmem:[%s388 + $0x171] sm:$0xff]
        %v453 = vld [vmem:[%s388 + $0x2] sm:$0xff]
        %v454 = vld [vmem:[%s388 + $0xa] sm:$0xff]
        %v455 = vld [vmem:[%s388 + $0x1a] sm:$0xff]
        %v456 = vld [vmem:[%s388 + $0x22] sm:$0xff]
        %v457 = vld [vmem:[%s388 + $0x32] sm:$0xff]
        %v458 = vld [vmem:[%s388 + $0x3a] sm:$0xff]
        %v459 = vld [vmem:[%s388 + $0x4a] sm:$0xff]
        %v460 = vld [vmem:[%s388 + $0x52] sm:$0xff]
        %v461 = vld [vmem:[%s388 + $0x62] sm:$0xff]
        %v462 = vld [vmem:[%s388 + $0x6a] sm:$0xff]
        %v463 = vld [vmem:[%s388 + $0x7a] sm:$0xff]
        %v464 = vld [vmem:[%s388 + $0x82] sm:$0xff]
        %v465 = vld [vmem:[%s388 + $0x92] sm:$0xff]
        %v466 = vld [vmem:[%s388 + $0x9a] sm:$0xff]
        %v467 = vld [vmem:[%s388 + $0xaa] sm:$0xff]
        %v468 = vld [vmem:[%s388 + $0xb2] sm:$0xff]
        %v469 = vld [vmem:[%s388 + $0xc2] sm:$0xff]
        %v470 = vld [vmem:[%s388 + $0xca] sm:$0xff]
        %v471 = vld [vmem:[%s388 + $0xda] sm:$0xff]
        %v472 = vld [vmem:[%s388 + $0xe2] sm:$0xff]
        %v473 = vld [vmem:[%s388 + $0xf2] sm:$0xff]
        %v474 = vld [vmem:[%s388 + $0xfa] sm:$0xff]
        %v475 = vld [vmem:[%s388 + $0x10a] sm:$0xff]
        %v476 = vld [vmem:[%s388 + $0x112] sm:$0xff]
        %v477 = vld [vmem:[%s388 + $0x122] sm:$0xff]
        %v478 = vld [vmem:[%s388 + $0x12a] sm:$0xff]
        %v479 = vld [vmem:[%s388 + $0x13a] sm:$0xff]
        %v480 = vld [vmem:[%s388 + $0x142] sm:$0xff]
        %v481 = vld [vmem:[%s388 + $0x152] sm:$0xff]
        %v482 = vld [vmem:[%s388 + $0x15a] sm:$0xff]
        %v483 = vld [vmem:[%s388 + $0x16a] sm:$0xff]
        %v484 = vld [vmem:[%s388 + $0x172] sm:$0xff]
        %s485 = scalar_lea.vmem %s291, 48
        %v486 = vld [vmem:[%s485] sm:$0xff]
        %v487 = vld [vmem:[%s485 + $0x8] sm:$0xff]
        %v488 = vld [vmem:[%s485 + $0x18] sm:$0xff]
        %v489 = vld [vmem:[%s485 + $0x20] sm:$0xff]
        %v490 = vld [vmem:[%s485 + $0x30] sm:$0xff]
        %v491 = vld [vmem:[%s485 + $0x38] sm:$0xff]
        %v492 = vld [vmem:[%s485 + $0x48] sm:$0xff]
        %v493 = vld [vmem:[%s485 + $0x50] sm:$0xff]
        %v494 = vld [vmem:[%s485 + $0x60] sm:$0xff]
        %v495 = vld [vmem:[%s485 + $0x68] sm:$0xff]
        %v496 = vld [vmem:[%s485 + $0x78] sm:$0xff]
        %v497 = vld [vmem:[%s485 + $0x80] sm:$0xff]
        %v498 = vld [vmem:[%s485 + $0x90] sm:$0xff]
        %v499 = vld [vmem:[%s485 + $0x98] sm:$0xff]
        %v500 = vld [vmem:[%s485 + $0xa8] sm:$0xff]
        %v501 = vld [vmem:[%s485 + $0xb0] sm:$0xff]
        %v502 = vld [vmem:[%s485 + $0xc0] sm:$0xff]
        %v503 = vld [vmem:[%s485 + $0xc8] sm:$0xff]
        %v504 = vld [vmem:[%s485 + $0xd8] sm:$0xff]
        %v505 = vld [vmem:[%s485 + $0xe0] sm:$0xff]
        %v506 = vld [vmem:[%s485 + $0xf0] sm:$0xff]
        %v507 = vld [vmem:[%s485 + $0xf8] sm:$0xff]
        %v508 = vld [vmem:[%s485 + $0x108] sm:$0xff]
        %v509 = vld [vmem:[%s485 + $0x110] sm:$0xff]
        %v510 = vld [vmem:[%s485 + $0x120] sm:$0xff]
        %v511 = vld [vmem:[%s485 + $0x128] sm:$0xff]
        %v512 = vld [vmem:[%s485 + $0x138] sm:$0xff]
        %v513 = vld [vmem:[%s485 + $0x140] sm:$0xff]
        %v514 = vld [vmem:[%s485 + $0x150] sm:$0xff]
        %v515 = vld [vmem:[%s485 + $0x158] sm:$0xff]
        %v516 = vld [vmem:[%s485 + $0x168] sm:$0xff]
        %v517 = vld [vmem:[%s485 + $0x170] sm:$0xff]
        %v518 = vld [vmem:[%s485 + $0x1] sm:$0xff]
        %v519 = vld [vmem:[%s485 + $0x9] sm:$0xff]
        %v520 = vld [vmem:[%s485 + $0x19] sm:$0xff]
        %v521 = vld [vmem:[%s485 + $0x21] sm:$0xff]
        %v522 = vld [vmem:[%s485 + $0x31] sm:$0xff]
        %v523 = vld [vmem:[%s485 + $0x39] sm:$0xff]
        %v524 = vld [vmem:[%s485 + $0x49] sm:$0xff]
        %v525 = vld [vmem:[%s485 + $0x51] sm:$0xff]
        %v526 = vld [vmem:[%s485 + $0x61] sm:$0xff]
        %v527 = vld [vmem:[%s485 + $0x69] sm:$0xff]
        %v528 = vld [vmem:[%s485 + $0x79] sm:$0xff]
        %v529 = vld [vmem:[%s485 + $0x81] sm:$0xff]
        %v530 = vld [vmem:[%s485 + $0x91] sm:$0xff]
        %v531 = vld [vmem:[%s485 + $0x99] sm:$0xff]
        %v532 = vld [vmem:[%s485 + $0xa9] sm:$0xff]
        %v533 = vld [vmem:[%s485 + $0xb1] sm:$0xff]
        %v534 = vld [vmem:[%s485 + $0xc1] sm:$0xff]
        %v535 = vld [vmem:[%s485 + $0xc9] sm:$0xff]
        %v536 = vld [vmem:[%s485 + $0xd9] sm:$0xff]
        %v537 = vld [vmem:[%s485 + $0xe1] sm:$0xff]
        %v538 = vld [vmem:[%s485 + $0xf1] sm:$0xff]
        %v539 = vld [vmem:[%s485 + $0xf9] sm:$0xff]
        %v540 = vld [vmem:[%s485 + $0x109] sm:$0xff]
        %v541 = vld [vmem:[%s485 + $0x111] sm:$0xff]
        %v542 = vld [vmem:[%s485 + $0x121] sm:$0xff]
        %v543 = vld [vmem:[%s485 + $0x129] sm:$0xff]
        %v544 = vld [vmem:[%s485 + $0x139] sm:$0xff]
        %v545 = vld [vmem:[%s485 + $0x141] sm:$0xff]
        %v546 = vld [vmem:[%s485 + $0x151] sm:$0xff]
        %v547 = vld [vmem:[%s485 + $0x159] sm:$0xff]
        %v548 = vld [vmem:[%s485 + $0x169] sm:$0xff]
        %v549 = vld [vmem:[%s485 + $0x171] sm:$0xff]
        %v550 = vld [vmem:[%s485 + $0x2] sm:$0xff]
        %v551 = vld [vmem:[%s485 + $0xa] sm:$0xff]
        %v552 = vld [vmem:[%s485 + $0x1a] sm:$0xff]
        %v553 = vld [vmem:[%s485 + $0x22] sm:$0xff]
        %v554 = vld [vmem:[%s485 + $0x32] sm:$0xff]
        %v555 = vld [vmem:[%s485 + $0x3a] sm:$0xff]
        %v556 = vld [vmem:[%s485 + $0x4a] sm:$0xff]
        %v557 = vld [vmem:[%s485 + $0x52] sm:$0xff]
        %v558 = vld [vmem:[%s485 + $0x62] sm:$0xff]
        %v559 = vld [vmem:[%s485 + $0x6a] sm:$0xff]
        %v560 = vld [vmem:[%s485 + $0x7a] sm:$0xff]
        %v561 = vld [vmem:[%s485 + $0x82] sm:$0xff]
        %v562 = vld [vmem:[%s485 + $0x92] sm:$0xff]
        %v563 = vld [vmem:[%s485 + $0x9a] sm:$0xff]
        %v564 = vld [vmem:[%s485 + $0xaa] sm:$0xff]
        %v565 = vld [vmem:[%s485 + $0xb2] sm:$0xff]
        %v566 = vld [vmem:[%s485 + $0xc2] sm:$0xff]
        %v567 = vld [vmem:[%s485 + $0xca] sm:$0xff]
        %v568 = vld [vmem:[%s485 + $0xda] sm:$0xff]
        %v569 = vld [vmem:[%s485 + $0xe2] sm:$0xff]
        %v570 = vld [vmem:[%s485 + $0xf2] sm:$0xff]
        %v571 = vld [vmem:[%s485 + $0xfa] sm:$0xff]
        %v572 = vld [vmem:[%s485 + $0x10a] sm:$0xff]
        %v573 = vld [vmem:[%s485 + $0x112] sm:$0xff]
        %v574 = vld [vmem:[%s485 + $0x122] sm:$0xff]
        %v575 = vld [vmem:[%s485 + $0x12a] sm:$0xff]
        %v576 = vld [vmem:[%s485 + $0x13a] sm:$0xff]
        %v577 = vld [vmem:[%s485 + $0x142] sm:$0xff]
        %v578 = vld [vmem:[%s485 + $0x152] sm:$0xff]
        %v579 = vld [vmem:[%s485 + $0x15a] sm:$0xff]
        %v580 = vld [vmem:[%s485 + $0x16a] sm:$0xff]
        %v581 = vld [vmem:[%s485 + $0x172] sm:$0xff]
        %v582 = vld [vmem:[%s1] sm:$0xff]
        %v583 = vld [vmem:[%s1 + $0x8] sm:$0xff]
        %v584 = vld [vmem:[%s1 + $0x10] sm:$0xff]
        %v585 = vld [vmem:[%s1 + $0x18] sm:$0xff]
        %v586 = vld [vmem:[%s1 + $0x20] sm:$0xff]
        %v587 = vld [vmem:[%s1 + $0x28] sm:$0xff]
        %v588 = vld [vmem:[%s1 + $0x30] sm:$0xff]
        %v589 = vld [vmem:[%s1 + $0x38] sm:$0xff]
        %v590 = vld [vmem:[%s1 + $0x40] sm:$0xff]
        %v591 = vld [vmem:[%s1 + $0x48] sm:$0xff]
        %v592 = vld [vmem:[%s1 + $0x50] sm:$0xff]
        %v593 = vld [vmem:[%s1 + $0x58] sm:$0xff]
        %v594 = vld [vmem:[%s1 + $0x60] sm:$0xff]
        %v595 = vld [vmem:[%s1 + $0x68] sm:$0xff]
        %v596 = vld [vmem:[%s1 + $0x70] sm:$0xff]
        %v597 = vld [vmem:[%s1 + $0x78] sm:$0xff]
        %v598 = vld [vmem:[%s1 + $0x80] sm:$0xff]
        %v599 = vld [vmem:[%s1 + $0x88] sm:$0xff]
        %v600 = vld [vmem:[%s1 + $0x90] sm:$0xff]
        %v601 = vld [vmem:[%s1 + $0x98] sm:$0xff]
        %v602 = vld [vmem:[%s1 + $0xa0] sm:$0xff]
        %v603 = vld [vmem:[%s1 + $0xa8] sm:$0xff]
        %v604 = vld [vmem:[%s1 + $0xb0] sm:$0xff]
        %v605 = vld [vmem:[%s1 + $0xb8] sm:$0xff]
        %v606 = vld [vmem:[%s1 + $0xc0] sm:$0xff]
        %v607 = vld [vmem:[%s1 + $0xc8] sm:$0xff]
        %v608 = vld [vmem:[%s1 + $0xd0] sm:$0xff]
        %v609 = vld [vmem:[%s1 + $0xd8] sm:$0xff]
        %v610 = vld [vmem:[%s1 + $0xe0] sm:$0xff]
        %v611 = vld [vmem:[%s1 + $0xe8] sm:$0xff]
        %v612 = vld [vmem:[%s1 + $0xf0] sm:$0xff]
        %v613 = vld [vmem:[%s1 + $0xf8] sm:$0xff]
        %v614 = vld [vmem:[%s1 + $0x100] sm:$0xff]
        %v615 = vld [vmem:[%s1 + $0x108] sm:$0xff]
        %v616 = vld [vmem:[%s1 + $0x110] sm:$0xff]
        %v617 = vld [vmem:[%s1 + $0x118] sm:$0xff]
        %v618 = vld [vmem:[%s1 + $0x120] sm:$0xff]
        %v619 = vld [vmem:[%s1 + $0x128] sm:$0xff]
        %v620 = vld [vmem:[%s1 + $0x130] sm:$0xff]
        %v621 = vld [vmem:[%s1 + $0x138] sm:$0xff]
        %v622 = vld [vmem:[%s1 + $0x140] sm:$0xff]
        %v623 = vld [vmem:[%s1 + $0x148] sm:$0xff]
        %v624 = vld [vmem:[%s1 + $0x150] sm:$0xff]
        %v625 = vld [vmem:[%s1 + $0x158] sm:$0xff]
        %v626 = vld [vmem:[%s1 + $0x160] sm:$0xff]
        %v627 = vld [vmem:[%s1 + $0x168] sm:$0xff]
        %v628 = vld [vmem:[%s1 + $0x170] sm:$0xff]
        %v629 = vld [vmem:[%s1 + $0x178] sm:$0xff]
        %v630 = vld [vmem:[%s1 + $0x180] sm:$0xff]
        %v631 = vld [vmem:[%s1 + $0x188] sm:$0xff]
        %v632 = vld [vmem:[%s1 + $0x190] sm:$0xff]
        %v633 = vld [vmem:[%s1 + $0x198] sm:$0xff]
        %v634 = vld [vmem:[%s1 + $0x1a0] sm:$0xff]
        %v635 = vld [vmem:[%s1 + $0x1a8] sm:$0xff]
        %v636 = vld [vmem:[%s1 + $0x1b0] sm:$0xff]
        %v637 = vld [vmem:[%s1 + $0x1b8] sm:$0xff]
        %v638 = vld [vmem:[%s1 + $0x1c0] sm:$0xff]
        %v639 = vld [vmem:[%s1 + $0x1c8] sm:$0xff]
        %v640 = vld [vmem:[%s1 + $0x1d0] sm:$0xff]
        %v641 = vld [vmem:[%s1 + $0x1d8] sm:$0xff]
        %v642 = vld [vmem:[%s1 + $0x1e0] sm:$0xff]
        %v643 = vld [vmem:[%s1 + $0x1e8] sm:$0xff]
        %v644 = vld [vmem:[%s1 + $0x1f0] sm:$0xff]
        %v645 = vld [vmem:[%s1 + $0x1f8] sm:$0xff]
        %v646 = vld [vmem:[%s1 + $0x200] sm:$0xff]
        %v647 = vld [vmem:[%s1 + $0x208] sm:$0xff]
        %v648 = vld [vmem:[%s1 + $0x210] sm:$0xff]
        %v649 = vld [vmem:[%s1 + $0x218] sm:$0xff]
        %v650 = vld [vmem:[%s1 + $0x220] sm:$0xff]
        %v651 = vld [vmem:[%s1 + $0x228] sm:$0xff]
        %v652 = vld [vmem:[%s1 + $0x230] sm:$0xff]
        %v653 = vld [vmem:[%s1 + $0x238] sm:$0xff]
        %v654 = vld [vmem:[%s1 + $0x240] sm:$0xff]
        %v655 = vld [vmem:[%s1 + $0x248] sm:$0xff]
        %v656 = vld [vmem:[%s1 + $0x250] sm:$0xff]
        %v657 = vld [vmem:[%s1 + $0x258] sm:$0xff]
        %v658 = vld [vmem:[%s1 + $0x260] sm:$0xff]
        %v659 = vld [vmem:[%s1 + $0x268] sm:$0xff]
        %v660 = vld [vmem:[%s1 + $0x270] sm:$0xff]
        %v661 = vld [vmem:[%s1 + $0x278] sm:$0xff]
        %v662 = vld [vmem:[%s1 + $0x280] sm:$0xff]
        %v663 = vld [vmem:[%s1 + $0x288] sm:$0xff]
        %v664 = vld [vmem:[%s1 + $0x290] sm:$0xff]
        %v665 = vld [vmem:[%s1 + $0x298] sm:$0xff]
        %v666 = vld [vmem:[%s1 + $0x2a0] sm:$0xff]
        %v667 = vld [vmem:[%s1 + $0x2a8] sm:$0xff]
        %v668 = vld [vmem:[%s1 + $0x2b0] sm:$0xff]
        %v669 = vld [vmem:[%s1 + $0x2b8] sm:$0xff]
        %v670 = vld [vmem:[%s1 + $0x2c0] sm:$0xff]
        %v671 = vld [vmem:[%s1 + $0x2c8] sm:$0xff]
        %v672 = vld [vmem:[%s1 + $0x2d0] sm:$0xff]
        %v673 = vld [vmem:[%s1 + $0x2d8] sm:$0xff]
        %v674 = vld [vmem:[%s1 + $0x2e0] sm:$0xff]
        %v675 = vld [vmem:[%s1 + $0x2e8] sm:$0xff]
        %v676 = vld [vmem:[%s1 + $0x2f0] sm:$0xff]
        %v677 = vld [vmem:[%s1 + $0x2f8] sm:$0xff]
        %v678 = vld [vmem:[%s1 + $0x300] sm:$0xff]
        %v679 = vld [vmem:[%s1 + $0x308] sm:$0xff]
        %v680 = vld [vmem:[%s1 + $0x310] sm:$0xff]
        %v681 = vld [vmem:[%s1 + $0x318] sm:$0xff]
        %v682 = vld [vmem:[%s1 + $0x320] sm:$0xff]
        %v683 = vld [vmem:[%s1 + $0x328] sm:$0xff]
        %v684 = vld [vmem:[%s1 + $0x330] sm:$0xff]
        %v685 = vld [vmem:[%s1 + $0x338] sm:$0xff]
        %v686 = vld [vmem:[%s1 + $0x340] sm:$0xff]
        %v687 = vld [vmem:[%s1 + $0x348] sm:$0xff]
        %v688 = vld [vmem:[%s1 + $0x350] sm:$0xff]
        %v689 = vld [vmem:[%s1 + $0x358] sm:$0xff]
        %v690 = vld [vmem:[%s1 + $0x360] sm:$0xff]
        %v691 = vld [vmem:[%s1 + $0x368] sm:$0xff]
        %v692 = vld [vmem:[%s1 + $0x370] sm:$0xff]
        %v693 = vld [vmem:[%s1 + $0x378] sm:$0xff]
        %v694 = vld [vmem:[%s1 + $0x380] sm:$0xff]
        %v695 = vld [vmem:[%s1 + $0x388] sm:$0xff]
        %v696 = vld [vmem:[%s1 + $0x390] sm:$0xff]
        %v697 = vld [vmem:[%s1 + $0x398] sm:$0xff]
        %v698 = vld [vmem:[%s1 + $0x3a0] sm:$0xff]
        %v699 = vld [vmem:[%s1 + $0x3a8] sm:$0xff]
        %v700 = vld [vmem:[%s1 + $0x3b0] sm:$0xff]
        %v701 = vld [vmem:[%s1 + $0x3b8] sm:$0xff]
        %v702 = vld [vmem:[%s1 + $0x3c0] sm:$0xff]
        %v703 = vld [vmem:[%s1 + $0x3c8] sm:$0xff]
        %v704 = vld [vmem:[%s1 + $0x3d0] sm:$0xff]
        %v705 = vld [vmem:[%s1 + $0x3d8] sm:$0xff]
        %v706 = vld [vmem:[%s1 + $0x3e0] sm:$0xff]
        %v707 = vld [vmem:[%s1 + $0x3e8] sm:$0xff]
        %v708 = vld [vmem:[%s1 + $0x3f0] sm:$0xff]
        %v709 = vld [vmem:[%s1 + $0x3f8] sm:$0xff]
        %v710 = vld [vmem:[%s1 + $0x400] sm:$0xff]
        %v711 = vld [vmem:[%s1 + $0x408] sm:$0xff]
        %v712 = vld [vmem:[%s1 + $0x410] sm:$0xff]
        %v713 = vld [vmem:[%s1 + $0x418] sm:$0xff]
        %v714 = vld [vmem:[%s1 + $0x420] sm:$0xff]
        %v715 = vld [vmem:[%s1 + $0x428] sm:$0xff]
        %v716 = vld [vmem:[%s1 + $0x430] sm:$0xff]
        %v717 = vld [vmem:[%s1 + $0x438] sm:$0xff]
        %v718 = vld [vmem:[%s1 + $0x440] sm:$0xff]
        %v719 = vld [vmem:[%s1 + $0x448] sm:$0xff]
        %v720 = vld [vmem:[%s1 + $0x450] sm:$0xff]
        %v721 = vld [vmem:[%s1 + $0x458] sm:$0xff]
        %v722 = vld [vmem:[%s1 + $0x460] sm:$0xff]
        %v723 = vld [vmem:[%s1 + $0x468] sm:$0xff]
        %v724 = vld [vmem:[%s1 + $0x470] sm:$0xff]
        %v725 = vld [vmem:[%s1 + $0x478] sm:$0xff]
        %726 = vmatprep.subr.mxu0 0.0
        %727 = vmatpush1.msra.mxu0 %v582
        %728 = vmatprep.subr.mxu0 0.0
        %729 = vmatpush1.msra.mxu0 %v583
        %730 = vmatprep.subr.mxu0 0.0
        %731 = vmatpush1.msra.mxu0 %v584
        %732 = vmatprep.subr.mxu0 0.0
        %733 = vmatpush1.msra.mxu0 %v585
        %734 = vmatprep.subr.mxu0 0.0
        %735 = vmatpush1.msra.mxu0 %v586
        %736 = vmatprep.subr.mxu0 0.0
        %737 = vmatpush1.msra.mxu0 %v587
        %738 = vmatprep.subr.mxu0 0.0
        %739 = vmatpush1.msra.mxu0 %v588
        %740 = vmatprep.subr.mxu0 0.0
        %741 = vmatpush1.msra.mxu0 %v589
        %742 = vmatprep.subr.mxu0 0.0
        %743 = vmatpush1.msra.mxu0 %v590
        %744 = vmatprep.subr.mxu0 0.0
        %745 = vmatpush1.msra.mxu0 %v591
        %746 = vmatprep.subr.mxu0 0.0
        %747 = vmatpush1.msra.mxu0 %v592
        %748 = vmatprep.subr.mxu0 0.0
        %749 = vmatpush1.msra.mxu0 %v593
        %750 = vmatprep.subr.mxu0 0.0
        %751 = vmatpush1.msra.mxu0 %v594
        %752 = vmatprep.subr.mxu0 0.0
        %753 = vmatpush1.msra.mxu0 %v595
        %754 = vmatprep.subr.mxu0 0.0
        %755 = vmatpush1.msra.mxu0 %v596
        %756 = vmatprep.subr.mxu0 0.0
        %757 = vmatpush1.msra.mxu0 %v597
        %758 = vmatprep.subr.mxu0 0.0
        %759 = vmatpush1.msra.mxu0 %v598
        %760 = vmatprep.subr.mxu0 0.0
        %761 = vmatpush1.msra.mxu0 %v599
        %762 = vmatprep.subr.mxu0 0.0
        %763 = vmatpush1.msra.mxu0 %v600
        %764 = vmatprep.subr.mxu0 0.0
        %765 = vmatpush1.msra.mxu0 %v601
        %766 = vmatprep.subr.mxu0 0.0
        %767 = vmatpush1.msra.mxu0 %v602
        %768 = vmatprep.subr.mxu0 0.0
        %769 = vmatpush1.msra.mxu0 %v603
        %770 = vmatprep.subr.mxu0 0.0
        %771 = vmatpush1.msra.mxu0 %v604
        %772 = vmatprep.subr.mxu0 0.0
        %773 = vmatpush1.msra.mxu0 %v605
        %774 = vmatprep.subr.mxu0 0.0
        %775 = vmatpush1.msra.mxu0 %v606
        %776 = vmatprep.subr.mxu0 0.0
        %777 = vmatpush1.msra.mxu0 %v607
        %778 = vmatprep.subr.mxu0 0.0
        %779 = vmatpush1.msra.mxu0 %v608
        %780 = vmatprep.subr.mxu0 0.0
        %781 = vmatpush1.msra.mxu0 %v609
        %782 = vmatprep.subr.mxu0 0.0
        %783 = vmatpush1.msra.mxu0 %v610
        %784 = vmatprep.subr.mxu0 0.0
        %785 = vmatpush1.msra.mxu0 %v611
        %786 = vmatprep.subr.mxu0 0.0
        %787 = vmatpush1.msra.mxu0 %v612
        %788 = vmatprep.subr.mxu0 0.0
        %789 = vmatpush1.msra.mxu0 %v613
        %790 = vmatprep.mubr.f32.mxu0 %v324
        %791 = vmatmul.mubr.f32.gmra.mrb[0].mxu0 %v292
        %v792 = vpop.f32.mrb[0].mxu0
        %v793 = vadd.f32 0.0, %v792
        %v794 = vpop.f32.mrb[0].mxu0
        %795 = vmatprep.mubr.f32.mxu0 %v325
        %796 = vmatmul.mubr.f32.gmra.mrb[0].mxu0 %v293
        %v797 = vpop.f32.mrb[0].mxu0
        %v798 = vadd.f32 0.0, %v797
        %v799 = vpop.f32.mrb[0].mxu0
        %800 = vmatprep.mubr.f32.mxu0 %v326
        %801 = vmatmul.mubr.f32.gmra.mrb[0].mxu0 %v294
        %v802 = vpop.f32.mrb[0].mxu0
        %v803 = vadd.f32 0.0, %v802
        %v804 = vpop.f32.mrb[0].mxu0
        %805 = vmatprep.mubr.f32.mxu0 %v327
        %806 = vmatmul.mubr.f32.gmra.mrb[0].mxu0 %v295
        %v807 = vpop.f32.mrb[0].mxu0
        %v808 = vadd.f32 0.0, %v807
        %v809 = vpop.f32.mrb[0].mxu0
        %810 = vmatprep.mubr.f32.mxu0 %v328
        %811 = vmatmul.mubr.f32.gmra.mrb[0].mxu0 %v296
        %v812 = vpop.f32.mrb[0].mxu0
        %v813 = vadd.f32 0.0, %v812
        %v814 = vpop.f32.mrb[0].mxu0
        %815 = vmatprep.mubr.f32.mxu0 %v329
        %816 = vmatmul.mubr.f32.gmra.mrb[0].mxu0 %v297
        %v817 = vpop.f32.mrb[0].mxu0
        %v818 = vadd.f32 0.0, %v817
        %v819 = vpop.f32.mrb[0].mxu0
        %820 = vmatprep.mubr.f32.mxu0 %v330
        %821 = vmatmul.mubr.f32.gmra.mrb[0].mxu0 %v298
        %v822 = vpop.f32.mrb[0].mxu0
        %v823 = vadd.f32 0.0, %v822
        %v824 = vpop.f32.mrb[0].mxu0
        %825 = vmatprep.mubr.f32.mxu0 %v331
        %826 = vmatmul.mubr.f32.gmra.mrb[0].mxu0 %v299
        %v827 = vpop.f32.mrb[0].mxu0
        %v828 = vadd.f32 0.0, %v827
        %v829 = vpop.f32.mrb[0].mxu0
        %830 = vmatprep.mubr.f32.mxu0 %v332
        %831 = vmatmul.mubr.f32.gmra.mrb[0].mxu0 %v300
        %v832 = vpop.f32.mrb[0].mxu0
        %v833 = vadd.f32 0.0, %v832
        %v834 = vpop.f32.mrb[0].mxu0
        %835 = vmatprep.mubr.f32.mxu0 %v333
        %836 = vmatmul.mubr.f32.gmra.mrb[0].mxu0 %v301
        %v837 = vpop.f32.mrb[0].mxu0
        %v838 = vadd.f32 0.0, %v837
        %v839 = vpop.f32.mrb[0].mxu0
        %840 = vmatprep.mubr.f32.mxu0 %v334
        %841 = vmatmul.mubr.f32.gmra.mrb[0].mxu0 %v302
        %v842 = vpop.f32.mrb[0].mxu0
        %v843 = vadd.f32 0.0, %v842
        %v844 = vpop.f32.mrb[0].mxu0
        %845 = vmatprep.mubr.f32.mxu0 %v335
        %846 = vmatmul.mubr.f32.gmra.mrb[0].mxu0 %v303
        %v847 = vpop.f32.mrb[0].mxu0
        %v848 = vadd.f32 0.0, %v847
        %v849 = vpop.f32.mrb[0].mxu0
        %850 = vmatprep.mubr.f32.mxu0 %v336
        %851 = vmatmul.mubr.f32.gmra.mrb[0].mxu0 %v304
        %v852 = vpop.f32.mrb[0].mxu0
        %v853 = vadd.f32 0.0, %v852
        %v854 = vpop.f32.mrb[0].mxu0
        %855 = vmatprep.mubr.f32.mxu0 %v337
        %856 = vmatmul.mubr.f32.gmra.mrb[0].mxu0 %v305
        %v857 = vpop.f32.mrb[0].mxu0
        %v858 = vadd.f32 0.0, %v857
        %v859 = vpop.f32.mrb[0].mxu0
        %860 = vmatprep.mubr.f32.mxu0 %v338
        %861 = vmatmul.mubr.f32.gmra.mrb[0].mxu0 %v306
        %v862 = vpop.f32.mrb[0].mxu0
        %v863 = vadd.f32 0.0, %v862
        %v864 = vpop.f32.mrb[0].mxu0
        %865 = vmatprep.mubr.f32.mxu0 %v339
        %866 = vmatmul.mubr.f32.gmra.mrb[0].mxu0 %v307
        %v867 = vpop.f32.mrb[0].mxu0
        %v868 = vadd.f32 0.0, %v867
        %v869 = vpop.f32.mrb[0].mxu0
        %870 = vmatprep.mubr.f32.mxu0 %v340
        %871 = vmatmul.mubr.f32.gmra.mrb[0].mxu0 %v308
        %v872 = vpop.f32.mrb[0].mxu0
        %v873 = vadd.f32 0.0, %v872
        %v874 = vpop.f32.mrb[0].mxu0
        %875 = vmatprep.mubr.f32.mxu0 %v341
        %876 = vmatmul.mubr.f32.gmra.mrb[0].mxu0 %v309
        %v877 = vpop.f32.mrb[0].mxu0
        %v878 = vadd.f32 0.0, %v877
        %v879 = vpop.f32.mrb[0].mxu0
        %880 = vmatprep.mubr.f32.mxu0 %v342
        %881 = vmatmul.mubr.f32.gmra.mrb[0].mxu0 %v310
        %v882 = vpop.f32.mrb[0].mxu0
        %v883 = vadd.f32 0.0, %v882
        %v884 = vpop.f32.mrb[0].mxu0
        %885 = vmatprep.mubr.f32.mxu0 %v343
        %886 = vmatmul.mubr.f32.gmra.mrb[0].mxu0 %v311
        %v887 = vpop.f32.mrb[0].mxu0
        %v888 = vadd.f32 0.0, %v887
        %v889 = vpop.f32.mrb[0].mxu0
        %890 = vmatprep.mubr.f32.mxu0 %v344
        %891 = vmatmul.mubr.f32.gmra.mrb[0].mxu0 %v312
        %v892 = vpop.f32.mrb[0].mxu0
        %v893 = vadd.f32 0.0, %v892
        %v894 = vpop.f32.mrb[0].mxu0
        %895 = vmatprep.mubr.f32.mxu0 %v345
        %896 = vmatmul.mubr.f32.gmra.mrb[0].mxu0 %v313
        %v897 = vpop.f32.mrb[0].mxu0
        %v898 = vadd.f32 0.0, %v897
        %v899 = vpop.f32.mrb[0].mxu0
        %900 = vmatprep.mubr.f32.mxu0 %v346
        %901 = vmatmul.mubr.f32.gmra.mrb[0].mxu0 %v314
        %v902 = vpop.f32.mrb[0].mxu0
        %v903 = vadd.f32 0.0, %v902
        %v904 = vpop.f32.mrb[0].mxu0
        %905 = vmatprep.mubr.f32.mxu0 %v347
        %906 = vmatmul.mubr.f32.gmra.mrb[0].mxu0 %v315
        %v907 = vpop.f32.mrb[0].mxu0
        %v908 = vadd.f32 0.0, %v907
        %v909 = vpop.f32.mrb[0].mxu0
        %910 = vmatprep.mubr.f32.mxu0 %v348
        %911 = vmatmul.mubr.f32.gmra.mrb[0].mxu0 %v316
        %v912 = vpop.f32.mrb[0].mxu0
        %v913 = vadd.f32 0.0, %v912
        %v914 = vpop.f32.mrb[0].mxu0
        %915 = vmatprep.mubr.f32.mxu0 %v349
        %916 = vmatmul.mubr.f32.gmra.mrb[0].mxu0 %v317
        %v917 = vpop.f32.mrb[0].mxu0
        %v918 = vadd.f32 0.0, %v917
        %v919 = vpop.f32.mrb[0].mxu0
        %920 = vmatprep.mubr.f32.mxu0 %v350
        %921 = vmatmul.mubr.f32.gmra.mrb[0].mxu0 %v318
        %v922 = vpop.f32.mrb[0].mxu0
        %v923 = vadd.f32 0.0, %v922
        %v924 = vpop.f32.mrb[0].mxu0
        %925 = vmatprep.mubr.f32.mxu0 %v351
        %926 = vmatmul.mubr.f32.gmra.mrb[0].mxu0 %v319
        %v927 = vpop.f32.mrb[0].mxu0
        %v928 = vadd.f32 0.0, %v927
        %v929 = vpop.f32.mrb[0].mxu0
        %930 = vmatprep.mubr.f32.mxu0 %v352
        %931 = vmatmul.mubr.f32.gmra.mrb[0].mxu0 %v320
        %v932 = vpop.f32.mrb[0].mxu0
        %v933 = vadd.f32 0.0, %v932
        %v934 = vpop.f32.mrb[0].mxu0
        %935 = vmatprep.mubr.f32.mxu0 %v353
        %936 = vmatmul.mubr.f32.gmra.mrb[0].mxu0 %v321
        %v937 = vpop.f32.mrb[0].mxu0
        %v938 = vadd.f32 0.0, %v937
        %v939 = vpop.f32.mrb[0].mxu0
        %940 = vmatprep.mubr.f32.mxu0 %v354
        %941 = vmatmul.mubr.f32.gmra.mrb[0].mxu0 %v322
        %v942 = vpop.f32.mrb[0].mxu0
        %v943 = vadd.f32 0.0, %v942
        %v944 = vpop.f32.mrb[0].mxu0
        %945 = vmatprep.mubr.f32.mxu0 %v355
        %946 = vmatmul.mubr.f32.gmra.mrb[0].mxu0 %v323
        %v947 = vpop.f32.mrb[0].mxu0
        %v948 = vadd.f32 0.0, %v947
        %v949 = vpop.f32.mrb[0].mxu0
        %950 = vdwg.mxu0
        %951 = vmatprep.subr.mxu0 0.0
        %952 = vmatpush1.msra.mxu0 %v614
        %953 = vmatprep.subr.mxu0 0.0
        %954 = vmatpush1.msra.mxu0 %v615
        %955 = vmatprep.subr.mxu0 0.0
        %956 = vmatpush1.msra.mxu0 %v616
        %957 = vmatprep.subr.mxu0 0.0
        %958 = vmatpush1.msra.mxu0 %v617
        %959 = vmatprep.subr.mxu0 0.0
        %960 = vmatpush1.msra.mxu0 %v618
        %961 = vmatprep.subr.mxu0 0.0
        %962 = vmatpush1.msra.mxu0 %v619
        %963 = vmatprep.subr.mxu0 0.0
        %964 = vmatpush1.msra.mxu0 %v620
        %965 = vmatprep.subr.mxu0 0.0
        %966 = vmatpush1.msra.mxu0 %v621
        %967 = vmatprep.subr.mxu0 0.0
        %968 = vmatpush1.msra.mxu0 %v622
        %969 = vmatprep.subr.mxu0 0.0
        %970 = vmatpush1.msra.mxu0 %v623
        %971 = vmatprep.subr.mxu0 0.0
        %972 = vmatpush1.msra.mxu0 %v624
        %973 = vmatprep.subr.mxu0 0.0
        %974 = vmatpush1.msra.mxu0 %v625
        %975 = vmatprep.subr.mxu0 0.0
        %976 = vmatpush1.msra.mxu0 %v626
        %977 = vmatprep.subr.mxu0 0.0
        %978 = vmatpush1.msra.mxu0 %v627
        %979 = vmatprep.subr.mxu0 0.0
        %980 = vmatpush1.msra.mxu0 %v628
        %981 = vmatprep.subr.mxu0 0.0
        %982 = vmatpush1.msra.mxu0 %v629
        %983 = vmatprep.subr.mxu0 0.0
        %984 = vmatpush1.msra.mxu0 %v630
        %985 = vmatprep.subr.mxu0 0.0
        %986 = vmatpush1.msra.mxu0 %v631
        %987 = vmatprep.subr.mxu0 0.0
        %988 = vmatpush1.msra.mxu0 %v632
        %989 = vmatprep.subr.mxu0 0.0
        %990 = vmatpush1.msra.mxu0 %v633
        %991 = vmatprep.subr.mxu0 0.0
        %992 = vmatpush1.msra.mxu0 %v634
        %993 = vmatprep.subr.mxu0 0.0
        %994 = vmatpush1.msra.mxu0 %v635
        %995 = vmatprep.subr.mxu0 0.0
        %996 = vmatpush1.msra.mxu0 %v636
        %997 = vmatprep.subr.mxu0 0.0
        %998 = vmatpush1.msra.mxu0 %v637
        %999 = vmatprep.subr.mxu0 0.0
        %1000 = vmatpush1.msra.mxu0 %v638
        %1001 = vmatprep.subr.mxu0 0.0
        %1002 = vmatpush1.msra.mxu0 %v639
        %1003 = vmatprep.subr.mxu0 0.0
        %1004 = vmatpush1.msra.mxu0 %v640
        %1005 = vmatprep.subr.mxu0 0.0
        %1006 = vmatpush1.msra.mxu0 %v641
        %1007 = vmatprep.subr.mxu0 0.0
        %1008 = vmatpush1.msra.mxu0 %v642
        %1009 = vmatprep.subr.mxu0 0.0
        %1010 = vmatpush1.msra.mxu0 %v643
        %1011 = vmatprep.subr.mxu0 0.0
        %1012 = vmatpush1.msra.mxu0 %v644
        %1013 = vmatprep.subr.mxu0 0.0
        %1014 = vmatpush1.msra.mxu0 %v645
        %1015 = vmatprep.mubr.f32.mxu0 %v389
        %1016 = vmatmul.mubr.f32.gmra.mrb[0].mxu0 %v356
        %v1017 = vpop.f32.mrb[0].mxu0
        %v1018 = vadd.f32 %v793, %v1017
        %v1019 = vpop.f32.mrb[0].mxu0
        %1020 = vmatprep.mubr.f32.mxu0 %v390
        %1021 = vmatmul.mubr.f32.gmra.mrb[0].mxu0 %v357
        %v1022 = vpop.f32.mrb[0].mxu0
        %v1023 = vadd.f32 %v798, %v1022
        %v1024 = vpop.f32.mrb[0].mxu0
        %1025 = vmatprep.mubr.f32.mxu0 %v391
        %1026 = vmatmul.mubr.f32.gmra.mrb[0].mxu0 %v358
        %v1027 = vpop.f32.mrb[0].mxu0
        %v1028 = vadd.f32 %v803, %v1027
        %v1029 = vpop.f32.mrb[0].mxu0
        %1030 = vmatprep.mubr.f32.mxu0 %v392
        %1031 = vmatmul.mubr.f32.gmra.mrb[0].mxu0 %v359
        %v1032 = vpop.f32.mrb[0].mxu0
        %v1033 = vadd.f32 %v808, %v1032
        %v1034 = vpop.f32.mrb[0].mxu0
        %1035 = vmatprep.mubr.f32.mxu0 %v393
        %1036 = vmatmul.mubr.f32.gmra.mrb[0].mxu0 %v360
        %v1037 = vpop.f32.mrb[0].mxu0
        %v1038 = vadd.f32 %v813, %v1037
        %v1039 = vpop.f32.mrb[0].mxu0
        %1040 = vmatprep.mubr.f32.mxu0 %v394
        %1041 = vmatmul.mubr.f32.gmra.mrb[0].mxu0 %v361
        %v1042 = vpop.f32.mrb[0].mxu0
        %v1043 = vadd.f32 %v818, %v1042
        %v1044 = vpop.f32.mrb[0].mxu0
        %1045 = vmatprep.mubr.f32.mxu0 %v395
        %1046 = vmatmul.mubr.f32.gmra.mrb[0].mxu0 %v362
        %v1047 = vpop.f32.mrb[0].mxu0
        %v1048 = vadd.f32 %v823, %v1047
        %v1049 = vpop.f32.mrb[0].mxu0
        %1050 = vmatprep.mubr.f32.mxu0 %v396
        %1051 = vmatmul.mubr.f32.gmra.mrb[0].mxu0 %v363
        %v1052 = vpop.f32.mrb[0].mxu0
        %v1053 = vadd.f32 %v828, %v1052
        %v1054 = vpop.f32.mrb[0].mxu0
        %1055 = vmatprep.mubr.f32.mxu0 %v397
        %1056 = vmatmul.mubr.f32.gmra.mrb[0].mxu0 %v364
        %v1057 = vpop.f32.mrb[0].mxu0
        %v1058 = vadd.f32 %v833, %v1057
        %v1059 = vpop.f32.mrb[0].mxu0
        %1060 = vmatprep.mubr.f32.mxu0 %v398
        %1061 = vmatmul.mubr.f32.gmra.mrb[0].mxu0 %v365
        %v1062 = vpop.f32.mrb[0].mxu0
        %v1063 = vadd.f32 %v838, %v1062
        %v1064 = vpop.f32.mrb[0].mxu0
        %1065 = vmatprep.mubr.f32.mxu0 %v399
        %1066 = vmatmul.mubr.f32.gmra.mrb[0].mxu0 %v366
        %v1067 = vpop.f32.mrb[0].mxu0
        %v1068 = vadd.f32 %v843, %v1067
        %v1069 = vpop.f32.mrb[0].mxu0
        %1070 = vmatprep.mubr.f32.mxu0 %v400
        %1071 = vmatmul.mubr.f32.gmra.mrb[0].mxu0 %v367
        %v1072 = vpop.f32.mrb[0].mxu0
        %v1073 = vadd.f32 %v848, %v1072
        %v1074 = vpop.f32.mrb[0].mxu0
        %1075 = vmatprep.mubr.f32.mxu0 %v401
        %1076 = vmatmul.mubr.f32.gmra.mrb[0].mxu0 %v368
        %v1077 = vpop.f32.mrb[0].mxu0
        %v1078 = vadd.f32 %v853, %v1077
        %v1079 = vpop.f32.mrb[0].mxu0
        %1080 = vmatprep.mubr.f32.mxu0 %v402
        %1081 = vmatmul.mubr.f32.gmra.mrb[0].mxu0 %v369
        %v1082 = vpop.f32.mrb[0].mxu0
        %v1083 = vadd.f32 %v858, %v1082
        %v1084 = vpop.f32.mrb[0].mxu0
        %1085 = vmatprep.mubr.f32.mxu0 %v403
        %1086 = vmatmul.mubr.f32.gmra.mrb[0].mxu0 %v370
        %v1087 = vpop.f32.mrb[0].mxu0
        %v1088 = vadd.f32 %v863, %v1087
        %v1089 = vpop.f32.mrb[0].mxu0
        %1090 = vmatprep.mubr.f32.mxu0 %v404
        %1091 = vmatmul.mubr.f32.gmra.mrb[0].mxu0 %v371
        %v1092 = vpop.f32.mrb[0].mxu0
        %v1093 = vadd.f32 %v868, %v1092
        %v1094 = vpop.f32.mrb[0].mxu0
        %1095 = vmatprep.mubr.f32.mxu0 %v405
        %1096 = vmatmul.mubr.f32.gmra.mrb[0].mxu0 %v372
        %v1097 = vpop.f32.mrb[0].mxu0
        %v1098 = vadd.f32 %v873, %v1097
        %v1099 = vpop.f32.mrb[0].mxu0
        %1100 = vmatprep.mubr.f32.mxu0 %v406
        %1101 = vmatmul.mubr.f32.gmra.mrb[0].mxu0 %v373
        %v1102 = vpop.f32.mrb[0].mxu0
        %v1103 = vadd.f32 %v878, %v1102
        %v1104 = vpop.f32.mrb[0].mxu0
        %1105 = vmatprep.mubr.f32.mxu0 %v407
        %1106 = vmatmul.mubr.f32.gmra.mrb[0].mxu0 %v374
        %v1107 = vpop.f32.mrb[0].mxu0
        %v1108 = vadd.f32 %v883, %v1107
        %v1109 = vpop.f32.mrb[0].mxu0
        %1110 = vmatprep.mubr.f32.mxu0 %v408
        %1111 = vmatmul.mubr.f32.gmra.mrb[0].mxu0 %v375
        %v1112 = vpop.f32.mrb[0].mxu0
        %v1113 = vadd.f32 %v888, %v1112
        %v1114 = vpop.f32.mrb[0].mxu0
        %1115 = vmatprep.mubr.f32.mxu0 %v409
        %1116 = vmatmul.mubr.f32.gmra.mrb[0].mxu0 %v376
        %v1117 = vpop.f32.mrb[0].mxu0
        %v1118 = vadd.f32 %v893, %v1117
        %v1119 = vpop.f32.mrb[0].mxu0
        %1120 = vmatprep.mubr.f32.mxu0 %v410
        %1121 = vmatmul.mubr.f32.gmra.mrb[0].mxu0 %v377
        %v1122 = vpop.f32.mrb[0].mxu0
        %v1123 = vadd.f32 %v898, %v1122
        %v1124 = vpop.f32.mrb[0].mxu0
        %1125 = vmatprep.mubr.f32.mxu0 %v411
        %1126 = vmatmul.mubr.f32.gmra.mrb[0].mxu0 %v378
        %v1127 = vpop.f32.mrb[0].mxu0
        %v1128 = vadd.f32 %v903, %v1127
        %v1129 = vpop.f32.mrb[0].mxu0
        %1130 = vmatprep.mubr.f32.mxu0 %v412
        %1131 = vmatmul.mubr.f32.gmra.mrb[0].mxu0 %v379
        %v1132 = vpop.f32.mrb[0].mxu0
        %v1133 = vadd.f32 %v908, %v1132
        %v1134 = vpop.f32.mrb[0].mxu0
        %1135 = vmatprep.mubr.f32.mxu0 %v413
        %1136 = vmatmul.mubr.f32.gmra.mrb[0].mxu0 %v380
        %v1137 = vpop.f32.mrb[0].mxu0
        %v1138 = vadd.f32 %v913, %v1137
        %v1139 = vpop.f32.mrb[0].mxu0
        %1140 = vmatprep.mubr.f32.mxu0 %v414
        %1141 = vmatmul.mubr.f32.gmra.mrb[0].mxu0 %v381
        %v1142 = vpop.f32.mrb[0].mxu0
        %v1143 = vadd.f32 %v918, %v1142
        %v1144 = vpop.f32.mrb[0].mxu0
        %1145 = vmatprep.mubr.f32.mxu0 %v415
        %1146 = vmatmul.mubr.f32.gmra.mrb[0].mxu0 %v382
        %v1147 = vpop.f32.mrb[0].mxu0
        %v1148 = vadd.f32 %v923, %v1147
        %v1149 = vpop.f32.mrb[0].mxu0
        %1150 = vmatprep.mubr.f32.mxu0 %v416
        %1151 = vmatmul.mubr.f32.gmra.mrb[0].mxu0 %v383
        %v1152 = vpop.f32.mrb[0].mxu0
        %v1153 = vadd.f32 %v928, %v1152
        %v1154 = vpop.f32.mrb[0].mxu0
        %1155 = vmatprep.mubr.f32.mxu0 %v417
        %1156 = vmatmul.mubr.f32.gmra.mrb[0].mxu0 %v384
        %v1157 = vpop.f32.mrb[0].mxu0
        %v1158 = vadd.f32 %v933, %v1157
        %v1159 = vpop.f32.mrb[0].mxu0
        %1160 = vmatprep.mubr.f32.mxu0 %v418
        %1161 = vmatmul.mubr.f32.gmra.mrb[0].mxu0 %v385
        %v1162 = vpop.f32.mrb[0].mxu0
        %v1163 = vadd.f32 %v938, %v1162
        %v1164 = vpop.f32.mrb[0].mxu0
        %1165 = vmatprep.mubr.f32.mxu0 %v419
        %1166 = vmatmul.mubr.f32.gmra.mrb[0].mxu0 %v386
        %v1167 = vpop.f32.mrb[0].mxu0
        %v1168 = vadd.f32 %v943, %v1167
        %v1169 = vpop.f32.mrb[0].mxu0
        %1170 = vmatprep.mubr.f32.mxu0 %v420
        %1171 = vmatmul.mubr.f32.gmra.mrb[0].mxu0 %v387
        %v1172 = vpop.f32.mrb[0].mxu0
        %v1173 = vadd.f32 %v948, %v1172
        %v1174 = vpop.f32.mrb[0].mxu0
        %1175 = vdwg.mxu0
        %1176 = vmatprep.subr.mxu0 0.0
        %1177 = vmatpush1.msra.mxu0 %v646
        %1178 = vmatprep.subr.mxu0 0.0
        %1179 = vmatpush1.msra.mxu0 %v647
        %1180 = vmatprep.subr.mxu0 0.0
        %1181 = vmatpush1.msra.mxu0 %v648
        %1182 = vmatprep.subr.mxu0 0.0
        %1183 = vmatpush1.msra.mxu0 %v649
        %1184 = vmatprep.subr.mxu0 0.0
        %1185 = vmatpush1.msra.mxu0 %v650
        %1186 = vmatprep.subr.mxu0 0.0
        %1187 = vmatpush1.msra.mxu0 %v651
        %1188 = vmatprep.subr.mxu0 0.0
        %1189 = vmatpush1.msra.mxu0 %v652
        %1190 = vmatprep.subr.mxu0 0.0
        %1191 = vmatpush1.msra.mxu0 %v653
        %1192 = vmatprep.subr.mxu0 0.0
        %1193 = vmatpush1.msra.mxu0 %v654
        %1194 = vmatprep.subr.mxu0 0.0
        %1195 = vmatpush1.msra.mxu0 %v655
        %1196 = vmatprep.subr.mxu0 0.0
        %1197 = vmatpush1.msra.mxu0 %v656
        %1198 = vmatprep.subr.mxu0 0.0
        %1199 = vmatpush1.msra.mxu0 %v657
        %1200 = vmatprep.subr.mxu0 0.0
        %1201 = vmatpush1.msra.mxu0 %v658
        %1202 = vmatprep.subr.mxu0 0.0
        %1203 = vmatpush1.msra.mxu0 %v659
        %1204 = vmatprep.subr.mxu0 0.0
        %1205 = vmatpush1.msra.mxu0 %v660
        %1206 = vmatprep.subr.mxu0 0.0
        %1207 = vmatpush1.msra.mxu0 %v661
        %1208 = vmatprep.subr.mxu0 0.0
        %1209 = vmatpush1.msra.mxu0 %v662
        %1210 = vmatprep.subr.mxu0 0.0
        %1211 = vmatpush1.msra.mxu0 %v663
        %1212 = vmatprep.subr.mxu0 0.0
        %1213 = vmatpush1.msra.mxu0 %v664
        %1214 = vmatprep.subr.mxu0 0.0
        %1215 = vmatpush1.msra.mxu0 %v665
        %1216 = vmatprep.subr.mxu0 0.0
        %1217 = vmatpush1.msra.mxu0 %v666
        %1218 = vmatprep.subr.mxu0 0.0
        %1219 = vmatpush1.msra.mxu0 %v667
        %1220 = vmatprep.subr.mxu0 0.0
        %1221 = vmatpush1.msra.mxu0 %v668
        %1222 = vmatprep.subr.mxu0 0.0
        %1223 = vmatpush1.msra.mxu0 %v669
        %1224 = vmatprep.subr.mxu0 0.0
        %1225 = vmatpush1.msra.mxu0 %v670
        %1226 = vmatprep.subr.mxu0 0.0
        %1227 = vmatpush1.msra.mxu0 %v671
        %1228 = vmatprep.subr.mxu0 0.0
        %1229 = vmatpush1.msra.mxu0 %v672
        %1230 = vmatprep.subr.mxu0 0.0
        %1231 = vmatpush1.msra.mxu0 %v673
        %1232 = vmatprep.subr.mxu0 0.0
        %1233 = vmatpush1.msra.mxu0 %v674
        %1234 = vmatprep.subr.mxu0 0.0
        %1235 = vmatpush1.msra.mxu0 %v675
        %1236 = vmatprep.subr.mxu0 0.0
        %1237 = vmatpush1.msra.mxu0 %v676
        %1238 = vmatprep.subr.mxu0 0.0
        %1239 = vmatpush1.msra.mxu0 %v677
        %1240 = vmatprep.mubr.f32.mxu0 %v453
        %1241 = vmatmul.mubr.f32.gmra.mrb[0].mxu0 %v421
        %v1242 = vpop.f32.mrb[0].mxu0
        %v1243 = vadd.f32 %v1018, %v1242
        %v1244 = vpop.f32.mrb[0].mxu0
        %1245 = vmatprep.mubr.f32.mxu0 %v454
        %1246 = vmatmul.mubr.f32.gmra.mrb[0].mxu0 %v422
        %v1247 = vpop.f32.mrb[0].mxu0
        %v1248 = vadd.f32 %v1023, %v1247
        %v1249 = vpop.f32.mrb[0].mxu0
        %1250 = vmatprep.mubr.f32.mxu0 %v455
        %1251 = vmatmul.mubr.f32.gmra.mrb[0].mxu0 %v423
        %v1252 = vpop.f32.mrb[0].mxu0
        %v1253 = vadd.f32 %v1028, %v1252
        %v1254 = vpop.f32.mrb[0].mxu0
        %1255 = vmatprep.mubr.f32.mxu0 %v456
        %1256 = vmatmul.mubr.f32.gmra.mrb[0].mxu0 %v424
        %v1257 = vpop.f32.mrb[0].mxu0
        %v1258 = vadd.f32 %v1033, %v1257
        %v1259 = vpop.f32.mrb[0].mxu0
        %1260 = vmatprep.mubr.f32.mxu0 %v457
        %1261 = vmatmul.mubr.f32.gmra.mrb[0].mxu0 %v425
        %v1262 = vpop.f32.mrb[0].mxu0
        %v1263 = vadd.f32 %v1038, %v1262
        %v1264 = vpop.f32.mrb[0].mxu0
        %1265 = vmatprep.mubr.f32.mxu0 %v458
        %1266 = vmatmul.mubr.f32.gmra.mrb[0].mxu0 %v426
        %v1267 = vpop.f32.mrb[0].mxu0
        %v1268 = vadd.f32 %v1043, %v1267
        %v1269 = vpop.f32.mrb[0].mxu0
        %1270 = vmatprep.mubr.f32.mxu0 %v459
        %1271 = vmatmul.mubr.f32.gmra.mrb[0].mxu0 %v427
        %v1272 = vpop.f32.mrb[0].mxu0
        %v1273 = vadd.f32 %v1048, %v1272
        %v1274 = vpop.f32.mrb[0].mxu0
        %1275 = vmatprep.mubr.f32.mxu0 %v460
        %1276 = vmatmul.mubr.f32.gmra.mrb[0].mxu0 %v428
        %v1277 = vpop.f32.mrb[0].mxu0
        %v1278 = vadd.f32 %v1053, %v1277
        %v1279 = vpop.f32.mrb[0].mxu0
        %1280 = vmatprep.mubr.f32.mxu0 %v461
        %1281 = vmatmul.mubr.f32.gmra.mrb[0].mxu0 %v429
        %v1282 = vpop.f32.mrb[0].mxu0
        %v1283 = vadd.f32 %v1058, %v1282
        %v1284 = vpop.f32.mrb[0].mxu0
        %1285 = vmatprep.mubr.f32.mxu0 %v462
        %1286 = vmatmul.mubr.f32.gmra.mrb[0].mxu0 %v430
        %v1287 = vpop.f32.mrb[0].mxu0
        %v1288 = vadd.f32 %v1063, %v1287
        %v1289 = vpop.f32.mrb[0].mxu0
        %1290 = vmatprep.mubr.f32.mxu0 %v463
        %1291 = vmatmul.mubr.f32.gmra.mrb[0].mxu0 %v431
        %v1292 = vpop.f32.mrb[0].mxu0
        %v1293 = vadd.f32 %v1068, %v1292
        %v1294 = vpop.f32.mrb[0].mxu0
        %1295 = vmatprep.mubr.f32.mxu0 %v464
        %1296 = vmatmul.mubr.f32.gmra.mrb[0].mxu0 %v432
        %v1297 = vpop.f32.mrb[0].mxu0
        %v1298 = vadd.f32 %v1073, %v1297
        %v1299 = vpop.f32.mrb[0].mxu0
        %1300 = vmatprep.mubr.f32.mxu0 %v465
        %1301 = vmatmul.mubr.f32.gmra.mrb[0].mxu0 %v433
        %v1302 = vpop.f32.mrb[0].mxu0
        %v1303 = vadd.f32 %v1078, %v1302
        %v1304 = vpop.f32.mrb[0].mxu0
        %1305 = vmatprep.mubr.f32.mxu0 %v466
        %1306 = vmatmul.mubr.f32.gmra.mrb[0].mxu0 %v434
        %v1307 = vpop.f32.mrb[0].mxu0
        %v1308 = vadd.f32 %v1083, %v1307
        %v1309 = vpop.f32.mrb[0].mxu0
        %1310 = vmatprep.mubr.f32.mxu0 %v467
        %1311 = vmatmul.mubr.f32.gmra.mrb[0].mxu0 %v435
        %v1312 = vpop.f32.mrb[0].mxu0
        %v1313 = vadd.f32 %v1088, %v1312
        %v1314 = vpop.f32.mrb[0].mxu0
        %1315 = vmatprep.mubr.f32.mxu0 %v468
        %1316 = vmatmul.mubr.f32.gmra.mrb[0].mxu0 %v436
        %v1317 = vpop.f32.mrb[0].mxu0
        %v1318 = vadd.f32 %v1093, %v1317
        %v1319 = vpop.f32.mrb[0].mxu0
        %1320 = vmatprep.mubr.f32.mxu0 %v469
        %1321 = vmatmul.mubr.f32.gmra.mrb[0].mxu0 %v437
        %v1322 = vpop.f32.mrb[0].mxu0
        %v1323 = vadd.f32 %v1098, %v1322
        %v1324 = vpop.f32.mrb[0].mxu0
        %1325 = vmatprep.mubr.f32.mxu0 %v470
        %1326 = vmatmul.mubr.f32.gmra.mrb[0].mxu0 %v438
        %v1327 = vpop.f32.mrb[0].mxu0
        %v1328 = vadd.f32 %v1103, %v1327
        %v1329 = vpop.f32.mrb[0].mxu0
        %1330 = vmatprep.mubr.f32.mxu0 %v471
        %1331 = vmatmul.mubr.f32.gmra.mrb[0].mxu0 %v439
        %v1332 = vpop.f32.mrb[0].mxu0
        %v1333 = vadd.f32 %v1108, %v1332
        %v1334 = vpop.f32.mrb[0].mxu0
        %1335 = vmatprep.mubr.f32.mxu0 %v472
        %1336 = vmatmul.mubr.f32.gmra.mrb[0].mxu0 %v440
        %v1337 = vpop.f32.mrb[0].mxu0
        %v1338 = vadd.f32 %v1113, %v1337
        %v1339 = vpop.f32.mrb[0].mxu0
        %1340 = vmatprep.mubr.f32.mxu0 %v473
        %1341 = vmatmul.mubr.f32.gmra.mrb[0].mxu0 %v441
        %v1342 = vpop.f32.mrb[0].mxu0
        %v1343 = vadd.f32 %v1118, %v1342
        %v1344 = vpop.f32.mrb[0].mxu0
        %1345 = vmatprep.mubr.f32.mxu0 %v474
        %1346 = vmatmul.mubr.f32.gmra.mrb[0].mxu0 %v442
        %v1347 = vpop.f32.mrb[0].mxu0
        %v1348 = vadd.f32 %v1123, %v1347
        %v1349 = vpop.f32.mrb[0].mxu0
        %1350 = vmatprep.mubr.f32.mxu0 %v475
        %1351 = vmatmul.mubr.f32.gmra.mrb[0].mxu0 %v443
        %v1352 = vpop.f32.mrb[0].mxu0
        %v1353 = vadd.f32 %v1128, %v1352
        %v1354 = vpop.f32.mrb[0].mxu0
        %1355 = vmatprep.mubr.f32.mxu0 %v476
        %1356 = vmatmul.mubr.f32.gmra.mrb[0].mxu0 %v444
        %v1357 = vpop.f32.mrb[0].mxu0
        %v1358 = vadd.f32 %v1133, %v1357
        %v1359 = vpop.f32.mrb[0].mxu0
        %1360 = vmatprep.mubr.f32.mxu0 %v477
        %1361 = vmatmul.mubr.f32.gmra.mrb[0].mxu0 %v445
        %v1362 = vpop.f32.mrb[0].mxu0
        %v1363 = vadd.f32 %v1138, %v1362
        %v1364 = vpop.f32.mrb[0].mxu0
        %1365 = vmatprep.mubr.f32.mxu0 %v478
        %1366 = vmatmul.mubr.f32.gmra.mrb[0].mxu0 %v446
        %v1367 = vpop.f32.mrb[0].mxu0
        %v1368 = vadd.f32 %v1143, %v1367
        %v1369 = vpop.f32.mrb[0].mxu0
        %1370 = vmatprep.mubr.f32.mxu0 %v479
        %1371 = vmatmul.mubr.f32.gmra.mrb[0].mxu0 %v447
        %v1372 = vpop.f32.mrb[0].mxu0
        %v1373 = vadd.f32 %v1148, %v1372
        %v1374 = vpop.f32.mrb[0].mxu0
        %1375 = vmatprep.mubr.f32.mxu0 %v480
        %1376 = vmatmul.mubr.f32.gmra.mrb[0].mxu0 %v448
        %v1377 = vpop.f32.mrb[0].mxu0
        %v1378 = vadd.f32 %v1153, %v1377
        %v1379 = vpop.f32.mrb[0].mxu0
        %1380 = vmatprep.mubr.f32.mxu0 %v481
        %1381 = vmatmul.mubr.f32.gmra.mrb[0].mxu0 %v449
        %v1382 = vpop.f32.mrb[0].mxu0
        %v1383 = vadd.f32 %v1158, %v1382
        %v1384 = vpop.f32.mrb[0].mxu0
        %1385 = vmatprep.mubr.f32.mxu0 %v482
        %1386 = vmatmul.mubr.f32.gmra.mrb[0].mxu0 %v450
        %v1387 = vpop.f32.mrb[0].mxu0
        %v1388 = vadd.f32 %v1163, %v1387
        %v1389 = vpop.f32.mrb[0].mxu0
        %1390 = vmatprep.mubr.f32.mxu0 %v483
        %1391 = vmatmul.mubr.f32.gmra.mrb[0].mxu0 %v451
        %v1392 = vpop.f32.mrb[0].mxu0
        %v1393 = vadd.f32 %v1168, %v1392
        %v1394 = vpop.f32.mrb[0].mxu0
        %1395 = vmatprep.mubr.f32.mxu0 %v484
        %1396 = vmatmul.mubr.f32.gmra.mrb[0].mxu0 %v452
        %v1397 = vpop.f32.mrb[0].mxu0
        %v1398 = vadd.f32 %v1173, %v1397
        %v1399 = vpop.f32.mrb[0].mxu0
        %1400 = vdwg.mxu0
        %1401 = vmatprep.subr.mxu0 0.0
        %1402 = vmatpush1.msra.mxu0 %v678
        %1403 = vmatprep.subr.mxu0 0.0
        %1404 = vmatpush1.msra.mxu0 %v679
        %1405 = vmatprep.subr.mxu0 0.0
        %1406 = vmatpush1.msra.mxu0 %v680
        %1407 = vmatprep.subr.mxu0 0.0
        %1408 = vmatpush1.msra.mxu0 %v681
        %1409 = vmatprep.subr.mxu0 0.0
        %1410 = vmatpush1.msra.mxu0 %v682
        %1411 = vmatprep.subr.mxu0 0.0
        %1412 = vmatpush1.msra.mxu0 %v683
        %1413 = vmatprep.subr.mxu0 0.0
        %1414 = vmatpush1.msra.mxu0 %v684
        %1415 = vmatprep.subr.mxu0 0.0
        %1416 = vmatpush1.msra.mxu0 %v685
        %1417 = vmatprep.subr.mxu0 0.0
        %1418 = vmatpush1.msra.mxu0 %v686
        %1419 = vmatprep.subr.mxu0 0.0
        %1420 = vmatpush1.msra.mxu0 %v687
        %1421 = vmatprep.subr.mxu0 0.0
        %1422 = vmatpush1.msra.mxu0 %v688
        %1423 = vmatprep.subr.mxu0 0.0
        %1424 = vmatpush1.msra.mxu0 %v689
        %1425 = vmatprep.subr.mxu0 0.0
        %1426 = vmatpush1.msra.mxu0 %v690
        %1427 = vmatprep.subr.mxu0 0.0
        %1428 = vmatpush1.msra.mxu0 %v691
        %1429 = vmatprep.subr.mxu0 0.0
        %1430 = vmatpush1.msra.mxu0 %v692
        %1431 = vmatprep.subr.mxu0 0.0
        %1432 = vmatpush1.msra.mxu0 %v693
        %1433 = vmatprep.subr.mxu0 0.0
        %1434 = vmatpush1.msra.mxu0 %v694
        %1435 = vmatprep.subr.mxu0 0.0
        %1436 = vmatpush1.msra.mxu0 %v695
        %1437 = vmatprep.subr.mxu0 0.0
        %1438 = vmatpush1.msra.mxu0 %v696
        %1439 = vmatprep.subr.mxu0 0.0
        %1440 = vmatpush1.msra.mxu0 %v697
        %1441 = vmatprep.subr.mxu0 0.0
        %1442 = vmatpush1.msra.mxu0 %v698
        %1443 = vmatprep.subr.mxu0 0.0
        %1444 = vmatpush1.msra.mxu0 %v699
        %1445 = vmatprep.subr.mxu0 0.0
        %1446 = vmatpush1.msra.mxu0 %v700
        %1447 = vmatprep.subr.mxu0 0.0
        %1448 = vmatpush1.msra.mxu0 %v701
        %1449 = vmatprep.subr.mxu0 0.0
        %1450 = vmatpush1.msra.mxu0 %v702
        %1451 = vmatprep.subr.mxu0 0.0
        %1452 = vmatpush1.msra.mxu0 %v703
        %1453 = vmatprep.subr.mxu0 0.0
        %1454 = vmatpush1.msra.mxu0 %v704
        %1455 = vmatprep.subr.mxu0 0.0
        %1456 = vmatpush1.msra.mxu0 %v705
        %1457 = vmatprep.subr.mxu0 0.0
        %1458 = vmatpush1.msra.mxu0 %v706
        %1459 = vmatprep.subr.mxu0 0.0
        %1460 = vmatpush1.msra.mxu0 %v707
        %1461 = vmatprep.subr.mxu0 0.0
        %1462 = vmatpush1.msra.mxu0 %v708
        %1463 = vmatprep.subr.mxu0 0.0
        %1464 = vmatpush1.msra.mxu0 %v709
        %1465 = vmatprep.mubr.f32.mxu0 %v518
        %1466 = vmatmul.mubr.f32.gmra.mrb[0].mxu0 %v486
        %v1467 = vpop.f32.mrb[0].mxu0
        %v1468 = vadd.f32 %v1243, %v1467
        %v1469 = vpop.f32.mrb[0].mxu0
        %1470 = vmatprep.mubr.f32.mxu0 %v519
        %1471 = vmatmul.mubr.f32.gmra.mrb[0].mxu0 %v487
        %v1472 = vpop.f32.mrb[0].mxu0
        %v1473 = vadd.f32 %v1248, %v1472
        %v1474 = vpop.f32.mrb[0].mxu0
        %1475 = vmatprep.mubr.f32.mxu0 %v520
        %1476 = vmatmul.mubr.f32.gmra.mrb[0].mxu0 %v488
        %v1477 = vpop.f32.mrb[0].mxu0
        %v1478 = vadd.f32 %v1253, %v1477
        %v1479 = vpop.f32.mrb[0].mxu0
        %1480 = vmatprep.mubr.f32.mxu0 %v521
        %1481 = vmatmul.mubr.f32.gmra.mrb[0].mxu0 %v489
        %v1482 = vpop.f32.mrb[0].mxu0
        %v1483 = vadd.f32 %v1258, %v1482
        %v1484 = vpop.f32.mrb[0].mxu0
        %1485 = vmatprep.mubr.f32.mxu0 %v522
        %1486 = vmatmul.mubr.f32.gmra.mrb[0].mxu0 %v490
        %v1487 = vpop.f32.mrb[0].mxu0
        %v1488 = vadd.f32 %v1263, %v1487
        %v1489 = vpop.f32.mrb[0].mxu0
        %1490 = vmatprep.mubr.f32.mxu0 %v523
        %1491 = vmatmul.mubr.f32.gmra.mrb[0].mxu0 %v491
        %v1492 = vpop.f32.mrb[0].mxu0
        %v1493 = vadd.f32 %v1268, %v1492
        %v1494 = vpop.f32.mrb[0].mxu0
        %1495 = vmatprep.mubr.f32.mxu0 %v524
        %1496 = vmatmul.mubr.f32.gmra.mrb[0].mxu0 %v492
        %v1497 = vpop.f32.mrb[0].mxu0
        %v1498 = vadd.f32 %v1273, %v1497
        %v1499 = vpop.f32.mrb[0].mxu0
        %1500 = vmatprep.mubr.f32.mxu0 %v525
        %1501 = vmatmul.mubr.f32.gmra.mrb[0].mxu0 %v493
        %v1502 = vpop.f32.mrb[0].mxu0
        %v1503 = vadd.f32 %v1278, %v1502
        %v1504 = vpop.f32.mrb[0].mxu0
        %1505 = vmatprep.mubr.f32.mxu0 %v526
        %1506 = vmatmul.mubr.f32.gmra.mrb[0].mxu0 %v494
        %v1507 = vpop.f32.mrb[0].mxu0
        %v1508 = vadd.f32 %v1283, %v1507
        %v1509 = vpop.f32.mrb[0].mxu0
        %1510 = vmatprep.mubr.f32.mxu0 %v527
        %1511 = vmatmul.mubr.f32.gmra.mrb[0].mxu0 %v495
        %v1512 = vpop.f32.mrb[0].mxu0
        %v1513 = vadd.f32 %v1288, %v1512
        %v1514 = vpop.f32.mrb[0].mxu0
        %1515 = vmatprep.mubr.f32.mxu0 %v528
        %1516 = vmatmul.mubr.f32.gmra.mrb[0].mxu0 %v496
        %v1517 = vpop.f32.mrb[0].mxu0
        %v1518 = vadd.f32 %v1293, %v1517
        %v1519 = vpop.f32.mrb[0].mxu0
        %1520 = vmatprep.mubr.f32.mxu0 %v529
        %1521 = vmatmul.mubr.f32.gmra.mrb[0].mxu0 %v497
        %v1522 = vpop.f32.mrb[0].mxu0
        %v1523 = vadd.f32 %v1298, %v1522
        %v1524 = vpop.f32.mrb[0].mxu0
        %1525 = vmatprep.mubr.f32.mxu0 %v530
        %1526 = vmatmul.mubr.f32.gmra.mrb[0].mxu0 %v498
        %v1527 = vpop.f32.mrb[0].mxu0
        %v1528 = vadd.f32 %v1303, %v1527
        %v1529 = vpop.f32.mrb[0].mxu0
        %1530 = vmatprep.mubr.f32.mxu0 %v531
        %1531 = vmatmul.mubr.f32.gmra.mrb[0].mxu0 %v499
        %v1532 = vpop.f32.mrb[0].mxu0
        %v1533 = vadd.f32 %v1308, %v1532
        %v1534 = vpop.f32.mrb[0].mxu0
        %1535 = vmatprep.mubr.f32.mxu0 %v532
        %1536 = vmatmul.mubr.f32.gmra.mrb[0].mxu0 %v500
        %v1537 = vpop.f32.mrb[0].mxu0
        %v1538 = vadd.f32 %v1313, %v1537
        %v1539 = vpop.f32.mrb[0].mxu0
        %1540 = vmatprep.mubr.f32.mxu0 %v533
        %1541 = vmatmul.mubr.f32.gmra.mrb[0].mxu0 %v501
        %v1542 = vpop.f32.mrb[0].mxu0
        %v1543 = vadd.f32 %v1318, %v1542
        %v1544 = vpop.f32.mrb[0].mxu0
        %1545 = vmatprep.mubr.f32.mxu0 %v534
        %1546 = vmatmul.mubr.f32.gmra.mrb[0].mxu0 %v502
        %v1547 = vpop.f32.mrb[0].mxu0
        %v1548 = vadd.f32 %v1323, %v1547
        %v1549 = vpop.f32.mrb[0].mxu0
        %1550 = vmatprep.mubr.f32.mxu0 %v535
        %1551 = vmatmul.mubr.f32.gmra.mrb[0].mxu0 %v503
        %v1552 = vpop.f32.mrb[0].mxu0
        %v1553 = vadd.f32 %v1328, %v1552
        %v1554 = vpop.f32.mrb[0].mxu0
        %1555 = vmatprep.mubr.f32.mxu0 %v536
        %1556 = vmatmul.mubr.f32.gmra.mrb[0].mxu0 %v504
        %v1557 = vpop.f32.mrb[0].mxu0
        %v1558 = vadd.f32 %v1333, %v1557
        %v1559 = vpop.f32.mrb[0].mxu0
        %1560 = vmatprep.mubr.f32.mxu0 %v537
        %1561 = vmatmul.mubr.f32.gmra.mrb[0].mxu0 %v505
        %v1562 = vpop.f32.mrb[0].mxu0
        %v1563 = vadd.f32 %v1338, %v1562
        %v1564 = vpop.f32.mrb[0].mxu0
        %1565 = vmatprep.mubr.f32.mxu0 %v538
        %1566 = vmatmul.mubr.f32.gmra.mrb[0].mxu0 %v506
        %v1567 = vpop.f32.mrb[0].mxu0
        %v1568 = vadd.f32 %v1343, %v1567
        %v1569 = vpop.f32.mrb[0].mxu0
        %1570 = vmatprep.mubr.f32.mxu0 %v539
        %1571 = vmatmul.mubr.f32.gmra.mrb[0].mxu0 %v507
        %v1572 = vpop.f32.mrb[0].mxu0
        %v1573 = vadd.f32 %v1348, %v1572
        %v1574 = vpop.f32.mrb[0].mxu0
        %1575 = vmatprep.mubr.f32.mxu0 %v540
        %1576 = vmatmul.mubr.f32.gmra.mrb[0].mxu0 %v508
        %v1577 = vpop.f32.mrb[0].mxu0
        %v1578 = vadd.f32 %v1353, %v1577
        %v1579 = vpop.f32.mrb[0].mxu0
        %1580 = vmatprep.mubr.f32.mxu0 %v541
        %1581 = vmatmul.mubr.f32.gmra.mrb[0].mxu0 %v509
        %v1582 = vpop.f32.mrb[0].mxu0
        %v1583 = vadd.f32 %v1358, %v1582
        %v1584 = vpop.f32.mrb[0].mxu0
        %1585 = vmatprep.mubr.f32.mxu0 %v542
        %1586 = vmatmul.mubr.f32.gmra.mrb[0].mxu0 %v510
        %v1587 = vpop.f32.mrb[0].mxu0
        %v1588 = vadd.f32 %v1363, %v1587
        %v1589 = vpop.f32.mrb[0].mxu0
        %1590 = vmatprep.mubr.f32.mxu0 %v543
        %1591 = vmatmul.mubr.f32.gmra.mrb[0].mxu0 %v511
        %v1592 = vpop.f32.mrb[0].mxu0
        %v1593 = vadd.f32 %v1368, %v1592
        %v1594 = vpop.f32.mrb[0].mxu0
        %1595 = vmatprep.mubr.f32.mxu0 %v544
        %1596 = vmatmul.mubr.f32.gmra.mrb[0].mxu0 %v512
        %v1597 = vpop.f32.mrb[0].mxu0
        %v1598 = vadd.f32 %v1373, %v1597
        %v1599 = vpop.f32.mrb[0].mxu0
        %1600 = vmatprep.mubr.f32.mxu0 %v545
        %1601 = vmatmul.mubr.f32.gmra.mrb[0].mxu0 %v513
        %v1602 = vpop.f32.mrb[0].mxu0
        %v1603 = vadd.f32 %v1378, %v1602
        %v1604 = vpop.f32.mrb[0].mxu0
        %1605 = vmatprep.mubr.f32.mxu0 %v546
        %1606 = vmatmul.mubr.f32.gmra.mrb[0].mxu0 %v514
        %v1607 = vpop.f32.mrb[0].mxu0
        %v1608 = vadd.f32 %v1383, %v1607
        %v1609 = vpop.f32.mrb[0].mxu0
        %1610 = vmatprep.mubr.f32.mxu0 %v547
        %1611 = vmatmul.mubr.f32.gmra.mrb[0].mxu0 %v515
        %v1612 = vpop.f32.mrb[0].mxu0
        %v1613 = vadd.f32 %v1388, %v1612
        %v1614 = vpop.f32.mrb[0].mxu0
        %1615 = vmatprep.mubr.f32.mxu0 %v548
        %1616 = vmatmul.mubr.f32.gmra.mrb[0].mxu0 %v516
        %v1617 = vpop.f32.mrb[0].mxu0
        %v1618 = vadd.f32 %v1393, %v1617
        %v1619 = vpop.f32.mrb[0].mxu0
        %1620 = vmatprep.mubr.f32.mxu0 %v549
        %1621 = vmatmul.mubr.f32.gmra.mrb[0].mxu0 %v517
        %v1622 = vpop.f32.mrb[0].mxu0
        %v1623 = vadd.f32 %v1398, %v1622
        %v1624 = vpop.f32.mrb[0].mxu0
        %1625 = vdwg.mxu0
        %1626 = vmatprep.subr.mxu0 0.0
        %1627 = vmatpush1.msra.mxu0 %v710
        %1628 = vmatprep.subr.mxu0 0.0
        %1629 = vmatpush1.msra.mxu0 %v711
        %1630 = vmatprep.subr.mxu0 0.0
        %1631 = vmatpush1.msra.mxu0 %v712
        %1632 = vmatprep.subr.mxu0 0.0
        %1633 = vmatpush1.msra.mxu0 %v713
        %1634 = vmatprep.subr.mxu0 0.0
        %1635 = vmatpush1.msra.mxu0 %v714
        %1636 = vmatprep.subr.mxu0 0.0
        %1637 = vmatpush1.msra.mxu0 %v715
        %1638 = vmatprep.subr.mxu0 0.0
        %1639 = vmatpush1.msra.mxu0 %v716
        %1640 = vmatprep.subr.mxu0 0.0
        %1641 = vmatpush1.msra.mxu0 %v717
        %1642 = vmatprep.subr.mxu0 0.0
        %1643 = vmatpush1.msra.mxu0 %v718
        %1644 = vmatprep.subr.mxu0 0.0
        %1645 = vmatpush1.msra.mxu0 %v719
        %1646 = vmatprep.subr.mxu0 0.0
        %1647 = vmatpush1.msra.mxu0 %v720
        %1648 = vmatprep.subr.mxu0 0.0
        %1649 = vmatpush1.msra.mxu0 %v721
        %1650 = vmatprep.subr.mxu0 0.0
        %1651 = vmatpush1.msra.mxu0 %v722
        %1652 = vmatprep.subr.mxu0 0.0
        %1653 = vmatpush1.msra.mxu0 %v723
        %1654 = vmatprep.subr.mxu0 0.0
        %1655 = vmatpush1.msra.mxu0 %v724
        %1656 = vmatprep.subr.mxu0 0.0
        %1657 = vmatpush1.msra.mxu0 %v725
        %1658 = vmatprep.subr.mxu0 0.0
        %1659 = vmatpush1.msra.mxu0 0.0
        %1660 = vmatprep.subr.mxu0 0.0
        %1661 = vmatpush1.msra.mxu0 0.0
        %1662 = vmatprep.subr.mxu0 0.0
        %1663 = vmatpush1.msra.mxu0 0.0
        %1664 = vmatprep.subr.mxu0 0.0
        %1665 = vmatpush1.msra.mxu0 0.0
        %1666 = vmatprep.subr.mxu0 0.0
        %1667 = vmatpush1.msra.mxu0 0.0
        %1668 = vmatprep.subr.mxu0 0.0
        %1669 = vmatpush1.msra.mxu0 0.0
        %1670 = vmatprep.subr.mxu0 0.0
        %1671 = vmatpush1.msra.mxu0 0.0
        %1672 = vmatprep.subr.mxu0 0.0
        %1673 = vmatpush1.msra.mxu0 0.0
        %1674 = vmatprep.subr.mxu0 0.0
        %1675 = vmatpush1.msra.mxu0 0.0
        %1676 = vmatprep.subr.mxu0 0.0
        %1677 = vmatpush1.msra.mxu0 0.0
        %1678 = vmatprep.subr.mxu0 0.0
        %1679 = vmatpush1.msra.mxu0 0.0
        %1680 = vmatprep.subr.mxu0 0.0
        %1681 = vmatpush1.msra.mxu0 0.0
        %1682 = vmatprep.subr.mxu0 0.0
        %1683 = vmatpush1.msra.mxu0 0.0
        %1684 = vmatprep.subr.mxu0 0.0
        %1685 = vmatpush1.msra.mxu0 0.0
        %1686 = vmatprep.subr.mxu0 0.0
        %1687 = vmatpush1.msra.mxu0 0.0
        %1688 = vmatprep.subr.mxu0 0.0
        %1689 = vmatpush1.msra.mxu0 0.0
        %1690 = vmatprep.mubr.f32.mxu0 0.0
        %1691 = vmatmul.mubr.f32.gmra.mrb[0].mxu0 %v550
        %v1692 = vpop.f32.mrb[0].mxu0
        %v1693 = vadd.f32 %v1468, %v1692
        %v1694 = vpop.f32.mrb[0].mxu0
        %1695 = vmatprep.mubr.f32.mxu0 0.0
        %1696 = vmatmul.mubr.f32.gmra.mrb[0].mxu0 %v551
        %v1697 = vpop.f32.mrb[0].mxu0
        %v1698 = vadd.f32 %v1473, %v1697
        %v1699 = vpop.f32.mrb[0].mxu0
        %1700 = vmatprep.mubr.f32.mxu0 0.0
        %1701 = vmatmul.mubr.f32.gmra.mrb[0].mxu0 %v552
        %v1702 = vpop.f32.mrb[0].mxu0
        %v1703 = vadd.f32 %v1478, %v1702
        %v1704 = vpop.f32.mrb[0].mxu0
        %1705 = vmatprep.mubr.f32.mxu0 0.0
        %1706 = vmatmul.mubr.f32.gmra.mrb[0].mxu0 %v553
        %v1707 = vpop.f32.mrb[0].mxu0
        %v1708 = vadd.f32 %v1483, %v1707
        %v1709 = vpop.f32.mrb[0].mxu0
        %1710 = vmatprep.mubr.f32.mxu0 0.0
        %1711 = vmatmul.mubr.f32.gmra.mrb[0].mxu0 %v554
        %v1712 = vpop.f32.mrb[0].mxu0
        %v1713 = vadd.f32 %v1488, %v1712
        %v1714 = vpop.f32.mrb[0].mxu0
        %1715 = vmatprep.mubr.f32.mxu0 0.0
        %1716 = vmatmul.mubr.f32.gmra.mrb[0].mxu0 %v555
        %v1717 = vpop.f32.mrb[0].mxu0
        %v1718 = vadd.f32 %v1493, %v1717
        %v1719 = vpop.f32.mrb[0].mxu0
        %1720 = vmatprep.mubr.f32.mxu0 0.0
        %1721 = vmatmul.mubr.f32.gmra.mrb[0].mxu0 %v556
        %v1722 = vpop.f32.mrb[0].mxu0
        %v1723 = vadd.f32 %v1498, %v1722
        %v1724 = vpop.f32.mrb[0].mxu0
        %1725 = vmatprep.mubr.f32.mxu0 0.0
        %1726 = vmatmul.mubr.f32.gmra.mrb[0].mxu0 %v557
        %v1727 = vpop.f32.mrb[0].mxu0
        %v1728 = vadd.f32 %v1503, %v1727
        %v1729 = vpop.f32.mrb[0].mxu0
        %1730 = vmatprep.mubr.f32.mxu0 0.0
        %1731 = vmatmul.mubr.f32.gmra.mrb[0].mxu0 %v558
        %v1732 = vpop.f32.mrb[0].mxu0
        %v1733 = vadd.f32 %v1508, %v1732
        %v1734 = vpop.f32.mrb[0].mxu0
        %1735 = vmatprep.mubr.f32.mxu0 0.0
        %1736 = vmatmul.mubr.f32.gmra.mrb[0].mxu0 %v559
        %v1737 = vpop.f32.mrb[0].mxu0
        %v1738 = vadd.f32 %v1513, %v1737
        %v1739 = vpop.f32.mrb[0].mxu0
        %1740 = vmatprep.mubr.f32.mxu0 0.0
        %1741 = vmatmul.mubr.f32.gmra.mrb[0].mxu0 %v560
        %v1742 = vpop.f32.mrb[0].mxu0
        %v1743 = vadd.f32 %v1518, %v1742
        %v1744 = vpop.f32.mrb[0].mxu0
        %1745 = vmatprep.mubr.f32.mxu0 0.0
        %1746 = vmatmul.mubr.f32.gmra.mrb[0].mxu0 %v561
        %v1747 = vpop.f32.mrb[0].mxu0
        %v1748 = vadd.f32 %v1523, %v1747
        %v1749 = vpop.f32.mrb[0].mxu0
        %1750 = vmatprep.mubr.f32.mxu0 0.0
        %1751 = vmatmul.mubr.f32.gmra.mrb[0].mxu0 %v562
        %v1752 = vpop.f32.mrb[0].mxu0
        %v1753 = vadd.f32 %v1528, %v1752
        %v1754 = vpop.f32.mrb[0].mxu0
        %1755 = vmatprep.mubr.f32.mxu0 0.0
        %1756 = vmatmul.mubr.f32.gmra.mrb[0].mxu0 %v563
        %v1757 = vpop.f32.mrb[0].mxu0
        %v1758 = vadd.f32 %v1533, %v1757
        %v1759 = vpop.f32.mrb[0].mxu0
        %1760 = vmatprep.mubr.f32.mxu0 0.0
        %1761 = vmatmul.mubr.f32.gmra.mrb[0].mxu0 %v564
        %v1762 = vpop.f32.mrb[0].mxu0
        %v1763 = vadd.f32 %v1538, %v1762
        %v1764 = vpop.f32.mrb[0].mxu0
        %1765 = vmatprep.mubr.f32.mxu0 0.0
        %1766 = vmatmul.mubr.f32.gmra.mrb[0].mxu0 %v565
        %v1767 = vpop.f32.mrb[0].mxu0
        %v1768 = vadd.f32 %v1543, %v1767
        %v1769 = vpop.f32.mrb[0].mxu0
        %1770 = vmatprep.mubr.f32.mxu0 0.0
        %1771 = vmatmul.mubr.f32.gmra.mrb[0].mxu0 %v566
        %v1772 = vpop.f32.mrb[0].mxu0
        %v1773 = vadd.f32 %v1548, %v1772
        %v1774 = vpop.f32.mrb[0].mxu0
        %1775 = vmatprep.mubr.f32.mxu0 0.0
        %1776 = vmatmul.mubr.f32.gmra.mrb[0].mxu0 %v567
        %v1777 = vpop.f32.mrb[0].mxu0
        %v1778 = vadd.f32 %v1553, %v1777
        %v1779 = vpop.f32.mrb[0].mxu0
        %1780 = vmatprep.mubr.f32.mxu0 0.0
        %1781 = vmatmul.mubr.f32.gmra.mrb[0].mxu0 %v568
        %v1782 = vpop.f32.mrb[0].mxu0
        %v1783 = vadd.f32 %v1558, %v1782
        %v1784 = vpop.f32.mrb[0].mxu0
        %1785 = vmatprep.mubr.f32.mxu0 0.0
        %1786 = vmatmul.mubr.f32.gmra.mrb[0].mxu0 %v569
        %v1787 = vpop.f32.mrb[0].mxu0
        %v1788 = vadd.f32 %v1563, %v1787
        %v1789 = vpop.f32.mrb[0].mxu0
        %1790 = vmatprep.mubr.f32.mxu0 0.0
        %1791 = vmatmul.mubr.f32.gmra.mrb[0].mxu0 %v570
        %v1792 = vpop.f32.mrb[0].mxu0
        %v1793 = vadd.f32 %v1568, %v1792
        %v1794 = vpop.f32.mrb[0].mxu0
        %1795 = vmatprep.mubr.f32.mxu0 0.0
        %1796 = vmatmul.mubr.f32.gmra.mrb[0].mxu0 %v571
        %v1797 = vpop.f32.mrb[0].mxu0
        %v1798 = vadd.f32 %v1573, %v1797
        %v1799 = vpop.f32.mrb[0].mxu0
        %1800 = vmatprep.mubr.f32.mxu0 0.0
        %1801 = vmatmul.mubr.f32.gmra.mrb[0].mxu0 %v572
        %v1802 = vpop.f32.mrb[0].mxu0
        %v1803 = vadd.f32 %v1578, %v1802
        %v1804 = vpop.f32.mrb[0].mxu0
        %1805 = vmatprep.mubr.f32.mxu0 0.0
        %1806 = vmatmul.mubr.f32.gmra.mrb[0].mxu0 %v573
        %v1807 = vpop.f32.mrb[0].mxu0
        %v1808 = vadd.f32 %v1583, %v1807
        %v1809 = vpop.f32.mrb[0].mxu0
        %1810 = vmatprep.mubr.f32.mxu0 0.0
        %1811 = vmatmul.mubr.f32.gmra.mrb[0].mxu0 %v574
        %v1812 = vpop.f32.mrb[0].mxu0
        %v1813 = vadd.f32 %v1588, %v1812
        %v1814 = vpop.f32.mrb[0].mxu0
        %1815 = vmatprep.mubr.f32.mxu0 0.0
        %1816 = vmatmul.mubr.f32.gmra.mrb[0].mxu0 %v575
        %v1817 = vpop.f32.mrb[0].mxu0
        %v1818 = vadd.f32 %v1593, %v1817
        %v1819 = vpop.f32.mrb[0].mxu0
        %1820 = vmatprep.mubr.f32.mxu0 0.0
        %1821 = vmatmul.mubr.f32.gmra.mrb[0].mxu0 %v576
        %v1822 = vpop.f32.mrb[0].mxu0
        %v1823 = vadd.f32 %v1598, %v1822
        %v1824 = vpop.f32.mrb[0].mxu0
        %1825 = vmatprep.mubr.f32.mxu0 0.0
        %1826 = vmatmul.mubr.f32.gmra.mrb[0].mxu0 %v577
        %v1827 = vpop.f32.mrb[0].mxu0
        %v1828 = vadd.f32 %v1603, %v1827
        %v1829 = vpop.f32.mrb[0].mxu0
        %1830 = vmatprep.mubr.f32.mxu0 0.0
        %1831 = vmatmul.mubr.f32.gmra.mrb[0].mxu0 %v578
        %v1832 = vpop.f32.mrb[0].mxu0
        %v1833 = vadd.f32 %v1608, %v1832
        %v1834 = vpop.f32.mrb[0].mxu0
        %1835 = vmatprep.mubr.f32.mxu0 0.0
        %1836 = vmatmul.mubr.f32.gmra.mrb[0].mxu0 %v579
        %v1837 = vpop.f32.mrb[0].mxu0
        %v1838 = vadd.f32 %v1613, %v1837
        %v1839 = vpop.f32.mrb[0].mxu0
        %1840 = vmatprep.mubr.f32.mxu0 0.0
        %1841 = vmatmul.mubr.f32.gmra.mrb[0].mxu0 %v580
        %v1842 = vpop.f32.mrb[0].mxu0
        %v1843 = vadd.f32 %v1618, %v1842
        %v1844 = vpop.f32.mrb[0].mxu0
        %1845 = vmatprep.mubr.f32.mxu0 0.0
        %1846 = vmatmul.mubr.f32.gmra.mrb[0].mxu0 %v581
        %v1847 = vpop.f32.mrb[0].mxu0
        %v1848 = vadd.f32 %v1623, %v1847
        %v1849 = vpop.f32.mrb[0].mxu0
        %1850 = vdwg.mxu0
        %v1851 = vld [vmem:[%s3] sm:$0x1]
        %v1853 = vlaneseq
        %v1854 = vshrl.u32 %v1853, 7
        %v1855 = vsub.s32 0, %v1854
        %v1856 = vrot.slane %v1851, %v1855
        %v1858 = vmul.f32 %v1693, %v1856
        %v1859 = vmul.f32 %v1698, %v1856
        %v1860 = vmul.f32 %v1703, %v1856
        %v1861 = vmul.f32 %v1708, %v1856
        %v1862 = vmul.f32 %v1713, %v1856
        %v1863 = vmul.f32 %v1718, %v1856
        %v1864 = vmul.f32 %v1723, %v1856
        %v1865 = vmul.f32 %v1728, %v1856
        %v1866 = vmul.f32 %v1733, %v1856
        %v1867 = vmul.f32 %v1738, %v1856
        %v1868 = vmul.f32 %v1743, %v1856
        %v1869 = vmul.f32 %v1748, %v1856
        %v1870 = vmul.f32 %v1753, %v1856
        %v1871 = vmul.f32 %v1758, %v1856
        %v1872 = vmul.f32 %v1763, %v1856
        %v1873 = vmul.f32 %v1768, %v1856
        %v1874 = vmul.f32 %v1773, %v1856
        %v1875 = vmul.f32 %v1778, %v1856
        %v1876 = vmul.f32 %v1783, %v1856
        %v1877 = vmul.f32 %v1788, %v1856
        %v1878 = vmul.f32 %v1793, %v1856
        %v1879 = vmul.f32 %v1798, %v1856
        %v1880 = vmul.f32 %v1803, %v1856
        %v1881 = vmul.f32 %v1808, %v1856
        %v1882 = vmul.f32 %v1813, %v1856
        %v1883 = vmul.f32 %v1818, %v1856
        %v1884 = vmul.f32 %v1823, %v1856
        %v1885 = vmul.f32 %v1828, %v1856
        %v1886 = vmul.f32 %v1833, %v1856
        %v1887 = vmul.f32 %v1838, %v1856
        %v1888 = vmul.f32 %v1843, %v1856
        %v1889 = vmul.f32 %v1848, %v1856
        %v1890 = vld [vmem:[%s4] sm:$0x1]
        %v1892 = vlaneseq
        %v1893 = vshrl.u32 %v1892, 7
        %v1894 = vsub.s32 0, %v1893
        %v1895 = vrot.slane %v1890, %v1894
        %v1897 = vadd.f32 %v1858, %v1895
        %v1898 = vadd.f32 %v1859, %v1895
        %v1899 = vadd.f32 %v1860, %v1895
        %v1900 = vadd.f32 %v1861, %v1895
        %v1901 = vadd.f32 %v1862, %v1895
        %v1902 = vadd.f32 %v1863, %v1895
        %v1903 = vadd.f32 %v1864, %v1895
        %v1904 = vadd.f32 %v1865, %v1895
        %v1905 = vadd.f32 %v1866, %v1895
        %v1906 = vadd.f32 %v1867, %v1895
        %v1907 = vadd.f32 %v1868, %v1895
        %v1908 = vadd.f32 %v1869, %v1895
        %v1909 = vadd.f32 %v1870, %v1895
        %v1910 = vadd.f32 %v1871, %v1895
        %v1911 = vadd.f32 %v1872, %v1895
        %v1912 = vadd.f32 %v1873, %v1895
        %v1913 = vadd.f32 %v1874, %v1895
        %v1914 = vadd.f32 %v1875, %v1895
        %v1915 = vadd.f32 %v1876, %v1895
        %v1916 = vadd.f32 %v1877, %v1895
        %v1917 = vadd.f32 %v1878, %v1895
        %v1918 = vadd.f32 %v1879, %v1895
        %v1919 = vadd.f32 %v1880, %v1895
        %v1920 = vadd.f32 %v1881, %v1895
        %v1921 = vadd.f32 %v1882, %v1895
        %v1922 = vadd.f32 %v1883, %v1895
        %v1923 = vadd.f32 %v1884, %v1895
        %v1924 = vadd.f32 %v1885, %v1895
        %v1925 = vadd.f32 %v1886, %v1895
        %v1926 = vadd.f32 %v1887, %v1895
        %v1927 = vadd.f32 %v1888, %v1895
        %v1928 = vadd.f32 %v1889, %v1895
        %v1929 = vmax.f32 %v1897, 0.0
        %v1930 = vmax.f32 %v1898, 0.0
        %v1931 = vmax.f32 %v1899, 0.0
        %v1932 = vmax.f32 %v1900, 0.0
        %v1933 = vmax.f32 %v1901, 0.0
        %v1934 = vmax.f32 %v1902, 0.0
        %v1935 = vmax.f32 %v1903, 0.0
        %v1936 = vmax.f32 %v1904, 0.0
        %v1937 = vmax.f32 %v1905, 0.0
        %v1938 = vmax.f32 %v1906, 0.0
        %v1939 = vmax.f32 %v1907, 0.0
        %v1940 = vmax.f32 %v1908, 0.0
        %v1941 = vmax.f32 %v1909, 0.0
        %v1942 = vmax.f32 %v1910, 0.0
        %v1943 = vmax.f32 %v1911, 0.0
        %v1944 = vmax.f32 %v1912, 0.0
        %v1945 = vmax.f32 %v1913, 0.0
        %v1946 = vmax.f32 %v1914, 0.0
        %v1947 = vmax.f32 %v1915, 0.0
        %v1948 = vmax.f32 %v1916, 0.0
        %v1949 = vmax.f32 %v1917, 0.0
        %v1950 = vmax.f32 %v1918, 0.0
        %v1951 = vmax.f32 %v1919, 0.0
        %v1952 = vmax.f32 %v1920, 0.0
        %v1953 = vmax.f32 %v1921, 0.0
        %v1954 = vmax.f32 %v1922, 0.0
        %v1955 = vmax.f32 %v1923, 0.0
        %v1956 = vmax.f32 %v1924, 0.0
        %v1957 = vmax.f32 %v1925, 0.0
        %v1958 = vmax.f32 %v1926, 0.0
        %v1959 = vmax.f32 %v1927, 0.0
        %v1960 = vmax.f32 %v1928, 0.0
        %1961 = vst [vmem:[#allocation2] sm:$0xff] 0.0
        %1962 = vst [vmem:[#allocation2 + $0x8] sm:$0xff] 0.0
        %1963 = vst [vmem:[#allocation2 + $0x10] sm:$0x3] 0.0
        %1964 = vst [vmem:[#allocation2 + $0x18] sm:$0xff] 0.0
        %1965 = vst [vmem:[#allocation2 + $0x20] sm:$0xff] 0.0
        %1966 = vst [vmem:[#allocation2 + $0x28] sm:$0x3] 0.0
        %1967 = vst [vmem:[#allocation2 + $0x30] sm:$0xff] 0.0
        %1968 = vst [vmem:[#allocation2 + $0x38] sm:$0xff] 0.0
        %1969 = vst [vmem:[#allocation2 + $0x40] sm:$0x3] 0.0
        %1970 = vst [vmem:[#allocation2 + $0x48] sm:$0xff] 0.0
        %1971 = vst [vmem:[#allocation2 + $0x50] sm:$0xff] 0.0
        %1972 = vst [vmem:[#allocation2 + $0x58] sm:$0x3] 0.0
        %1973 = vst [vmem:[#allocation2 + $0x60] sm:$0xff] 0.0
        %1974 = vst [vmem:[#allocation2 + $0x68] sm:$0xff] 0.0
        %1975 = vst [vmem:[#allocation2 + $0x70] sm:$0x3] 0.0
        %1976 = vst [vmem:[#allocation2 + $0x78] sm:$0xff] 0.0
        %1977 = vst [vmem:[#allocation2 + $0x80] sm:$0xff] 0.0
        %1978 = vst [vmem:[#allocation2 + $0x88] sm:$0x3] 0.0
        %1979 = vst [vmem:[#allocation2 + $0x90] sm:$0xff] 0.0
        %1980 = vst [vmem:[#allocation2 + $0x98] sm:$0xff] 0.0
        %1981 = vst [vmem:[#allocation2 + $0xa0] sm:$0x3] 0.0
        %1982 = vst [vmem:[#allocation2 + $0xa8] sm:$0xff] 0.0
        %1983 = vst [vmem:[#allocation2 + $0xb0] sm:$0xff] 0.0
        %1984 = vst [vmem:[#allocation2 + $0xb8] sm:$0x3] 0.0
        %1985 = vst [vmem:[#allocation2 + $0xc0] sm:$0xff] 0.0
        %1986 = vst [vmem:[#allocation2 + $0xc8] sm:$0xff] 0.0
        %1987 = vst [vmem:[#allocation2 + $0xd0] sm:$0x3] 0.0
        %1988 = vst [vmem:[#allocation2 + $0xd8] sm:$0xff] 0.0
        %1989 = vst [vmem:[#allocation2 + $0xe0] sm:$0xff] 0.0
        %1990 = vst [vmem:[#allocation2 + $0xe8] sm:$0x3] 0.0
        %1991 = vst [vmem:[#allocation2 + $0xf0] sm:$0xff] 0.0
        %1992 = vst [vmem:[#allocation2 + $0xf8] sm:$0xff] 0.0
        %1993 = vst [vmem:[#allocation2 + $0x100] sm:$0x3] 0.0
        %1994 = vst [vmem:[#allocation2 + $0x108] sm:$0xff] 0.0
        %1995 = vst [vmem:[#allocation2 + $0x110] sm:$0xff] 0.0
        %1996 = vst [vmem:[#allocation2 + $0x118] sm:$0x3] 0.0
        %1997 = vst [vmem:[#allocation2 + $0x120] sm:$0xff] 0.0
        %1998 = vst [vmem:[#allocation2 + $0x128] sm:$0xff] 0.0
        %1999 = vst [vmem:[#allocation2 + $0x130] sm:$0x3] 0.0
        %2000 = vst [vmem:[#allocation2 + $0x138] sm:$0xff] 0.0
        %2001 = vst [vmem:[#allocation2 + $0x140] sm:$0xff] 0.0
        %2002 = vst [vmem:[#allocation2 + $0x148] sm:$0x3] 0.0
        %2003 = vst [vmem:[#allocation2 + $0x150] sm:$0xff] 0.0
        %2004 = vst [vmem:[#allocation2 + $0x158] sm:$0xff] 0.0
        %2005 = vst [vmem:[#allocation2 + $0x160] sm:$0x3] 0.0
        %2006 = vst [vmem:[#allocation2 + $0x168] sm:$0xff] 0.0
        %2007 = vst [vmem:[#allocation2 + $0x170] sm:$0xff] 0.0
        %2008 = vst [vmem:[#allocation2 + $0x178] sm:$0x3] 0.0
        %2009 = vst [vmem:[#allocation2 + $0x180] sm:$0xff] 0.0
        %2010 = vst [vmem:[#allocation2 + $0x188] sm:$0xff] 0.0
        %2011 = vst [vmem:[#allocation2 + $0x190] sm:$0x3] 0.0
        %2012 = vst [vmem:[#allocation2 + $0x198] sm:$0xff] 0.0
        %2013 = vst [vmem:[#allocation2 + $0x1a0] sm:$0xff] 0.0
        %2014 = vst [vmem:[#allocation2 + $0x1a8] sm:$0x3] 0.0
        %s2015 = scalar_lea.vmem [#allocation2], 24
        %2016 = vst [vmem:[%s2015 + $0x1] sm:$0xff] %v1929
        %2017 = vst [vmem:[%s2015 + $0x9] sm:$0xff] %v1930
        %2018 = vst [vmem:[%s2015 + $0x19] sm:$0xff] %v1931
        %2019 = vst [vmem:[%s2015 + $0x21] sm:$0xff] %v1932
        %2020 = vst [vmem:[%s2015 + $0x31] sm:$0xff] %v1933
        %2021 = vst [vmem:[%s2015 + $0x39] sm:$0xff] %v1934
        %2022 = vst [vmem:[%s2015 + $0x49] sm:$0xff] %v1935
        %2023 = vst [vmem:[%s2015 + $0x51] sm:$0xff] %v1936
        %2024 = vst [vmem:[%s2015 + $0x61] sm:$0xff] %v1937
        %2025 = vst [vmem:[%s2015 + $0x69] sm:$0xff] %v1938
        %2026 = vst [vmem:[%s2015 + $0x79] sm:$0xff] %v1939
        %2027 = vst [vmem:[%s2015 + $0x81] sm:$0xff] %v1940
        %2028 = vst [vmem:[%s2015 + $0x91] sm:$0xff] %v1941
        %2029 = vst [vmem:[%s2015 + $0x99] sm:$0xff] %v1942
        %2030 = vst [vmem:[%s2015 + $0xa9] sm:$0xff] %v1943
        %2031 = vst [vmem:[%s2015 + $0xb1] sm:$0xff] %v1944
        %2032 = vst [vmem:[%s2015 + $0xc1] sm:$0xff] %v1945
        %2033 = vst [vmem:[%s2015 + $0xc9] sm:$0xff] %v1946
        %2034 = vst [vmem:[%s2015 + $0xd9] sm:$0xff] %v1947
        %2035 = vst [vmem:[%s2015 + $0xe1] sm:$0xff] %v1948
        %2036 = vst [vmem:[%s2015 + $0xf1] sm:$0xff] %v1949
        %2037 = vst [vmem:[%s2015 + $0xf9] sm:$0xff] %v1950
        %2038 = vst [vmem:[%s2015 + $0x109] sm:$0xff] %v1951
        %2039 = vst [vmem:[%s2015 + $0x111] sm:$0xff] %v1952
        %2040 = vst [vmem:[%s2015 + $0x121] sm:$0xff] %v1953
        %2041 = vst [vmem:[%s2015 + $0x129] sm:$0xff] %v1954
        %2042 = vst [vmem:[%s2015 + $0x139] sm:$0xff] %v1955
        %2043 = vst [vmem:[%s2015 + $0x141] sm:$0xff] %v1956
        %2044 = vst [vmem:[%s2015 + $0x151] sm:$0xff] %v1957
        %2045 = vst [vmem:[%s2015 + $0x159] sm:$0xff] %v1958
        %2046 = vst [vmem:[%s2015 + $0x169] sm:$0xff] %v1959
        %2047 = vst [vmem:[%s2015 + $0x171] sm:$0xff] %v1960
        %v2048 = vld [vmem:[#allocation2] sm:$0xff]
        %v2049 = vld [vmem:[#allocation2 + $0x8] sm:$0xff]
        %v2050 = vld [vmem:[#allocation2 + $0x18] sm:$0xff]
        %v2051 = vld [vmem:[#allocation2 + $0x20] sm:$0xff]
        %v2052 = vld [vmem:[#allocation2 + $0x30] sm:$0xff]
        %v2053 = vld [vmem:[#allocation2 + $0x38] sm:$0xff]
        %v2054 = vld [vmem:[#allocation2 + $0x48] sm:$0xff]
        %v2055 = vld [vmem:[#allocation2 + $0x50] sm:$0xff]
        %v2056 = vld [vmem:[#allocation2 + $0x60] sm:$0xff]
        %v2057 = vld [vmem:[#allocation2 + $0x68] sm:$0xff]
        %v2058 = vld [vmem:[#allocation2 + $0x78] sm:$0xff]
        %v2059 = vld [vmem:[#allocation2 + $0x80] sm:$0xff]
        %v2060 = vld [vmem:[#allocation2 + $0x90] sm:$0xff]
        %v2061 = vld [vmem:[#allocation2 + $0x98] sm:$0xff]
        %v2062 = vld [vmem:[#allocation2 + $0xa8] sm:$0xff]
        %v2063 = vld [vmem:[#allocation2 + $0xb0] sm:$0xff]
        %v2064 = vld [vmem:[#allocation2 + $0xc0] sm:$0xff]
        %v2065 = vld [vmem:[#allocation2 + $0xc8] sm:$0xff]
        %v2066 = vld [vmem:[#allocation2 + $0xd8] sm:$0xff]
        %v2067 = vld [vmem:[#allocation2 + $0xe0] sm:$0xff]
        %v2068 = vld [vmem:[#allocation2 + $0xf0] sm:$0xff]
        %v2069 = vld [vmem:[#allocation2 + $0xf8] sm:$0xff]
        %v2070 = vld [vmem:[#allocation2 + $0x108] sm:$0xff]
        %v2071 = vld [vmem:[#allocation2 + $0x110] sm:$0xff]
        %v2072 = vld [vmem:[#allocation2 + $0x120] sm:$0xff]
        %v2073 = vld [vmem:[#allocation2 + $0x128] sm:$0xff]
        %v2074 = vld [vmem:[#allocation2 + $0x138] sm:$0xff]
        %v2075 = vld [vmem:[#allocation2 + $0x140] sm:$0xff]
        %v2076 = vld [vmem:[#allocation2 + $0x150] sm:$0xff]
        %v2077 = vld [vmem:[#allocation2 + $0x158] sm:$0xff]
        %v2078 = vld [vmem:[#allocation2 + $0x168] sm:$0xff]
        %v2079 = vld [vmem:[#allocation2 + $0x170] sm:$0xff]
        %v2080 = vld [vmem:[#allocation2 + $0x1] sm:$0xff]
        %v2081 = vld [vmem:[#allocation2 + $0x9] sm:$0xff]
        %v2082 = vld [vmem:[#allocation2 + $0x19] sm:$0xff]
        %v2083 = vld [vmem:[#allocation2 + $0x21] sm:$0xff]
        %v2084 = vld [vmem:[#allocation2 + $0x31] sm:$0xff]
        %v2085 = vld [vmem:[#allocation2 + $0x39] sm:$0xff]
        %v2086 = vld [vmem:[#allocation2 + $0x49] sm:$0xff]
        %v2087 = vld [vmem:[#allocation2 + $0x51] sm:$0xff]
        %v2088 = vld [vmem:[#allocation2 + $0x61] sm:$0xff]
        %v2089 = vld [vmem:[#allocation2 + $0x69] sm:$0xff]
        %v2090 = vld [vmem:[#allocation2 + $0x79] sm:$0xff]
        %v2091 = vld [vmem:[#allocation2 + $0x81] sm:$0xff]
        %v2092 = vld [vmem:[#allocation2 + $0x91] sm:$0xff]
        %v2093 = vld [vmem:[#allocation2 + $0x99] sm:$0xff]
        %v2094 = vld [vmem:[#allocation2 + $0xa9] sm:$0xff]
        %v2095 = vld [vmem:[#allocation2 + $0xb1] sm:$0xff]
        %v2096 = vld [vmem:[#allocation2 + $0xc1] sm:$0xff]
        %v2097 = vld [vmem:[#allocation2 + $0xc9] sm:$0xff]
        %v2098 = vld [vmem:[#allocation2 + $0xd9] sm:$0xff]
        %v2099 = vld [vmem:[#allocation2 + $0xe1] sm:$0xff]
        %v2100 = vld [vmem:[#allocation2 + $0xf1] sm:$0xff]
        %v2101 = vld [vmem:[#allocation2 + $0xf9] sm:$0xff]
        %v2102 = vld [vmem:[#allocation2 + $0x109] sm:$0xff]
        %v2103 = vld [vmem:[#allocation2 + $0x111] sm:$0xff]
        %v2104 = vld [vmem:[#allocation2 + $0x121] sm:$0xff]
        %v2105 = vld [vmem:[#allocation2 + $0x129] sm:$0xff]
        %v2106 = vld [vmem:[#allocation2 + $0x139] sm:$0xff]
        %v2107 = vld [vmem:[#allocation2 + $0x141] sm:$0xff]
        %v2108 = vld [vmem:[#allocation2 + $0x151] sm:$0xff]
        %v2109 = vld [vmem:[#allocation2 + $0x159] sm:$0xff]
        %v2110 = vld [vmem:[#allocation2 + $0x169] sm:$0xff]
        %v2111 = vld [vmem:[#allocation2 + $0x171] sm:$0xff]
        %v2112 = vld [vmem:[#allocation2 + $0x2] sm:$0xff]
        %v2113 = vld [vmem:[#allocation2 + $0xa] sm:$0xff]
        %v2114 = vld [vmem:[#allocation2 + $0x1a] sm:$0xff]
        %v2115 = vld [vmem:[#allocation2 + $0x22] sm:$0xff]
        %v2116 = vld [vmem:[#allocation2 + $0x32] sm:$0xff]
        %v2117 = vld [vmem:[#allocation2 + $0x3a] sm:$0xff]
        %v2118 = vld [vmem:[#allocation2 + $0x4a] sm:$0xff]
        %v2119 = vld [vmem:[#allocation2 + $0x52] sm:$0xff]
        %v2120 = vld [vmem:[#allocation2 + $0x62] sm:$0xff]
        %v2121 = vld [vmem:[#allocation2 + $0x6a] sm:$0xff]
        %v2122 = vld [vmem:[#allocation2 + $0x7a] sm:$0xff]
        %v2123 = vld [vmem:[#allocation2 + $0x82] sm:$0xff]
        %v2124 = vld [vmem:[#allocation2 + $0x92] sm:$0xff]
        %v2125 = vld [vmem:[#allocation2 + $0x9a] sm:$0xff]
        %v2126 = vld [vmem:[#allocation2 + $0xaa] sm:$0xff]
        %v2127 = vld [vmem:[#allocation2 + $0xb2] sm:$0xff]
        %v2128 = vld [vmem:[#allocation2 + $0xc2] sm:$0xff]
        %v2129 = vld [vmem:[#allocation2 + $0xca] sm:$0xff]
        %v2130 = vld [vmem:[#allocation2 + $0xda] sm:$0xff]
        %v2131 = vld [vmem:[#allocation2 + $0xe2] sm:$0xff]
        %v2132 = vld [vmem:[#allocation2 + $0xf2] sm:$0xff]
        %v2133 = vld [vmem:[#allocation2 + $0xfa] sm:$0xff]
        %v2134 = vld [vmem:[#allocation2 + $0x10a] sm:$0xff]
        %v2135 = vld [vmem:[#allocation2 + $0x112] sm:$0xff]
        %v2136 = vld [vmem:[#allocation2 + $0x122] sm:$0xff]
        %v2137 = vld [vmem:[#allocation2 + $0x12a] sm:$0xff]
        %v2138 = vld [vmem:[#allocation2 + $0x13a] sm:$0xff]
        %v2139 = vld [vmem:[#allocation2 + $0x142] sm:$0xff]
        %v2140 = vld [vmem:[#allocation2 + $0x152] sm:$0xff]
        %v2141 = vld [vmem:[#allocation2 + $0x15a] sm:$0xff]
        %v2142 = vld [vmem:[#allocation2 + $0x16a] sm:$0xff]
        %v2143 = vld [vmem:[#allocation2 + $0x172] sm:$0xff]
        %v2144 = vld [vmem:[%s2015] sm:$0xff]
        %v2145 = vld [vmem:[%s2015 + $0x8] sm:$0xff]
        %v2146 = vld [vmem:[%s2015 + $0x18] sm:$0xff]
        %v2147 = vld [vmem:[%s2015 + $0x20] sm:$0xff]
        %v2148 = vld [vmem:[%s2015 + $0x30] sm:$0xff]
        %v2149 = vld [vmem:[%s2015 + $0x38] sm:$0xff]
        %v2150 = vld [vmem:[%s2015 + $0x48] sm:$0xff]
        %v2151 = vld [vmem:[%s2015 + $0x50] sm:$0xff]
        %v2152 = vld [vmem:[%s2015 + $0x60] sm:$0xff]
        %v2153 = vld [vmem:[%s2015 + $0x68] sm:$0xff]
        %v2154 = vld [vmem:[%s2015 + $0x78] sm:$0xff]
        %v2155 = vld [vmem:[%s2015 + $0x80] sm:$0xff]
        %v2156 = vld [vmem:[%s2015 + $0x90] sm:$0xff]
        %v2157 = vld [vmem:[%s2015 + $0x98] sm:$0xff]
        %v2158 = vld [vmem:[%s2015 + $0xa8] sm:$0xff]
        %v2159 = vld [vmem:[%s2015 + $0xb0] sm:$0xff]
        %v2160 = vld [vmem:[%s2015 + $0xc0] sm:$0xff]
        %v2161 = vld [vmem:[%s2015 + $0xc8] sm:$0xff]
        %v2162 = vld [vmem:[%s2015 + $0xd8] sm:$0xff]
        %v2163 = vld [vmem:[%s2015 + $0xe0] sm:$0xff]
        %v2164 = vld [vmem:[%s2015 + $0xf0] sm:$0xff]
        %v2165 = vld [vmem:[%s2015 + $0xf8] sm:$0xff]
        %v2166 = vld [vmem:[%s2015 + $0x108] sm:$0xff]
        %v2167 = vld [vmem:[%s2015 + $0x110] sm:$0xff]
        %v2168 = vld [vmem:[%s2015 + $0x120] sm:$0xff]
        %v2169 = vld [vmem:[%s2015 + $0x128] sm:$0xff]
        %v2170 = vld [vmem:[%s2015 + $0x138] sm:$0xff]
        %v2171 = vld [vmem:[%s2015 + $0x140] sm:$0xff]
        %v2172 = vld [vmem:[%s2015 + $0x150] sm:$0xff]
        %v2173 = vld [vmem:[%s2015 + $0x158] sm:$0xff]
        %v2174 = vld [vmem:[%s2015 + $0x168] sm:$0xff]
        %v2175 = vld [vmem:[%s2015 + $0x170] sm:$0xff]
        %v2176 = vld [vmem:[%s2015 + $0x1] sm:$0xff]
        %v2177 = vld [vmem:[%s2015 + $0x9] sm:$0xff]
        %v2178 = vld [vmem:[%s2015 + $0x19] sm:$0xff]
        %v2179 = vld [vmem:[%s2015 + $0x21] sm:$0xff]
        %v2180 = vld [vmem:[%s2015 + $0x31] sm:$0xff]
        %v2181 = vld [vmem:[%s2015 + $0x39] sm:$0xff]
        %v2182 = vld [vmem:[%s2015 + $0x49] sm:$0xff]
        %v2183 = vld [vmem:[%s2015 + $0x51] sm:$0xff]
        %v2184 = vld [vmem:[%s2015 + $0x61] sm:$0xff]
        %v2185 = vld [vmem:[%s2015 + $0x69] sm:$0xff]
        %v2186 = vld [vmem:[%s2015 + $0x79] sm:$0xff]
        %v2187 = vld [vmem:[%s2015 + $0x81] sm:$0xff]
        %v2188 = vld [vmem:[%s2015 + $0x91] sm:$0xff]
        %v2189 = vld [vmem:[%s2015 + $0x99] sm:$0xff]
        %v2190 = vld [vmem:[%s2015 + $0xa9] sm:$0xff]
        %v2191 = vld [vmem:[%s2015 + $0xb1] sm:$0xff]
        %v2192 = vld [vmem:[%s2015 + $0xc1] sm:$0xff]
        %v2193 = vld [vmem:[%s2015 + $0xc9] sm:$0xff]
        %v2194 = vld [vmem:[%s2015 + $0xd9] sm:$0xff]
        %v2195 = vld [vmem:[%s2015 + $0xe1] sm:$0xff]
        %v2196 = vld [vmem:[%s2015 + $0xf1] sm:$0xff]
        %v2197 = vld [vmem:[%s2015 + $0xf9] sm:$0xff]
        %v2198 = vld [vmem:[%s2015 + $0x109] sm:$0xff]
        %v2199 = vld [vmem:[%s2015 + $0x111] sm:$0xff]
        %v2200 = vld [vmem:[%s2015 + $0x121] sm:$0xff]
        %v2201 = vld [vmem:[%s2015 + $0x129] sm:$0xff]
        %v2202 = vld [vmem:[%s2015 + $0x139] sm:$0xff]
        %v2203 = vld [vmem:[%s2015 + $0x141] sm:$0xff]
        %v2204 = vld [vmem:[%s2015 + $0x151] sm:$0xff]
        %v2205 = vld [vmem:[%s2015 + $0x159] sm:$0xff]
        %v2206 = vld [vmem:[%s2015 + $0x169] sm:$0xff]
        %v2207 = vld [vmem:[%s2015 + $0x171] sm:$0xff]
        %v2208 = vld [vmem:[%s2015 + $0x2] sm:$0xff]
        %v2209 = vld [vmem:[%s2015 + $0xa] sm:$0xff]
        %v2210 = vld [vmem:[%s2015 + $0x1a] sm:$0xff]
        %v2211 = vld [vmem:[%s2015 + $0x22] sm:$0xff]
        %v2212 = vld [vmem:[%s2015 + $0x32] sm:$0xff]
        %v2213 = vld [vmem:[%s2015 + $0x3a] sm:$0xff]
        %v2214 = vld [vmem:[%s2015 + $0x4a] sm:$0xff]
        %v2215 = vld [vmem:[%s2015 + $0x52] sm:$0xff]
        %v2216 = vld [vmem:[%s2015 + $0x62] sm:$0xff]
        %v2217 = vld [vmem:[%s2015 + $0x6a] sm:$0xff]
        %v2218 = vld [vmem:[%s2015 + $0x7a] sm:$0xff]
        %v2219 = vld [vmem:[%s2015 + $0x82] sm:$0xff]
        %v2220 = vld [vmem:[%s2015 + $0x92] sm:$0xff]
        %v2221 = vld [vmem:[%s2015 + $0x9a] sm:$0xff]
        %v2222 = vld [vmem:[%s2015 + $0xaa] sm:$0xff]
        %v2223 = vld [vmem:[%s2015 + $0xb2] sm:$0xff]
        %v2224 = vld [vmem:[%s2015 + $0xc2] sm:$0xff]
        %v2225 = vld [vmem:[%s2015 + $0xca] sm:$0xff]
        %v2226 = vld [vmem:[%s2015 + $0xda] sm:$0xff]
        %v2227 = vld [vmem:[%s2015 + $0xe2] sm:$0xff]
        %v2228 = vld [vmem:[%s2015 + $0xf2] sm:$0xff]
        %v2229 = vld [vmem:[%s2015 + $0xfa] sm:$0xff]
        %v2230 = vld [vmem:[%s2015 + $0x10a] sm:$0xff]
        %v2231 = vld [vmem:[%s2015 + $0x112] sm:$0xff]
        %v2232 = vld [vmem:[%s2015 + $0x122] sm:$0xff]
        %v2233 = vld [vmem:[%s2015 + $0x12a] sm:$0xff]
        %v2234 = vld [vmem:[%s2015 + $0x13a] sm:$0xff]
        %v2235 = vld [vmem:[%s2015 + $0x142] sm:$0xff]
        %v2236 = vld [vmem:[%s2015 + $0x152] sm:$0xff]
        %v2237 = vld [vmem:[%s2015 + $0x15a] sm:$0xff]
        %v2238 = vld [vmem:[%s2015 + $0x16a] sm:$0xff]
        %v2239 = vld [vmem:[%s2015 + $0x172] sm:$0xff]
        %s2240 = scalar_lea.vmem [#allocation2], 48
        %v2241 = vld [vmem:[%s2240] sm:$0xff]
        %v2242 = vld [vmem:[%s2240 + $0x8] sm:$0xff]
        %v2243 = vld [vmem:[%s2240 + $0x18] sm:$0xff]
        %v2244 = vld [vmem:[%s2240 + $0x20] sm:$0xff]
        %v2245 = vld [vmem:[%s2240 + $0x30] sm:$0xff]
        %v2246 = vld [vmem:[%s2240 + $0x38] sm:$0xff]
        %v2247 = vld [vmem:[%s2240 + $0x48] sm:$0xff]
        %v2248 = vld [vmem:[%s2240 + $0x50] sm:$0xff]
        %v2249 = vld [vmem:[%s2240 + $0x60] sm:$0xff]
        %v2250 = vld [vmem:[%s2240 + $0x68] sm:$0xff]
        %v2251 = vld [vmem:[%s2240 + $0x78] sm:$0xff]
        %v2252 = vld [vmem:[%s2240 + $0x80] sm:$0xff]
        %v2253 = vld [vmem:[%s2240 + $0x90] sm:$0xff]
        %v2254 = vld [vmem:[%s2240 + $0x98] sm:$0xff]
        %v2255 = vld [vmem:[%s2240 + $0xa8] sm:$0xff]
        %v2256 = vld [vmem:[%s2240 + $0xb0] sm:$0xff]
        %v2257 = vld [vmem:[%s2240 + $0xc0] sm:$0xff]
        %v2258 = vld [vmem:[%s2240 + $0xc8] sm:$0xff]
        %v2259 = vld [vmem:[%s2240 + $0xd8] sm:$0xff]
        %v2260 = vld [vmem:[%s2240 + $0xe0] sm:$0xff]
        %v2261 = vld [vmem:[%s2240 + $0xf0] sm:$0xff]
        %v2262 = vld [vmem:[%s2240 + $0xf8] sm:$0xff]
        %v2263 = vld [vmem:[%s2240 + $0x108] sm:$0xff]
        %v2264 = vld [vmem:[%s2240 + $0x110] sm:$0xff]
        %v2265 = vld [vmem:[%s2240 + $0x120] sm:$0xff]
        %v2266 = vld [vmem:[%s2240 + $0x128] sm:$0xff]
        %v2267 = vld [vmem:[%s2240 + $0x138] sm:$0xff]
        %v2268 = vld [vmem:[%s2240 + $0x140] sm:$0xff]
        %v2269 = vld [vmem:[%s2240 + $0x150] sm:$0xff]
        %v2270 = vld [vmem:[%s2240 + $0x158] sm:$0xff]
        %v2271 = vld [vmem:[%s2240 + $0x168] sm:$0xff]
        %v2272 = vld [vmem:[%s2240 + $0x170] sm:$0xff]
        %v2273 = vld [vmem:[%s2240 + $0x1] sm:$0xff]
        %v2274 = vld [vmem:[%s2240 + $0x9] sm:$0xff]
        %v2275 = vld [vmem:[%s2240 + $0x19] sm:$0xff]
        %v2276 = vld [vmem:[%s2240 + $0x21] sm:$0xff]
        %v2277 = vld [vmem:[%s2240 + $0x31] sm:$0xff]
        %v2278 = vld [vmem:[%s2240 + $0x39] sm:$0xff]
        %v2279 = vld [vmem:[%s2240 + $0x49] sm:$0xff]
        %v2280 = vld [vmem:[%s2240 + $0x51] sm:$0xff]
        %v2281 = vld [vmem:[%s2240 + $0x61] sm:$0xff]
        %v2282 = vld [vmem:[%s2240 + $0x69] sm:$0xff]
        %v2283 = vld [vmem:[%s2240 + $0x79] sm:$0xff]
        %v2284 = vld [vmem:[%s2240 + $0x81] sm:$0xff]
        %v2285 = vld [vmem:[%s2240 + $0x91] sm:$0xff]
        %v2286 = vld [vmem:[%s2240 + $0x99] sm:$0xff]
        %v2287 = vld [vmem:[%s2240 + $0xa9] sm:$0xff]
        %v2288 = vld [vmem:[%s2240 + $0xb1] sm:$0xff]
        %v2289 = vld [vmem:[%s2240 + $0xc1] sm:$0xff]
        %v2290 = vld [vmem:[%s2240 + $0xc9] sm:$0xff]
        %v2291 = vld [vmem:[%s2240 + $0xd9] sm:$0xff]
        %v2292 = vld [vmem:[%s2240 + $0xe1] sm:$0xff]
        %v2293 = vld [vmem:[%s2240 + $0xf1] sm:$0xff]
        %v2294 = vld [vmem:[%s2240 + $0xf9] sm:$0xff]
        %v2295 = vld [vmem:[%s2240 + $0x109] sm:$0xff]
        %v2296 = vld [vmem:[%s2240 + $0x111] sm:$0xff]
        %v2297 = vld [vmem:[%s2240 + $0x121] sm:$0xff]
        %v2298 = vld [vmem:[%s2240 + $0x129] sm:$0xff]
        %v2299 = vld [vmem:[%s2240 + $0x139] sm:$0xff]
        %v2300 = vld [vmem:[%s2240 + $0x141] sm:$0xff]
        %v2301 = vld [vmem:[%s2240 + $0x151] sm:$0xff]
        %v2302 = vld [vmem:[%s2240 + $0x159] sm:$0xff]
        %v2303 = vld [vmem:[%s2240 + $0x169] sm:$0xff]
        %v2304 = vld [vmem:[%s2240 + $0x171] sm:$0xff]
        %v2305 = vld [vmem:[%s2240 + $0x2] sm:$0xff]
        %v2306 = vld [vmem:[%s2240 + $0xa] sm:$0xff]
        %v2307 = vld [vmem:[%s2240 + $0x1a] sm:$0xff]
        %v2308 = vld [vmem:[%s2240 + $0x22] sm:$0xff]
        %v2309 = vld [vmem:[%s2240 + $0x32] sm:$0xff]
        %v2310 = vld [vmem:[%s2240 + $0x3a] sm:$0xff]
        %v2311 = vld [vmem:[%s2240 + $0x4a] sm:$0xff]
        %v2312 = vld [vmem:[%s2240 + $0x52] sm:$0xff]
        %v2313 = vld [vmem:[%s2240 + $0x62] sm:$0xff]
        %v2314 = vld [vmem:[%s2240 + $0x6a] sm:$0xff]
        %v2315 = vld [vmem:[%s2240 + $0x7a] sm:$0xff]
        %v2316 = vld [vmem:[%s2240 + $0x82] sm:$0xff]
        %v2317 = vld [vmem:[%s2240 + $0x92] sm:$0xff]
        %v2318 = vld [vmem:[%s2240 + $0x9a] sm:$0xff]
        %v2319 = vld [vmem:[%s2240 + $0xaa] sm:$0xff]
        %v2320 = vld [vmem:[%s2240 + $0xb2] sm:$0xff]
        %v2321 = vld [vmem:[%s2240 + $0xc2] sm:$0xff]
        %v2322 = vld [vmem:[%s2240 + $0xca] sm:$0xff]
        %v2323 = vld [vmem:[%s2240 + $0xda] sm:$0xff]
        %v2324 = vld [vmem:[%s2240 + $0xe2] sm:$0xff]
        %v2325 = vld [vmem:[%s2240 + $0xf2] sm:$0xff]
        %v2326 = vld [vmem:[%s2240 + $0xfa] sm:$0xff]
        %v2327 = vld [vmem:[%s2240 + $0x10a] sm:$0xff]
        %v2328 = vld [vmem:[%s2240 + $0x112] sm:$0xff]
        %v2329 = vld [vmem:[%s2240 + $0x122] sm:$0xff]
        %v2330 = vld [vmem:[%s2240 + $0x12a] sm:$0xff]
        %v2331 = vld [vmem:[%s2240 + $0x13a] sm:$0xff]
        %v2332 = vld [vmem:[%s2240 + $0x142] sm:$0xff]
        %v2333 = vld [vmem:[%s2240 + $0x152] sm:$0xff]
        %v2334 = vld [vmem:[%s2240 + $0x15a] sm:$0xff]
        %v2335 = vld [vmem:[%s2240 + $0x16a] sm:$0xff]
        %v2336 = vld [vmem:[%s2240 + $0x172] sm:$0xff]
        %v2337 = vld [vmem:[#allocation3] sm:$0xff]
        %v2338 = vld [vmem:[#allocation3 + $0x8] sm:$0xff]
        %v2339 = vld [vmem:[#allocation3 + $0x10] sm:$0xff]
        %v2340 = vld [vmem:[#allocation3 + $0x18] sm:$0xff]
        %v2341 = vld [vmem:[#allocation3 + $0x20] sm:$0xff]
        %v2342 = vld [vmem:[#allocation3 + $0x28] sm:$0xff]
        %v2343 = vld [vmem:[#allocation3 + $0x30] sm:$0xff]
        %v2344 = vld [vmem:[#allocation3 + $0x38] sm:$0xff]
        %v2345 = vld [vmem:[#allocation3 + $0x40] sm:$0xff]
        %v2346 = vld [vmem:[#allocation3 + $0x48] sm:$0xff]
        %v2347 = vld [vmem:[#allocation3 + $0x50] sm:$0xff]
        %v2348 = vld [vmem:[#allocation3 + $0x58] sm:$0xff]
        %v2349 = vld [vmem:[#allocation3 + $0x60] sm:$0xff]
        %v2350 = vld [vmem:[#allocation3 + $0x68] sm:$0xff]
        %v2351 = vld [vmem:[#allocation3 + $0x70] sm:$0xff]
        %v2352 = vld [vmem:[#allocation3 + $0x78] sm:$0xff]
        %v2353 = vld [vmem:[#allocation3 + $0x80] sm:$0xff]
        %v2354 = vld [vmem:[#allocation3 + $0x88] sm:$0xff]
        %v2355 = vld [vmem:[#allocation3 + $0x90] sm:$0xff]
        %v2356 = vld [vmem:[#allocation3 + $0x98] sm:$0xff]
        %v2357 = vld [vmem:[#allocation3 + $0xa0] sm:$0xff]
        %v2358 = vld [vmem:[#allocation3 + $0xa8] sm:$0xff]
        %v2359 = vld [vmem:[#allocation3 + $0xb0] sm:$0xff]
        %v2360 = vld [vmem:[#allocation3 + $0xb8] sm:$0xff]
        %v2361 = vld [vmem:[#allocation3 + $0xc0] sm:$0xff]
        %v2362 = vld [vmem:[#allocation3 + $0xc8] sm:$0xff]
        %v2363 = vld [vmem:[#allocation3 + $0xd0] sm:$0xff]
        %v2364 = vld [vmem:[#allocation3 + $0xd8] sm:$0xff]
        %v2365 = vld [vmem:[#allocation3 + $0xe0] sm:$0xff]
        %v2366 = vld [vmem:[#allocation3 + $0xe8] sm:$0xff]
        %v2367 = vld [vmem:[#allocation3 + $0xf0] sm:$0xff]
        %v2368 = vld [vmem:[#allocation3 + $0xf8] sm:$0xff]
        %v2369 = vld [vmem:[#allocation3 + $0x100] sm:$0xff]
        %v2370 = vld [vmem:[#allocation3 + $0x108] sm:$0xff]
        %v2371 = vld [vmem:[#allocation3 + $0x110] sm:$0xff]
        %v2372 = vld [vmem:[#allocation3 + $0x118] sm:$0xff]
        %v2373 = vld [vmem:[#allocation3 + $0x120] sm:$0xff]
        %v2374 = vld [vmem:[#allocation3 + $0x128] sm:$0xff]
        %v2375 = vld [vmem:[#allocation3 + $0x130] sm:$0xff]
        %v2376 = vld [vmem:[#allocation3 + $0x138] sm:$0xff]
        %v2377 = vld [vmem:[#allocation3 + $0x140] sm:$0xff]
        %v2378 = vld [vmem:[#allocation3 + $0x148] sm:$0xff]
        %v2379 = vld [vmem:[#allocation3 + $0x150] sm:$0xff]
        %v2380 = vld [vmem:[#allocation3 + $0x158] sm:$0xff]
        %v2381 = vld [vmem:[#allocation3 + $0x160] sm:$0xff]
        %v2382 = vld [vmem:[#allocation3 + $0x168] sm:$0xff]
        %v2383 = vld [vmem:[#allocation3 + $0x170] sm:$0xff]
        %v2384 = vld [vmem:[#allocation3 + $0x178] sm:$0xff]
        %v2385 = vld [vmem:[#allocation3 + $0x180] sm:$0xff]
        %v2386 = vld [vmem:[#allocation3 + $0x188] sm:$0xff]
        %v2387 = vld [vmem:[#allocation3 + $0x190] sm:$0xff]
        %v2388 = vld [vmem:[#allocation3 + $0x198] sm:$0xff]
        %v2389 = vld [vmem:[#allocation3 + $0x1a0] sm:$0xff]
        %v2390 = vld [vmem:[#allocation3 + $0x1a8] sm:$0xff]
        %v2391 = vld [vmem:[#allocation3 + $0x1b0] sm:$0xff]
        %v2392 = vld [vmem:[#allocation3 + $0x1b8] sm:$0xff]
        %v2393 = vld [vmem:[#allocation3 + $0x1c0] sm:$0xff]
        %v2394 = vld [vmem:[#allocation3 + $0x1c8] sm:$0xff]
        %v2395 = vld [vmem:[#allocation3 + $0x1d0] sm:$0xff]
        %v2396 = vld [vmem:[#allocation3 + $0x1d8] sm:$0xff]
        %v2397 = vld [vmem:[#allocation3 + $0x1e0] sm:$0xff]
        %v2398 = vld [vmem:[#allocation3 + $0x1e8] sm:$0xff]
        %v2399 = vld [vmem:[#allocation3 + $0x1f0] sm:$0xff]
        %v2400 = vld [vmem:[#allocation3 + $0x1f8] sm:$0xff]
        %v2401 = vld [vmem:[#allocation3 + $0x200] sm:$0xff]
        %v2402 = vld [vmem:[#allocation3 + $0x208] sm:$0xff]
        %v2403 = vld [vmem:[#allocation3 + $0x210] sm:$0xff]
        %v2404 = vld [vmem:[#allocation3 + $0x218] sm:$0xff]
        %v2405 = vld [vmem:[#allocation3 + $0x220] sm:$0xff]
        %v2406 = vld [vmem:[#allocation3 + $0x228] sm:$0xff]
        %v2407 = vld [vmem:[#allocation3 + $0x230] sm:$0xff]
        %v2408 = vld [vmem:[#allocation3 + $0x238] sm:$0xff]
        %v2409 = vld [vmem:[#allocation3 + $0x240] sm:$0xff]
        %v2410 = vld [vmem:[#allocation3 + $0x248] sm:$0xff]
        %v2411 = vld [vmem:[#allocation3 + $0x250] sm:$0xff]
        %v2412 = vld [vmem:[#allocation3 + $0x258] sm:$0xff]
        %v2413 = vld [vmem:[#allocation3 + $0x260] sm:$0xff]
        %v2414 = vld [vmem:[#allocation3 + $0x268] sm:$0xff]
        %v2415 = vld [vmem:[#allocation3 + $0x270] sm:$0xff]
        %v2416 = vld [vmem:[#allocation3 + $0x278] sm:$0xff]
        %v2417 = vld [vmem:[#allocation3 + $0x280] sm:$0xff]
        %v2418 = vld [vmem:[#allocation3 + $0x288] sm:$0xff]
        %v2419 = vld [vmem:[#allocation3 + $0x290] sm:$0xff]
        %v2420 = vld [vmem:[#allocation3 + $0x298] sm:$0xff]
        %v2421 = vld [vmem:[#allocation3 + $0x2a0] sm:$0xff]
        %v2422 = vld [vmem:[#allocation3 + $0x2a8] sm:$0xff]
        %v2423 = vld [vmem:[#allocation3 + $0x2b0] sm:$0xff]
        %v2424 = vld [vmem:[#allocation3 + $0x2b8] sm:$0xff]
        %v2425 = vld [vmem:[#allocation3 + $0x2c0] sm:$0xff]
        %v2426 = vld [vmem:[#allocation3 + $0x2c8] sm:$0xff]
        %v2427 = vld [vmem:[#allocation3 + $0x2d0] sm:$0xff]
        %v2428 = vld [vmem:[#allocation3 + $0x2d8] sm:$0xff]
        %v2429 = vld [vmem:[#allocation3 + $0x2e0] sm:$0xff]
        %v2430 = vld [vmem:[#allocation3 + $0x2e8] sm:$0xff]
        %v2431 = vld [vmem:[#allocation3 + $0x2f0] sm:$0xff]
        %v2432 = vld [vmem:[#allocation3 + $0x2f8] sm:$0xff]
        %v2433 = vld [vmem:[#allocation3 + $0x300] sm:$0xff]
        %v2434 = vld [vmem:[#allocation3 + $0x308] sm:$0xff]
        %v2435 = vld [vmem:[#allocation3 + $0x310] sm:$0xff]
        %v2436 = vld [vmem:[#allocation3 + $0x318] sm:$0xff]
        %v2437 = vld [vmem:[#allocation3 + $0x320] sm:$0xff]
        %v2438 = vld [vmem:[#allocation3 + $0x328] sm:$0xff]
        %v2439 = vld [vmem:[#allocation3 + $0x330] sm:$0xff]
        %v2440 = vld [vmem:[#allocation3 + $0x338] sm:$0xff]
        %v2441 = vld [vmem:[#allocation3 + $0x340] sm:$0xff]
        %v2442 = vld [vmem:[#allocation3 + $0x348] sm:$0xff]
        %v2443 = vld [vmem:[#allocation3 + $0x350] sm:$0xff]
        %v2444 = vld [vmem:[#allocation3 + $0x358] sm:$0xff]
        %v2445 = vld [vmem:[#allocation3 + $0x360] sm:$0xff]
        %v2446 = vld [vmem:[#allocation3 + $0x368] sm:$0xff]
        %v2447 = vld [vmem:[#allocation3 + $0x370] sm:$0xff]
        %v2448 = vld [vmem:[#allocation3 + $0x378] sm:$0xff]
        %v2449 = vld [vmem:[#allocation3 + $0x380] sm:$0xff]
        %v2450 = vld [vmem:[#allocation3 + $0x388] sm:$0xff]
        %v2451 = vld [vmem:[#allocation3 + $0x390] sm:$0xff]
        %v2452 = vld [vmem:[#allocation3 + $0x398] sm:$0xff]
        %v2453 = vld [vmem:[#allocation3 + $0x3a0] sm:$0xff]
        %v2454 = vld [vmem:[#allocation3 + $0x3a8] sm:$0xff]
        %v2455 = vld [vmem:[#allocation3 + $0x3b0] sm:$0xff]
        %v2456 = vld [vmem:[#allocation3 + $0x3b8] sm:$0xff]
        %v2457 = vld [vmem:[#allocation3 + $0x3c0] sm:$0xff]
        %v2458 = vld [vmem:[#allocation3 + $0x3c8] sm:$0xff]
        %v2459 = vld [vmem:[#allocation3 + $0x3d0] sm:$0xff]
        %v2460 = vld [vmem:[#allocation3 + $0x3d8] sm:$0xff]
        %v2461 = vld [vmem:[#allocation3 + $0x3e0] sm:$0xff]
        %v2462 = vld [vmem:[#allocation3 + $0x3e8] sm:$0xff]
        %v2463 = vld [vmem:[#allocation3 + $0x3f0] sm:$0xff]
        %v2464 = vld [vmem:[#allocation3 + $0x3f8] sm:$0xff]
        %v2465 = vld [vmem:[#allocation3 + $0x400] sm:$0xff]
        %v2466 = vld [vmem:[#allocation3 + $0x408] sm:$0xff]
        %v2467 = vld [vmem:[#allocation3 + $0x410] sm:$0xff]
        %v2468 = vld [vmem:[#allocation3 + $0x418] sm:$0xff]
        %v2469 = vld [vmem:[#allocation3 + $0x420] sm:$0xff]
        %v2470 = vld [vmem:[#allocation3 + $0x428] sm:$0xff]
        %v2471 = vld [vmem:[#allocation3 + $0x430] sm:$0xff]
        %v2472 = vld [vmem:[#allocation3 + $0x438] sm:$0xff]
        %v2473 = vld [vmem:[#allocation3 + $0x440] sm:$0xff]
        %v2474 = vld [vmem:[#allocation3 + $0x448] sm:$0xff]
        %v2475 = vld [vmem:[#allocation3 + $0x450] sm:$0xff]
        %v2476 = vld [vmem:[#allocation3 + $0x458] sm:$0xff]
        %v2477 = vld [vmem:[#allocation3 + $0x460] sm:$0xff]
        %v2478 = vld [vmem:[#allocation3 + $0x468] sm:$0xff]
        %v2479 = vld [vmem:[#allocation3 + $0x470] sm:$0xff]
        %v2480 = vld [vmem:[#allocation3 + $0x478] sm:$0xff]
        %2481 = vmatprep.subr.mxu0 0.0
        %2482 = vmatpush1.msra.mxu0 %v2337
        %2483 = vmatprep.subr.mxu0 0.0
        %2484 = vmatpush1.msra.mxu0 %v2338
        %2485 = vmatprep.subr.mxu0 0.0
        %2486 = vmatpush1.msra.mxu0 %v2339
        %2487 = vmatprep.subr.mxu0 0.0
        %2488 = vmatpush1.msra.mxu0 %v2340
        %2489 = vmatprep.subr.mxu0 0.0
        %2490 = vmatpush1.msra.mxu0 %v2341
        %2491 = vmatprep.subr.mxu0 0.0
        %2492 = vmatpush1.msra.mxu0 %v2342
        %2493 = vmatprep.subr.mxu0 0.0
        %2494 = vmatpush1.msra.mxu0 %v2343
        %2495 = vmatprep.subr.mxu0 0.0
        %2496 = vmatpush1.msra.mxu0 %v2344
        %2497 = vmatprep.subr.mxu0 0.0
        %2498 = vmatpush1.msra.mxu0 %v2345
        %2499 = vmatprep.subr.mxu0 0.0
        %2500 = vmatpush1.msra.mxu0 %v2346
        %2501 = vmatprep.subr.mxu0 0.0
        %2502 = vmatpush1.msra.mxu0 %v2347
        %2503 = vmatprep.subr.mxu0 0.0
        %2504 = vmatpush1.msra.mxu0 %v2348
        %2505 = vmatprep.subr.mxu0 0.0
        %2506 = vmatpush1.msra.mxu0 %v2349
        %2507 = vmatprep.subr.mxu0 0.0
        %2508 = vmatpush1.msra.mxu0 %v2350
        %2509 = vmatprep.subr.mxu0 0.0
        %2510 = vmatpush1.msra.mxu0 %v2351
        %2511 = vmatprep.subr.mxu0 0.0
        %2512 = vmatpush1.msra.mxu0 %v2352
        %2513 = vmatprep.subr.mxu0 0.0
        %2514 = vmatpush1.msra.mxu0 %v2353
        %2515 = vmatprep.subr.mxu0 0.0
        %2516 = vmatpush1.msra.mxu0 %v2354
        %2517 = vmatprep.subr.mxu0 0.0
        %2518 = vmatpush1.msra.mxu0 %v2355
        %2519 = vmatprep.subr.mxu0 0.0
        %2520 = vmatpush1.msra.mxu0 %v2356
        %2521 = vmatprep.subr.mxu0 0.0
        %2522 = vmatpush1.msra.mxu0 %v2357
        %2523 = vmatprep.subr.mxu0 0.0
        %2524 = vmatpush1.msra.mxu0 %v2358
        %2525 = vmatprep.subr.mxu0 0.0
        %2526 = vmatpush1.msra.mxu0 %v2359
        %2527 = vmatprep.subr.mxu0 0.0
        %2528 = vmatpush1.msra.mxu0 %v2360
        %2529 = vmatprep.subr.mxu0 0.0
        %2530 = vmatpush1.msra.mxu0 %v2361
        %2531 = vmatprep.subr.mxu0 0.0
        %2532 = vmatpush1.msra.mxu0 %v2362
        %2533 = vmatprep.subr.mxu0 0.0
        %2534 = vmatpush1.msra.mxu0 %v2363
        %2535 = vmatprep.subr.mxu0 0.0
        %2536 = vmatpush1.msra.mxu0 %v2364
        %2537 = vmatprep.subr.mxu0 0.0
        %2538 = vmatpush1.msra.mxu0 %v2365
        %2539 = vmatprep.subr.mxu0 0.0
        %2540 = vmatpush1.msra.mxu0 %v2366
        %2541 = vmatprep.subr.mxu0 0.0
        %2542 = vmatpush1.msra.mxu0 %v2367
        %2543 = vmatprep.subr.mxu0 0.0
        %2544 = vmatpush1.msra.mxu0 %v2368
        %2545 = vmatprep.mubr.f32.mxu0 %v2080
        %2546 = vmatmul.mubr.f32.gmra.mrb[0].mxu0 %v2048
        %v2547 = vpop.f32.mrb[0].mxu0
        %v2548 = vadd.f32 0.0, %v2547
        %v2549 = vpop.f32.mrb[0].mxu0
        %2550 = vmatprep.mubr.f32.mxu0 %v2081
        %2551 = vmatmul.mubr.f32.gmra.mrb[0].mxu0 %v2049
        %v2552 = vpop.f32.mrb[0].mxu0
        %v2553 = vadd.f32 0.0, %v2552
        %v2554 = vpop.f32.mrb[0].mxu0
        %2555 = vmatprep.mubr.f32.mxu0 %v2082
        %2556 = vmatmul.mubr.f32.gmra.mrb[0].mxu0 %v2050
        %v2557 = vpop.f32.mrb[0].mxu0
        %v2558 = vadd.f32 0.0, %v2557
        %v2559 = vpop.f32.mrb[0].mxu0
        %2560 = vmatprep.mubr.f32.mxu0 %v2083
        %2561 = vmatmul.mubr.f32.gmra.mrb[0].mxu0 %v2051
        %v2562 = vpop.f32.mrb[0].mxu0
        %v2563 = vadd.f32 0.0, %v2562
        %v2564 = vpop.f32.mrb[0].mxu0
        %2565 = vmatprep.mubr.f32.mxu0 %v2084
        %2566 = vmatmul.mubr.f32.gmra.mrb[0].mxu0 %v2052
        %v2567 = vpop.f32.mrb[0].mxu0
        %v2568 = vadd.f32 0.0, %v2567
        %v2569 = vpop.f32.mrb[0].mxu0
        %2570 = vmatprep.mubr.f32.mxu0 %v2085
        %2571 = vmatmul.mubr.f32.gmra.mrb[0].mxu0 %v2053
        %v2572 = vpop.f32.mrb[0].mxu0
        %v2573 = vadd.f32 0.0, %v2572
        %v2574 = vpop.f32.mrb[0].mxu0
        %2575 = vmatprep.mubr.f32.mxu0 %v2086
        %2576 = vmatmul.mubr.f32.gmra.mrb[0].mxu0 %v2054
        %v2577 = vpop.f32.mrb[0].mxu0
        %v2578 = vadd.f32 0.0, %v2577
        %v2579 = vpop.f32.mrb[0].mxu0
        %2580 = vmatprep.mubr.f32.mxu0 %v2087
        %2581 = vmatmul.mubr.f32.gmra.mrb[0].mxu0 %v2055
        %v2582 = vpop.f32.mrb[0].mxu0
        %v2583 = vadd.f32 0.0, %v2582
        %v2584 = vpop.f32.mrb[0].mxu0
        %2585 = vmatprep.mubr.f32.mxu0 %v2088
        %2586 = vmatmul.mubr.f32.gmra.mrb[0].mxu0 %v2056
        %v2587 = vpop.f32.mrb[0].mxu0
        %v2588 = vadd.f32 0.0, %v2587
        %v2589 = vpop.f32.mrb[0].mxu0
        %2590 = vmatprep.mubr.f32.mxu0 %v2089
        %2591 = vmatmul.mubr.f32.gmra.mrb[0].mxu0 %v2057
        %v2592 = vpop.f32.mrb[0].mxu0
        %v2593 = vadd.f32 0.0, %v2592
        %v2594 = vpop.f32.mrb[0].mxu0
        %2595 = vmatprep.mubr.f32.mxu0 %v2090
        %2596 = vmatmul.mubr.f32.gmra.mrb[0].mxu0 %v2058
        %v2597 = vpop.f32.mrb[0].mxu0
        %v2598 = vadd.f32 0.0, %v2597
        %v2599 = vpop.f32.mrb[0].mxu0
        %2600 = vmatprep.mubr.f32.mxu0 %v2091
        %2601 = vmatmul.mubr.f32.gmra.mrb[0].mxu0 %v2059
        %v2602 = vpop.f32.mrb[0].mxu0
        %v2603 = vadd.f32 0.0, %v2602
        %v2604 = vpop.f32.mrb[0].mxu0
        %2605 = vmatprep.mubr.f32.mxu0 %v2092
        %2606 = vmatmul.mubr.f32.gmra.mrb[0].mxu0 %v2060
        %v2607 = vpop.f32.mrb[0].mxu0
        %v2608 = vadd.f32 0.0, %v2607
        %v2609 = vpop.f32.mrb[0].mxu0
        %2610 = vmatprep.mubr.f32.mxu0 %v2093
        %2611 = vmatmul.mubr.f32.gmra.mrb[0].mxu0 %v2061
        %v2612 = vpop.f32.mrb[0].mxu0
        %v2613 = vadd.f32 0.0, %v2612
        %v2614 = vpop.f32.mrb[0].mxu0
        %2615 = vmatprep.mubr.f32.mxu0 %v2094
        %2616 = vmatmul.mubr.f32.gmra.mrb[0].mxu0 %v2062
        %v2617 = vpop.f32.mrb[0].mxu0
        %v2618 = vadd.f32 0.0, %v2617
        %v2619 = vpop.f32.mrb[0].mxu0
        %2620 = vmatprep.mubr.f32.mxu0 %v2095
        %2621 = vmatmul.mubr.f32.gmra.mrb[0].mxu0 %v2063
        %v2622 = vpop.f32.mrb[0].mxu0
        %v2623 = vadd.f32 0.0, %v2622
        %v2624 = vpop.f32.mrb[0].mxu0
        %2625 = vmatprep.mubr.f32.mxu0 %v2096
        %2626 = vmatmul.mubr.f32.gmra.mrb[0].mxu0 %v2064
        %v2627 = vpop.f32.mrb[0].mxu0
        %v2628 = vadd.f32 0.0, %v2627
        %v2629 = vpop.f32.mrb[0].mxu0
        %2630 = vmatprep.mubr.f32.mxu0 %v2097
        %2631 = vmatmul.mubr.f32.gmra.mrb[0].mxu0 %v2065
        %v2632 = vpop.f32.mrb[0].mxu0
        %v2633 = vadd.f32 0.0, %v2632
        %v2634 = vpop.f32.mrb[0].mxu0
        %2635 = vmatprep.mubr.f32.mxu0 %v2098
        %2636 = vmatmul.mubr.f32.gmra.mrb[0].mxu0 %v2066
        %v2637 = vpop.f32.mrb[0].mxu0
        %v2638 = vadd.f32 0.0, %v2637
        %v2639 = vpop.f32.mrb[0].mxu0
        %2640 = vmatprep.mubr.f32.mxu0 %v2099
        %2641 = vmatmul.mubr.f32.gmra.mrb[0].mxu0 %v2067
        %v2642 = vpop.f32.mrb[0].mxu0
        %v2643 = vadd.f32 0.0, %v2642
        %v2644 = vpop.f32.mrb[0].mxu0
        %2645 = vmatprep.mubr.f32.mxu0 %v2100
        %2646 = vmatmul.mubr.f32.gmra.mrb[0].mxu0 %v2068
        %v2647 = vpop.f32.mrb[0].mxu0
        %v2648 = vadd.f32 0.0, %v2647
        %v2649 = vpop.f32.mrb[0].mxu0
        %2650 = vmatprep.mubr.f32.mxu0 %v2101
        %2651 = vmatmul.mubr.f32.gmra.mrb[0].mxu0 %v2069
        %v2652 = vpop.f32.mrb[0].mxu0
        %v2653 = vadd.f32 0.0, %v2652
        %v2654 = vpop.f32.mrb[0].mxu0
        %2655 = vmatprep.mubr.f32.mxu0 %v2102
        %2656 = vmatmul.mubr.f32.gmra.mrb[0].mxu0 %v2070
        %v2657 = vpop.f32.mrb[0].mxu0
        %v2658 = vadd.f32 0.0, %v2657
        %v2659 = vpop.f32.mrb[0].mxu0
        %2660 = vmatprep.mubr.f32.mxu0 %v2103
        %2661 = vmatmul.mubr.f32.gmra.mrb[0].mxu0 %v2071
        %v2662 = vpop.f32.mrb[0].mxu0
        %v2663 = vadd.f32 0.0, %v2662
        %v2664 = vpop.f32.mrb[0].mxu0
        %2665 = vmatprep.mubr.f32.mxu0 %v2104
        %2666 = vmatmul.mubr.f32.gmra.mrb[0].mxu0 %v2072
        %v2667 = vpop.f32.mrb[0].mxu0
        %v2668 = vadd.f32 0.0, %v2667
        %v2669 = vpop.f32.mrb[0].mxu0
        %2670 = vmatprep.mubr.f32.mxu0 %v2105
        %2671 = vmatmul.mubr.f32.gmra.mrb[0].mxu0 %v2073
        %v2672 = vpop.f32.mrb[0].mxu0
        %v2673 = vadd.f32 0.0, %v2672
        %v2674 = vpop.f32.mrb[0].mxu0
        %2675 = vmatprep.mubr.f32.mxu0 %v2106
        %2676 = vmatmul.mubr.f32.gmra.mrb[0].mxu0 %v2074
        %v2677 = vpop.f32.mrb[0].mxu0
        %v2678 = vadd.f32 0.0, %v2677
        %v2679 = vpop.f32.mrb[0].mxu0
        %2680 = vmatprep.mubr.f32.mxu0 %v2107
        %2681 = vmatmul.mubr.f32.gmra.mrb[0].mxu0 %v2075
        %v2682 = vpop.f32.mrb[0].mxu0
        %v2683 = vadd.f32 0.0, %v2682
        %v2684 = vpop.f32.mrb[0].mxu0
        %2685 = vmatprep.mubr.f32.mxu0 %v2108
        %2686 = vmatmul.mubr.f32.gmra.mrb[0].mxu0 %v2076
        %v2687 = vpop.f32.mrb[0].mxu0
        %v2688 = vadd.f32 0.0, %v2687
        %v2689 = vpop.f32.mrb[0].mxu0
        %2690 = vmatprep.mubr.f32.mxu0 %v2109
        %2691 = vmatmul.mubr.f32.gmra.mrb[0].mxu0 %v2077
        %v2692 = vpop.f32.mrb[0].mxu0
        %v2693 = vadd.f32 0.0, %v2692
        %v2694 = vpop.f32.mrb[0].mxu0
        %2695 = vmatprep.mubr.f32.mxu0 %v2110
        %2696 = vmatmul.mubr.f32.gmra.mrb[0].mxu0 %v2078
        %v2697 = vpop.f32.mrb[0].mxu0
        %v2698 = vadd.f32 0.0, %v2697
        %v2699 = vpop.f32.mrb[0].mxu0
        %2700 = vmatprep.mubr.f32.mxu0 %v2111
        %2701 = vmatmul.mubr.f32.gmra.mrb[0].mxu0 %v2079
        %v2702 = vpop.f32.mrb[0].mxu0
        %v2703 = vadd.f32 0.0, %v2702
        %v2704 = vpop.f32.mrb[0].mxu0
        %2705 = vdwg.mxu0
        %2706 = vmatprep.subr.mxu0 0.0
        %2707 = vmatpush1.msra.mxu0 %v2369
        %2708 = vmatprep.subr.mxu0 0.0
        %2709 = vmatpush1.msra.mxu0 %v2370
        %2710 = vmatprep.subr.mxu0 0.0
        %2711 = vmatpush1.msra.mxu0 %v2371
        %2712 = vmatprep.subr.mxu0 0.0
        %2713 = vmatpush1.msra.mxu0 %v2372
        %2714 = vmatprep.subr.mxu0 0.0
        %2715 = vmatpush1.msra.mxu0 %v2373
        %2716 = vmatprep.subr.mxu0 0.0
        %2717 = vmatpush1.msra.mxu0 %v2374
        %2718 = vmatprep.subr.mxu0 0.0
        %2719 = vmatpush1.msra.mxu0 %v2375
        %2720 = vmatprep.subr.mxu0 0.0
        %2721 = vmatpush1.msra.mxu0 %v2376
        %2722 = vmatprep.subr.mxu0 0.0
        %2723 = vmatpush1.msra.mxu0 %v2377
        %2724 = vmatprep.subr.mxu0 0.0
        %2725 = vmatpush1.msra.mxu0 %v2378
        %2726 = vmatprep.subr.mxu0 0.0
        %2727 = vmatpush1.msra.mxu0 %v2379
        %2728 = vmatprep.subr.mxu0 0.0
        %2729 = vmatpush1.msra.mxu0 %v2380
        %2730 = vmatprep.subr.mxu0 0.0
        %2731 = vmatpush1.msra.mxu0 %v2381
        %2732 = vmatprep.subr.mxu0 0.0
        %2733 = vmatpush1.msra.mxu0 %v2382
        %2734 = vmatprep.subr.mxu0 0.0
        %2735 = vmatpush1.msra.mxu0 %v2383
        %2736 = vmatprep.subr.mxu0 0.0
        %2737 = vmatpush1.msra.mxu0 %v2384
        %2738 = vmatprep.subr.mxu0 0.0
        %2739 = vmatpush1.msra.mxu0 %v2385
        %2740 = vmatprep.subr.mxu0 0.0
        %2741 = vmatpush1.msra.mxu0 %v2386
        %2742 = vmatprep.subr.mxu0 0.0
        %2743 = vmatpush1.msra.mxu0 %v2387
        %2744 = vmatprep.subr.mxu0 0.0
        %2745 = vmatpush1.msra.mxu0 %v2388
        %2746 = vmatprep.subr.mxu0 0.0
        %2747 = vmatpush1.msra.mxu0 %v2389
        %2748 = vmatprep.subr.mxu0 0.0
        %2749 = vmatpush1.msra.mxu0 %v2390
        %2750 = vmatprep.subr.mxu0 0.0
        %2751 = vmatpush1.msra.mxu0 %v2391
        %2752 = vmatprep.subr.mxu0 0.0
        %2753 = vmatpush1.msra.mxu0 %v2392
        %2754 = vmatprep.subr.mxu0 0.0
        %2755 = vmatpush1.msra.mxu0 %v2393
        %2756 = vmatprep.subr.mxu0 0.0
        %2757 = vmatpush1.msra.mxu0 %v2394
        %2758 = vmatprep.subr.mxu0 0.0
        %2759 = vmatpush1.msra.mxu0 %v2395
        %2760 = vmatprep.subr.mxu0 0.0
        %2761 = vmatpush1.msra.mxu0 %v2396
        %2762 = vmatprep.subr.mxu0 0.0
        %2763 = vmatpush1.msra.mxu0 %v2397
        %2764 = vmatprep.subr.mxu0 0.0
        %2765 = vmatpush1.msra.mxu0 %v2398
        %2766 = vmatprep.subr.mxu0 0.0
        %2767 = vmatpush1.msra.mxu0 %v2399
        %2768 = vmatprep.subr.mxu0 0.0
        %2769 = vmatpush1.msra.mxu0 %v2400
        %2770 = vmatprep.mubr.f32.mxu0 %v2144
        %2771 = vmatmul.mubr.f32.gmra.mrb[0].mxu0 %v2112
        %v2772 = vpop.f32.mrb[0].mxu0
        %v2773 = vadd.f32 %v2548, %v2772
        %v2774 = vpop.f32.mrb[0].mxu0
        %2775 = vmatprep.mubr.f32.mxu0 %v2145
        %2776 = vmatmul.mubr.f32.gmra.mrb[0].mxu0 %v2113
        %v2777 = vpop.f32.mrb[0].mxu0
        %v2778 = vadd.f32 %v2553, %v2777
        %v2779 = vpop.f32.mrb[0].mxu0
        %2780 = vmatprep.mubr.f32.mxu0 %v2146
        %2781 = vmatmul.mubr.f32.gmra.mrb[0].mxu0 %v2114
        %v2782 = vpop.f32.mrb[0].mxu0
        %v2783 = vadd.f32 %v2558, %v2782
        %v2784 = vpop.f32.mrb[0].mxu0
        %2785 = vmatprep.mubr.f32.mxu0 %v2147
        %2786 = vmatmul.mubr.f32.gmra.mrb[0].mxu0 %v2115
        %v2787 = vpop.f32.mrb[0].mxu0
        %v2788 = vadd.f32 %v2563, %v2787
        %v2789 = vpop.f32.mrb[0].mxu0
        %2790 = vmatprep.mubr.f32.mxu0 %v2148
        %2791 = vmatmul.mubr.f32.gmra.mrb[0].mxu0 %v2116
        %v2792 = vpop.f32.mrb[0].mxu0
        %v2793 = vadd.f32 %v2568, %v2792
        %v2794 = vpop.f32.mrb[0].mxu0
        %2795 = vmatprep.mubr.f32.mxu0 %v2149
        %2796 = vmatmul.mubr.f32.gmra.mrb[0].mxu0 %v2117
        %v2797 = vpop.f32.mrb[0].mxu0
        %v2798 = vadd.f32 %v2573, %v2797
        %v2799 = vpop.f32.mrb[0].mxu0
        %2800 = vmatprep.mubr.f32.mxu0 %v2150
        %2801 = vmatmul.mubr.f32.gmra.mrb[0].mxu0 %v2118
        %v2802 = vpop.f32.mrb[0].mxu0
        %v2803 = vadd.f32 %v2578, %v2802
        %v2804 = vpop.f32.mrb[0].mxu0
        %2805 = vmatprep.mubr.f32.mxu0 %v2151
        %2806 = vmatmul.mubr.f32.gmra.mrb[0].mxu0 %v2119
        %v2807 = vpop.f32.mrb[0].mxu0
        %v2808 = vadd.f32 %v2583, %v2807
        %v2809 = vpop.f32.mrb[0].mxu0
        %2810 = vmatprep.mubr.f32.mxu0 %v2152
        %2811 = vmatmul.mubr.f32.gmra.mrb[0].mxu0 %v2120
        %v2812 = vpop.f32.mrb[0].mxu0
        %v2813 = vadd.f32 %v2588, %v2812
        %v2814 = vpop.f32.mrb[0].mxu0
        %2815 = vmatprep.mubr.f32.mxu0 %v2153
        %2816 = vmatmul.mubr.f32.gmra.mrb[0].mxu0 %v2121
        %v2817 = vpop.f32.mrb[0].mxu0
        %v2818 = vadd.f32 %v2593, %v2817
        %v2819 = vpop.f32.mrb[0].mxu0
        %2820 = vmatprep.mubr.f32.mxu0 %v2154
        %2821 = vmatmul.mubr.f32.gmra.mrb[0].mxu0 %v2122
        %v2822 = vpop.f32.mrb[0].mxu0
        %v2823 = vadd.f32 %v2598, %v2822
        %v2824 = vpop.f32.mrb[0].mxu0
        %2825 = vmatprep.mubr.f32.mxu0 %v2155
        %2826 = vmatmul.mubr.f32.gmra.mrb[0].mxu0 %v2123
        %v2827 = vpop.f32.mrb[0].mxu0
        %v2828 = vadd.f32 %v2603, %v2827
        %v2829 = vpop.f32.mrb[0].mxu0
        %2830 = vmatprep.mubr.f32.mxu0 %v2156
        %2831 = vmatmul.mubr.f32.gmra.mrb[0].mxu0 %v2124
        %v2832 = vpop.f32.mrb[0].mxu0
        %v2833 = vadd.f32 %v2608, %v2832
        %v2834 = vpop.f32.mrb[0].mxu0
        %2835 = vmatprep.mubr.f32.mxu0 %v2157
        %2836 = vmatmul.mubr.f32.gmra.mrb[0].mxu0 %v2125
        %v2837 = vpop.f32.mrb[0].mxu0
        %v2838 = vadd.f32 %v2613, %v2837
        %v2839 = vpop.f32.mrb[0].mxu0
        %2840 = vmatprep.mubr.f32.mxu0 %v2158
        %2841 = vmatmul.mubr.f32.gmra.mrb[0].mxu0 %v2126
        %v2842 = vpop.f32.mrb[0].mxu0
        %v2843 = vadd.f32 %v2618, %v2842
        %v2844 = vpop.f32.mrb[0].mxu0
        %2845 = vmatprep.mubr.f32.mxu0 %v2159
        %2846 = vmatmul.mubr.f32.gmra.mrb[0].mxu0 %v2127
        %v2847 = vpop.f32.mrb[0].mxu0
        %v2848 = vadd.f32 %v2623, %v2847
        %v2849 = vpop.f32.mrb[0].mxu0
        %2850 = vmatprep.mubr.f32.mxu0 %v2160
        %2851 = vmatmul.mubr.f32.gmra.mrb[0].mxu0 %v2128
        %v2852 = vpop.f32.mrb[0].mxu0
        %v2853 = vadd.f32 %v2628, %v2852
        %v2854 = vpop.f32.mrb[0].mxu0
        %2855 = vmatprep.mubr.f32.mxu0 %v2161
        %2856 = vmatmul.mubr.f32.gmra.mrb[0].mxu0 %v2129
        %v2857 = vpop.f32.mrb[0].mxu0
        %v2858 = vadd.f32 %v2633, %v2857
        %v2859 = vpop.f32.mrb[0].mxu0
        %2860 = vmatprep.mubr.f32.mxu0 %v2162
        %2861 = vmatmul.mubr.f32.gmra.mrb[0].mxu0 %v2130
        %v2862 = vpop.f32.mrb[0].mxu0
        %v2863 = vadd.f32 %v2638, %v2862
        %v2864 = vpop.f32.mrb[0].mxu0
        %2865 = vmatprep.mubr.f32.mxu0 %v2163
        %2866 = vmatmul.mubr.f32.gmra.mrb[0].mxu0 %v2131
        %v2867 = vpop.f32.mrb[0].mxu0
        %v2868 = vadd.f32 %v2643, %v2867
        %v2869 = vpop.f32.mrb[0].mxu0
        %2870 = vmatprep.mubr.f32.mxu0 %v2164
        %2871 = vmatmul.mubr.f32.gmra.mrb[0].mxu0 %v2132
        %v2872 = vpop.f32.mrb[0].mxu0
        %v2873 = vadd.f32 %v2648, %v2872
        %v2874 = vpop.f32.mrb[0].mxu0
        %2875 = vmatprep.mubr.f32.mxu0 %v2165
        %2876 = vmatmul.mubr.f32.gmra.mrb[0].mxu0 %v2133
        %v2877 = vpop.f32.mrb[0].mxu0
        %v2878 = vadd.f32 %v2653, %v2877
        %v2879 = vpop.f32.mrb[0].mxu0
        %2880 = vmatprep.mubr.f32.mxu0 %v2166
        %2881 = vmatmul.mubr.f32.gmra.mrb[0].mxu0 %v2134
        %v2882 = vpop.f32.mrb[0].mxu0
        %v2883 = vadd.f32 %v2658, %v2882
        %v2884 = vpop.f32.mrb[0].mxu0
        %2885 = vmatprep.mubr.f32.mxu0 %v2167
        %2886 = vmatmul.mubr.f32.gmra.mrb[0].mxu0 %v2135
        %v2887 = vpop.f32.mrb[0].mxu0
        %v2888 = vadd.f32 %v2663, %v2887
        %v2889 = vpop.f32.mrb[0].mxu0
        %2890 = vmatprep.mubr.f32.mxu0 %v2168
        %2891 = vmatmul.mubr.f32.gmra.mrb[0].mxu0 %v2136
        %v2892 = vpop.f32.mrb[0].mxu0
        %v2893 = vadd.f32 %v2668, %v2892
        %v2894 = vpop.f32.mrb[0].mxu0
        %2895 = vmatprep.mubr.f32.mxu0 %v2169
        %2896 = vmatmul.mubr.f32.gmra.mrb[0].mxu0 %v2137
        %v2897 = vpop.f32.mrb[0].mxu0
        %v2898 = vadd.f32 %v2673, %v2897
        %v2899 = vpop.f32.mrb[0].mxu0
        %2900 = vmatprep.mubr.f32.mxu0 %v2170
        %2901 = vmatmul.mubr.f32.gmra.mrb[0].mxu0 %v2138
        %v2902 = vpop.f32.mrb[0].mxu0
        %v2903 = vadd.f32 %v2678, %v2902
        %v2904 = vpop.f32.mrb[0].mxu0
        %2905 = vmatprep.mubr.f32.mxu0 %v2171
        %2906 = vmatmul.mubr.f32.gmra.mrb[0].mxu0 %v2139
        %v2907 = vpop.f32.mrb[0].mxu0
        %v2908 = vadd.f32 %v2683, %v2907
        %v2909 = vpop.f32.mrb[0].mxu0
        %2910 = vmatprep.mubr.f32.mxu0 %v2172
        %2911 = vmatmul.mubr.f32.gmra.mrb[0].mxu0 %v2140
        %v2912 = vpop.f32.mrb[0].mxu0
        %v2913 = vadd.f32 %v2688, %v2912
        %v2914 = vpop.f32.mrb[0].mxu0
        %2915 = vmatprep.mubr.f32.mxu0 %v2173
        %2916 = vmatmul.mubr.f32.gmra.mrb[0].mxu0 %v2141
        %v2917 = vpop.f32.mrb[0].mxu0
        %v2918 = vadd.f32 %v2693, %v2917
        %v2919 = vpop.f32.mrb[0].mxu0
        %2920 = vmatprep.mubr.f32.mxu0 %v2174
        %2921 = vmatmul.mubr.f32.gmra.mrb[0].mxu0 %v2142
        %v2922 = vpop.f32.mrb[0].mxu0
        %v2923 = vadd.f32 %v2698, %v2922
        %v2924 = vpop.f32.mrb[0].mxu0
        %2925 = vmatprep.mubr.f32.mxu0 %v2175
        %2926 = vmatmul.mubr.f32.gmra.mrb[0].mxu0 %v2143
        %v2927 = vpop.f32.mrb[0].mxu0
        %v2928 = vadd.f32 %v2703, %v2927
        %v2929 = vpop.f32.mrb[0].mxu0
        %2930 = vdwg.mxu0
        %2931 = vmatprep.subr.mxu0 0.0
        %2932 = vmatpush1.msra.mxu0 %v2401
        %2933 = vmatprep.subr.mxu0 0.0
        %2934 = vmatpush1.msra.mxu0 %v2402
        %2935 = vmatprep.subr.mxu0 0.0
        %2936 = vmatpush1.msra.mxu0 %v2403
        %2937 = vmatprep.subr.mxu0 0.0
        %2938 = vmatpush1.msra.mxu0 %v2404
        %2939 = vmatprep.subr.mxu0 0.0
        %2940 = vmatpush1.msra.mxu0 %v2405
        %2941 = vmatprep.subr.mxu0 0.0
        %2942 = vmatpush1.msra.mxu0 %v2406
        %2943 = vmatprep.subr.mxu0 0.0
        %2944 = vmatpush1.msra.mxu0 %v2407
        %2945 = vmatprep.subr.mxu0 0.0
        %2946 = vmatpush1.msra.mxu0 %v2408
        %2947 = vmatprep.subr.mxu0 0.0
        %2948 = vmatpush1.msra.mxu0 %v2409
        %2949 = vmatprep.subr.mxu0 0.0
        %2950 = vmatpush1.msra.mxu0 %v2410
        %2951 = vmatprep.subr.mxu0 0.0
        %2952 = vmatpush1.msra.mxu0 %v2411
        %2953 = vmatprep.subr.mxu0 0.0
        %2954 = vmatpush1.msra.mxu0 %v2412
        %2955 = vmatprep.subr.mxu0 0.0
        %2956 = vmatpush1.msra.mxu0 %v2413
        %2957 = vmatprep.subr.mxu0 0.0
        %2958 = vmatpush1.msra.mxu0 %v2414
        %2959 = vmatprep.subr.mxu0 0.0
        %2960 = vmatpush1.msra.mxu0 %v2415
        %2961 = vmatprep.subr.mxu0 0.0
        %2962 = vmatpush1.msra.mxu0 %v2416
        %2963 = vmatprep.subr.mxu0 0.0
        %2964 = vmatpush1.msra.mxu0 %v2417
        %2965 = vmatprep.subr.mxu0 0.0
        %2966 = vmatpush1.msra.mxu0 %v2418
        %2967 = vmatprep.subr.mxu0 0.0
        %2968 = vmatpush1.msra.mxu0 %v2419
        %2969 = vmatprep.subr.mxu0 0.0
        %2970 = vmatpush1.msra.mxu0 %v2420
        %2971 = vmatprep.subr.mxu0 0.0
        %2972 = vmatpush1.msra.mxu0 %v2421
        %2973 = vmatprep.subr.mxu0 0.0
        %2974 = vmatpush1.msra.mxu0 %v2422
        %2975 = vmatprep.subr.mxu0 0.0
        %2976 = vmatpush1.msra.mxu0 %v2423
        %2977 = vmatprep.subr.mxu0 0.0
        %2978 = vmatpush1.msra.mxu0 %v2424
        %2979 = vmatprep.subr.mxu0 0.0
        %2980 = vmatpush1.msra.mxu0 %v2425
        %2981 = vmatprep.subr.mxu0 0.0
        %2982 = vmatpush1.msra.mxu0 %v2426
        %2983 = vmatprep.subr.mxu0 0.0
        %2984 = vmatpush1.msra.mxu0 %v2427
        %2985 = vmatprep.subr.mxu0 0.0
        %2986 = vmatpush1.msra.mxu0 %v2428
        %2987 = vmatprep.subr.mxu0 0.0
        %2988 = vmatpush1.msra.mxu0 %v2429
        %2989 = vmatprep.subr.mxu0 0.0
        %2990 = vmatpush1.msra.mxu0 %v2430
        %2991 = vmatprep.subr.mxu0 0.0
        %2992 = vmatpush1.msra.mxu0 %v2431
        %2993 = vmatprep.subr.mxu0 0.0
        %2994 = vmatpush1.msra.mxu0 %v2432
        %2995 = vmatprep.mubr.f32.mxu0 %v2208
        %2996 = vmatmul.mubr.f32.gmra.mrb[0].mxu0 %v2176
        %v2997 = vpop.f32.mrb[0].mxu0
        %v2998 = vadd.f32 %v2773, %v2997
        %v2999 = vpop.f32.mrb[0].mxu0
        %3000 = vmatprep.mubr.f32.mxu0 %v2209
        %3001 = vmatmul.mubr.f32.gmra.mrb[0].mxu0 %v2177
        %v3002 = vpop.f32.mrb[0].mxu0
        %v3003 = vadd.f32 %v2778, %v3002
        %v3004 = vpop.f32.mrb[0].mxu0
        %3005 = vmatprep.mubr.f32.mxu0 %v2210
        %3006 = vmatmul.mubr.f32.gmra.mrb[0].mxu0 %v2178
        %v3007 = vpop.f32.mrb[0].mxu0
        %v3008 = vadd.f32 %v2783, %v3007
        %v3009 = vpop.f32.mrb[0].mxu0
        %3010 = vmatprep.mubr.f32.mxu0 %v2211
        %3011 = vmatmul.mubr.f32.gmra.mrb[0].mxu0 %v2179
        %v3012 = vpop.f32.mrb[0].mxu0
        %v3013 = vadd.f32 %v2788, %v3012
        %v3014 = vpop.f32.mrb[0].mxu0
        %3015 = vmatprep.mubr.f32.mxu0 %v2212
        %3016 = vmatmul.mubr.f32.gmra.mrb[0].mxu0 %v2180
        %v3017 = vpop.f32.mrb[0].mxu0
        %v3018 = vadd.f32 %v2793, %v3017
        %v3019 = vpop.f32.mrb[0].mxu0
        %3020 = vmatprep.mubr.f32.mxu0 %v2213
        %3021 = vmatmul.mubr.f32.gmra.mrb[0].mxu0 %v2181
        %v3022 = vpop.f32.mrb[0].mxu0
        %v3023 = vadd.f32 %v2798, %v3022
        %v3024 = vpop.f32.mrb[0].mxu0
        %3025 = vmatprep.mubr.f32.mxu0 %v2214
        %3026 = vmatmul.mubr.f32.gmra.mrb[0].mxu0 %v2182
        %v3027 = vpop.f32.mrb[0].mxu0
        %v3028 = vadd.f32 %v2803, %v3027
        %v3029 = vpop.f32.mrb[0].mxu0
        %3030 = vmatprep.mubr.f32.mxu0 %v2215
        %3031 = vmatmul.mubr.f32.gmra.mrb[0].mxu0 %v2183
        %v3032 = vpop.f32.mrb[0].mxu0
        %v3033 = vadd.f32 %v2808, %v3032
        %v3034 = vpop.f32.mrb[0].mxu0
        %3035 = vmatprep.mubr.f32.mxu0 %v2216
        %3036 = vmatmul.mubr.f32.gmra.mrb[0].mxu0 %v2184
        %v3037 = vpop.f32.mrb[0].mxu0
        %v3038 = vadd.f32 %v2813, %v3037
        %v3039 = vpop.f32.mrb[0].mxu0
        %3040 = vmatprep.mubr.f32.mxu0 %v2217
        %3041 = vmatmul.mubr.f32.gmra.mrb[0].mxu0 %v2185
        %v3042 = vpop.f32.mrb[0].mxu0
        %v3043 = vadd.f32 %v2818, %v3042
        %v3044 = vpop.f32.mrb[0].mxu0
        %3045 = vmatprep.mubr.f32.mxu0 %v2218
        %3046 = vmatmul.mubr.f32.gmra.mrb[0].mxu0 %v2186
        %v3047 = vpop.f32.mrb[0].mxu0
        %v3048 = vadd.f32 %v2823, %v3047
        %v3049 = vpop.f32.mrb[0].mxu0
        %3050 = vmatprep.mubr.f32.mxu0 %v2219
        %3051 = vmatmul.mubr.f32.gmra.mrb[0].mxu0 %v2187
        %v3052 = vpop.f32.mrb[0].mxu0
        %v3053 = vadd.f32 %v2828, %v3052
        %v3054 = vpop.f32.mrb[0].mxu0
        %3055 = vmatprep.mubr.f32.mxu0 %v2220
        %3056 = vmatmul.mubr.f32.gmra.mrb[0].mxu0 %v2188
        %v3057 = vpop.f32.mrb[0].mxu0
        %v3058 = vadd.f32 %v2833, %v3057
        %v3059 = vpop.f32.mrb[0].mxu0
        %3060 = vmatprep.mubr.f32.mxu0 %v2221
        %3061 = vmatmul.mubr.f32.gmra.mrb[0].mxu0 %v2189
        %v3062 = vpop.f32.mrb[0].mxu0
        %v3063 = vadd.f32 %v2838, %v3062
        %v3064 = vpop.f32.mrb[0].mxu0
        %3065 = vmatprep.mubr.f32.mxu0 %v2222
        %3066 = vmatmul.mubr.f32.gmra.mrb[0].mxu0 %v2190
        %v3067 = vpop.f32.mrb[0].mxu0
        %v3068 = vadd.f32 %v2843, %v3067
        %v3069 = vpop.f32.mrb[0].mxu0
        %3070 = vmatprep.mubr.f32.mxu0 %v2223
        %3071 = vmatmul.mubr.f32.gmra.mrb[0].mxu0 %v2191
        %v3072 = vpop.f32.mrb[0].mxu0
        %v3073 = vadd.f32 %v2848, %v3072
        %v3074 = vpop.f32.mrb[0].mxu0
        %3075 = vmatprep.mubr.f32.mxu0 %v2224
        %3076 = vmatmul.mubr.f32.gmra.mrb[0].mxu0 %v2192
        %v3077 = vpop.f32.mrb[0].mxu0
        %v3078 = vadd.f32 %v2853, %v3077
        %v3079 = vpop.f32.mrb[0].mxu0
        %3080 = vmatprep.mubr.f32.mxu0 %v2225
        %3081 = vmatmul.mubr.f32.gmra.mrb[0].mxu0 %v2193
        %v3082 = vpop.f32.mrb[0].mxu0
        %v3083 = vadd.f32 %v2858, %v3082
        %v3084 = vpop.f32.mrb[0].mxu0
        %3085 = vmatprep.mubr.f32.mxu0 %v2226
        %3086 = vmatmul.mubr.f32.gmra.mrb[0].mxu0 %v2194
        %v3087 = vpop.f32.mrb[0].mxu0
        %v3088 = vadd.f32 %v2863, %v3087
        %v3089 = vpop.f32.mrb[0].mxu0
        %3090 = vmatprep.mubr.f32.mxu0 %v2227
        %3091 = vmatmul.mubr.f32.gmra.mrb[0].mxu0 %v2195
        %v3092 = vpop.f32.mrb[0].mxu0
        %v3093 = vadd.f32 %v2868, %v3092
        %v3094 = vpop.f32.mrb[0].mxu0
        %3095 = vmatprep.mubr.f32.mxu0 %v2228
        %3096 = vmatmul.mubr.f32.gmra.mrb[0].mxu0 %v2196
        %v3097 = vpop.f32.mrb[0].mxu0
        %v3098 = vadd.f32 %v2873, %v3097
        %v3099 = vpop.f32.mrb[0].mxu0
        %3100 = vmatprep.mubr.f32.mxu0 %v2229
        %3101 = vmatmul.mubr.f32.gmra.mrb[0].mxu0 %v2197
        %v3102 = vpop.f32.mrb[0].mxu0
        %v3103 = vadd.f32 %v2878, %v3102
        %v3104 = vpop.f32.mrb[0].mxu0
        %3105 = vmatprep.mubr.f32.mxu0 %v2230
        %3106 = vmatmul.mubr.f32.gmra.mrb[0].mxu0 %v2198
        %v3107 = vpop.f32.mrb[0].mxu0
        %v3108 = vadd.f32 %v2883, %v3107
        %v3109 = vpop.f32.mrb[0].mxu0
        %3110 = vmatprep.mubr.f32.mxu0 %v2231
        %3111 = vmatmul.mubr.f32.gmra.mrb[0].mxu0 %v2199
        %v3112 = vpop.f32.mrb[0].mxu0
        %v3113 = vadd.f32 %v2888, %v3112
        %v3114 = vpop.f32.mrb[0].mxu0
        %3115 = vmatprep.mubr.f32.mxu0 %v2232
        %3116 = vmatmul.mubr.f32.gmra.mrb[0].mxu0 %v2200
        %v3117 = vpop.f32.mrb[0].mxu0
        %v3118 = vadd.f32 %v2893, %v3117
        %v3119 = vpop.f32.mrb[0].mxu0
        %3120 = vmatprep.mubr.f32.mxu0 %v2233
        %3121 = vmatmul.mubr.f32.gmra.mrb[0].mxu0 %v2201
        %v3122 = vpop.f32.mrb[0].mxu0
        %v3123 = vadd.f32 %v2898, %v3122
        %v3124 = vpop.f32.mrb[0].mxu0
        %3125 = vmatprep.mubr.f32.mxu0 %v2234
        %3126 = vmatmul.mubr.f32.gmra.mrb[0].mxu0 %v2202
        %v3127 = vpop.f32.mrb[0].mxu0
        %v3128 = vadd.f32 %v2903, %v3127
        %v3129 = vpop.f32.mrb[0].mxu0
        %3130 = vmatprep.mubr.f32.mxu0 %v2235
        %3131 = vmatmul.mubr.f32.gmra.mrb[0].mxu0 %v2203
        %v3132 = vpop.f32.mrb[0].mxu0
        %v3133 = vadd.f32 %v2908, %v3132
        %v3134 = vpop.f32.mrb[0].mxu0
        %3135 = vmatprep.mubr.f32.mxu0 %v2236
        %3136 = vmatmul.mubr.f32.gmra.mrb[0].mxu0 %v2204
        %v3137 = vpop.f32.mrb[0].mxu0
        %v3138 = vadd.f32 %v2913, %v3137
        %v3139 = vpop.f32.mrb[0].mxu0
        %3140 = vmatprep.mubr.f32.mxu0 %v2237
        %3141 = vmatmul.mubr.f32.gmra.mrb[0].mxu0 %v2205
        %v3142 = vpop.f32.mrb[0].mxu0
        %v3143 = vadd.f32 %v2918, %v3142
        %v3144 = vpop.f32.mrb[0].mxu0
        %3145 = vmatprep.mubr.f32.mxu0 %v2238
        %3146 = vmatmul.mubr.f32.gmra.mrb[0].mxu0 %v2206
        %v3147 = vpop.f32.mrb[0].mxu0
        %v3148 = vadd.f32 %v2923, %v3147
        %v3149 = vpop.f32.mrb[0].mxu0
        %3150 = vmatprep.mubr.f32.mxu0 %v2239
        %3151 = vmatmul.mubr.f32.gmra.mrb[0].mxu0 %v2207
        %v3152 = vpop.f32.mrb[0].mxu0
        %v3153 = vadd.f32 %v2928, %v3152
        %v3154 = vpop.f32.mrb[0].mxu0
        %3155 = vdwg.mxu0
        %3156 = vmatprep.subr.mxu0 0.0
        %3157 = vmatpush1.msra.mxu0 %v2433
        %3158 = vmatprep.subr.mxu0 0.0
        %3159 = vmatpush1.msra.mxu0 %v2434
        %3160 = vmatprep.subr.mxu0 0.0
        %3161 = vmatpush1.msra.mxu0 %v2435
        %3162 = vmatprep.subr.mxu0 0.0
        %3163 = vmatpush1.msra.mxu0 %v2436
        %3164 = vmatprep.subr.mxu0 0.0
        %3165 = vmatpush1.msra.mxu0 %v2437
        %3166 = vmatprep.subr.mxu0 0.0
        %3167 = vmatpush1.msra.mxu0 %v2438
        %3168 = vmatprep.subr.mxu0 0.0
        %3169 = vmatpush1.msra.mxu0 %v2439
        %3170 = vmatprep.subr.mxu0 0.0
        %3171 = vmatpush1.msra.mxu0 %v2440
        %3172 = vmatprep.subr.mxu0 0.0
        %3173 = vmatpush1.msra.mxu0 %v2441
        %3174 = vmatprep.subr.mxu0 0.0
        %3175 = vmatpush1.msra.mxu0 %v2442
        %3176 = vmatprep.subr.mxu0 0.0
        %3177 = vmatpush1.msra.mxu0 %v2443
        %3178 = vmatprep.subr.mxu0 0.0
        %3179 = vmatpush1.msra.mxu0 %v2444
        %3180 = vmatprep.subr.mxu0 0.0
        %3181 = vmatpush1.msra.mxu0 %v2445
        %3182 = vmatprep.subr.mxu0 0.0
        %3183 = vmatpush1.msra.mxu0 %v2446
        %3184 = vmatprep.subr.mxu0 0.0
        %3185 = vmatpush1.msra.mxu0 %v2447
        %3186 = vmatprep.subr.mxu0 0.0
        %3187 = vmatpush1.msra.mxu0 %v2448
        %3188 = vmatprep.subr.mxu0 0.0
        %3189 = vmatpush1.msra.mxu0 %v2449
        %3190 = vmatprep.subr.mxu0 0.0
        %3191 = vmatpush1.msra.mxu0 %v2450
        %3192 = vmatprep.subr.mxu0 0.0
        %3193 = vmatpush1.msra.mxu0 %v2451
        %3194 = vmatprep.subr.mxu0 0.0
        %3195 = vmatpush1.msra.mxu0 %v2452
        %3196 = vmatprep.subr.mxu0 0.0
        %3197 = vmatpush1.msra.mxu0 %v2453
        %3198 = vmatprep.subr.mxu0 0.0
        %3199 = vmatpush1.msra.mxu0 %v2454
        %3200 = vmatprep.subr.mxu0 0.0
        %3201 = vmatpush1.msra.mxu0 %v2455
        %3202 = vmatprep.subr.mxu0 0.0
        %3203 = vmatpush1.msra.mxu0 %v2456
        %3204 = vmatprep.subr.mxu0 0.0
        %3205 = vmatpush1.msra.mxu0 %v2457
        %3206 = vmatprep.subr.mxu0 0.0
        %3207 = vmatpush1.msra.mxu0 %v2458
        %3208 = vmatprep.subr.mxu0 0.0
        %3209 = vmatpush1.msra.mxu0 %v2459
        %3210 = vmatprep.subr.mxu0 0.0
        %3211 = vmatpush1.msra.mxu0 %v2460
        %3212 = vmatprep.subr.mxu0 0.0
        %3213 = vmatpush1.msra.mxu0 %v2461
        %3214 = vmatprep.subr.mxu0 0.0
        %3215 = vmatpush1.msra.mxu0 %v2462
        %3216 = vmatprep.subr.mxu0 0.0
        %3217 = vmatpush1.msra.mxu0 %v2463
        %3218 = vmatprep.subr.mxu0 0.0
        %3219 = vmatpush1.msra.mxu0 %v2464
        %3220 = vmatprep.mubr.f32.mxu0 %v2273
        %3221 = vmatmul.mubr.f32.gmra.mrb[0].mxu0 %v2241
        %v3222 = vpop.f32.mrb[0].mxu0
        %v3223 = vadd.f32 %v2998, %v3222
        %v3224 = vpop.f32.mrb[0].mxu0
        %3225 = vmatprep.mubr.f32.mxu0 %v2274
        %3226 = vmatmul.mubr.f32.gmra.mrb[0].mxu0 %v2242
        %v3227 = vpop.f32.mrb[0].mxu0
        %v3228 = vadd.f32 %v3003, %v3227
        %v3229 = vpop.f32.mrb[0].mxu0
        %3230 = vmatprep.mubr.f32.mxu0 %v2275
        %3231 = vmatmul.mubr.f32.gmra.mrb[0].mxu0 %v2243
        %v3232 = vpop.f32.mrb[0].mxu0
        %v3233 = vadd.f32 %v3008, %v3232
        %v3234 = vpop.f32.mrb[0].mxu0
        %3235 = vmatprep.mubr.f32.mxu0 %v2276
        %3236 = vmatmul.mubr.f32.gmra.mrb[0].mxu0 %v2244
        %v3237 = vpop.f32.mrb[0].mxu0
        %v3238 = vadd.f32 %v3013, %v3237
        %v3239 = vpop.f32.mrb[0].mxu0
        %3240 = vmatprep.mubr.f32.mxu0 %v2277
        %3241 = vmatmul.mubr.f32.gmra.mrb[0].mxu0 %v2245
        %v3242 = vpop.f32.mrb[0].mxu0
        %v3243 = vadd.f32 %v3018, %v3242
        %v3244 = vpop.f32.mrb[0].mxu0
        %3245 = vmatprep.mubr.f32.mxu0 %v2278
        %3246 = vmatmul.mubr.f32.gmra.mrb[0].mxu0 %v2246
        %v3247 = vpop.f32.mrb[0].mxu0
        %v3248 = vadd.f32 %v3023, %v3247
        %v3249 = vpop.f32.mrb[0].mxu0
        %3250 = vmatprep.mubr.f32.mxu0 %v2279
        %3251 = vmatmul.mubr.f32.gmra.mrb[0].mxu0 %v2247
        %v3252 = vpop.f32.mrb[0].mxu0
        %v3253 = vadd.f32 %v3028, %v3252
        %v3254 = vpop.f32.mrb[0].mxu0
        %3255 = vmatprep.mubr.f32.mxu0 %v2280
        %3256 = vmatmul.mubr.f32.gmra.mrb[0].mxu0 %v2248
        %v3257 = vpop.f32.mrb[0].mxu0
        %v3258 = vadd.f32 %v3033, %v3257
        %v3259 = vpop.f32.mrb[0].mxu0
        %3260 = vmatprep.mubr.f32.mxu0 %v2281
        %3261 = vmatmul.mubr.f32.gmra.mrb[0].mxu0 %v2249
        %v3262 = vpop.f32.mrb[0].mxu0
        %v3263 = vadd.f32 %v3038, %v3262
        %v3264 = vpop.f32.mrb[0].mxu0
        %3265 = vmatprep.mubr.f32.mxu0 %v2282
        %3266 = vmatmul.mubr.f32.gmra.mrb[0].mxu0 %v2250
        %v3267 = vpop.f32.mrb[0].mxu0
        %v3268 = vadd.f32 %v3043, %v3267
        %v3269 = vpop.f32.mrb[0].mxu0
        %3270 = vmatprep.mubr.f32.mxu0 %v2283
        %3271 = vmatmul.mubr.f32.gmra.mrb[0].mxu0 %v2251
        %v3272 = vpop.f32.mrb[0].mxu0
        %v3273 = vadd.f32 %v3048, %v3272
        %v3274 = vpop.f32.mrb[0].mxu0
        %3275 = vmatprep.mubr.f32.mxu0 %v2284
        %3276 = vmatmul.mubr.f32.gmra.mrb[0].mxu0 %v2252
        %v3277 = vpop.f32.mrb[0].mxu0
        %v3278 = vadd.f32 %v3053, %v3277
        %v3279 = vpop.f32.mrb[0].mxu0
        %3280 = vmatprep.mubr.f32.mxu0 %v2285
        %3281 = vmatmul.mubr.f32.gmra.mrb[0].mxu0 %v2253
        %v3282 = vpop.f32.mrb[0].mxu0
        %v3283 = vadd.f32 %v3058, %v3282
        %v3284 = vpop.f32.mrb[0].mxu0
        %3285 = vmatprep.mubr.f32.mxu0 %v2286
        %3286 = vmatmul.mubr.f32.gmra.mrb[0].mxu0 %v2254
        %v3287 = vpop.f32.mrb[0].mxu0
        %v3288 = vadd.f32 %v3063, %v3287
        %v3289 = vpop.f32.mrb[0].mxu0
        %3290 = vmatprep.mubr.f32.mxu0 %v2287
        %3291 = vmatmul.mubr.f32.gmra.mrb[0].mxu0 %v2255
        %v3292 = vpop.f32.mrb[0].mxu0
        %v3293 = vadd.f32 %v3068, %v3292
        %v3294 = vpop.f32.mrb[0].mxu0
        %3295 = vmatprep.mubr.f32.mxu0 %v2288
        %3296 = vmatmul.mubr.f32.gmra.mrb[0].mxu0 %v2256
        %v3297 = vpop.f32.mrb[0].mxu0
        %v3298 = vadd.f32 %v3073, %v3297
        %v3299 = vpop.f32.mrb[0].mxu0
        %3300 = vmatprep.mubr.f32.mxu0 %v2289
        %3301 = vmatmul.mubr.f32.gmra.mrb[0].mxu0 %v2257
        %v3302 = vpop.f32.mrb[0].mxu0
        %v3303 = vadd.f32 %v3078, %v3302
        %v3304 = vpop.f32.mrb[0].mxu0
        %3305 = vmatprep.mubr.f32.mxu0 %v2290
        %3306 = vmatmul.mubr.f32.gmra.mrb[0].mxu0 %v2258
        %v3307 = vpop.f32.mrb[0].mxu0
        %v3308 = vadd.f32 %v3083, %v3307
        %v3309 = vpop.f32.mrb[0].mxu0
        %3310 = vmatprep.mubr.f32.mxu0 %v2291
        %3311 = vmatmul.mubr.f32.gmra.mrb[0].mxu0 %v2259
        %v3312 = vpop.f32.mrb[0].mxu0
        %v3313 = vadd.f32 %v3088, %v3312
        %v3314 = vpop.f32.mrb[0].mxu0
        %3315 = vmatprep.mubr.f32.mxu0 %v2292
        %3316 = vmatmul.mubr.f32.gmra.mrb[0].mxu0 %v2260
        %v3317 = vpop.f32.mrb[0].mxu0
        %v3318 = vadd.f32 %v3093, %v3317
        %v3319 = vpop.f32.mrb[0].mxu0
        %3320 = vmatprep.mubr.f32.mxu0 %v2293
        %3321 = vmatmul.mubr.f32.gmra.mrb[0].mxu0 %v2261
        %v3322 = vpop.f32.mrb[0].mxu0
        %v3323 = vadd.f32 %v3098, %v3322
        %v3324 = vpop.f32.mrb[0].mxu0
        %3325 = vmatprep.mubr.f32.mxu0 %v2294
        %3326 = vmatmul.mubr.f32.gmra.mrb[0].mxu0 %v2262
        %v3327 = vpop.f32.mrb[0].mxu0
        %v3328 = vadd.f32 %v3103, %v3327
        %v3329 = vpop.f32.mrb[0].mxu0
        %3330 = vmatprep.mubr.f32.mxu0 %v2295
        %3331 = vmatmul.mubr.f32.gmra.mrb[0].mxu0 %v2263
        %v3332 = vpop.f32.mrb[0].mxu0
        %v3333 = vadd.f32 %v3108, %v3332
        %v3334 = vpop.f32.mrb[0].mxu0
        %3335 = vmatprep.mubr.f32.mxu0 %v2296
        %3336 = vmatmul.mubr.f32.gmra.mrb[0].mxu0 %v2264
        %v3337 = vpop.f32.mrb[0].mxu0
        %v3338 = vadd.f32 %v3113, %v3337
        %v3339 = vpop.f32.mrb[0].mxu0
        %3340 = vmatprep.mubr.f32.mxu0 %v2297
        %3341 = vmatmul.mubr.f32.gmra.mrb[0].mxu0 %v2265
        %v3342 = vpop.f32.mrb[0].mxu0
        %v3343 = vadd.f32 %v3118, %v3342
        %v3344 = vpop.f32.mrb[0].mxu0
        %3345 = vmatprep.mubr.f32.mxu0 %v2298
        %3346 = vmatmul.mubr.f32.gmra.mrb[0].mxu0 %v2266
        %v3347 = vpop.f32.mrb[0].mxu0
        %v3348 = vadd.f32 %v3123, %v3347
        %v3349 = vpop.f32.mrb[0].mxu0
        %3350 = vmatprep.mubr.f32.mxu0 %v2299
        %3351 = vmatmul.mubr.f32.gmra.mrb[0].mxu0 %v2267
        %v3352 = vpop.f32.mrb[0].mxu0
        %v3353 = vadd.f32 %v3128, %v3352
        %v3354 = vpop.f32.mrb[0].mxu0
        %3355 = vmatprep.mubr.f32.mxu0 %v2300
        %3356 = vmatmul.mubr.f32.gmra.mrb[0].mxu0 %v2268
        %v3357 = vpop.f32.mrb[0].mxu0
        %v3358 = vadd.f32 %v3133, %v3357
        %v3359 = vpop.f32.mrb[0].mxu0
        %3360 = vmatprep.mubr.f32.mxu0 %v2301
        %3361 = vmatmul.mubr.f32.gmra.mrb[0].mxu0 %v2269
        %v3362 = vpop.f32.mrb[0].mxu0
        %v3363 = vadd.f32 %v3138, %v3362
        %v3364 = vpop.f32.mrb[0].mxu0
        %3365 = vmatprep.mubr.f32.mxu0 %v2302
        %3366 = vmatmul.mubr.f32.gmra.mrb[0].mxu0 %v2270
        %v3367 = vpop.f32.mrb[0].mxu0
        %v3368 = vadd.f32 %v3143, %v3367
        %v3369 = vpop.f32.mrb[0].mxu0
        %3370 = vmatprep.mubr.f32.mxu0 %v2303
        %3371 = vmatmul.mubr.f32.gmra.mrb[0].mxu0 %v2271
        %v3372 = vpop.f32.mrb[0].mxu0
        %v3373 = vadd.f32 %v3148, %v3372
        %v3374 = vpop.f32.mrb[0].mxu0
        %3375 = vmatprep.mubr.f32.mxu0 %v2304
        %3376 = vmatmul.mubr.f32.gmra.mrb[0].mxu0 %v2272
        %v3377 = vpop.f32.mrb[0].mxu0
        %v3378 = vadd.f32 %v3153, %v3377
        %v3379 = vpop.f32.mrb[0].mxu0
        %3380 = vdwg.mxu0
        %3381 = vmatprep.subr.mxu0 0.0
        %3382 = vmatpush1.msra.mxu0 %v2465
        %3383 = vmatprep.subr.mxu0 0.0
        %3384 = vmatpush1.msra.mxu0 %v2466
        %3385 = vmatprep.subr.mxu0 0.0
        %3386 = vmatpush1.msra.mxu0 %v2467
        %3387 = vmatprep.subr.mxu0 0.0
        %3388 = vmatpush1.msra.mxu0 %v2468
        %3389 = vmatprep.subr.mxu0 0.0
        %3390 = vmatpush1.msra.mxu0 %v2469
        %3391 = vmatprep.subr.mxu0 0.0
        %3392 = vmatpush1.msra.mxu0 %v2470
        %3393 = vmatprep.subr.mxu0 0.0
        %3394 = vmatpush1.msra.mxu0 %v2471
        %3395 = vmatprep.subr.mxu0 0.0
        %3396 = vmatpush1.msra.mxu0 %v2472
        %3397 = vmatprep.subr.mxu0 0.0
        %3398 = vmatpush1.msra.mxu0 %v2473
        %3399 = vmatprep.subr.mxu0 0.0
        %3400 = vmatpush1.msra.mxu0 %v2474
        %3401 = vmatprep.subr.mxu0 0.0
        %3402 = vmatpush1.msra.mxu0 %v2475
        %3403 = vmatprep.subr.mxu0 0.0
        %3404 = vmatpush1.msra.mxu0 %v2476
        %3405 = vmatprep.subr.mxu0 0.0
        %3406 = vmatpush1.msra.mxu0 %v2477
        %3407 = vmatprep.subr.mxu0 0.0
        %3408 = vmatpush1.msra.mxu0 %v2478
        %3409 = vmatprep.subr.mxu0 0.0
        %3410 = vmatpush1.msra.mxu0 %v2479
        %3411 = vmatprep.subr.mxu0 0.0
        %3412 = vmatpush1.msra.mxu0 %v2480
        %3413 = vmatprep.subr.mxu0 0.0
        %3414 = vmatpush1.msra.mxu0 0.0
        %3415 = vmatprep.subr.mxu0 0.0
        %3416 = vmatpush1.msra.mxu0 0.0
        %3417 = vmatprep.subr.mxu0 0.0
        %3418 = vmatpush1.msra.mxu0 0.0
        %3419 = vmatprep.subr.mxu0 0.0
        %3420 = vmatpush1.msra.mxu0 0.0
        %3421 = vmatprep.subr.mxu0 0.0
        %3422 = vmatpush1.msra.mxu0 0.0
        %3423 = vmatprep.subr.mxu0 0.0
        %3424 = vmatpush1.msra.mxu0 0.0
        %3425 = vmatprep.subr.mxu0 0.0
        %3426 = vmatpush1.msra.mxu0 0.0
        %3427 = vmatprep.subr.mxu0 0.0
        %3428 = vmatpush1.msra.mxu0 0.0
        %3429 = vmatprep.subr.mxu0 0.0
        %3430 = vmatpush1.msra.mxu0 0.0
        %3431 = vmatprep.subr.mxu0 0.0
        %3432 = vmatpush1.msra.mxu0 0.0
        %3433 = vmatprep.subr.mxu0 0.0
        %3434 = vmatpush1.msra.mxu0 0.0
        %3435 = vmatprep.subr.mxu0 0.0
        %3436 = vmatpush1.msra.mxu0 0.0
        %3437 = vmatprep.subr.mxu0 0.0
        %3438 = vmatpush1.msra.mxu0 0.0
        %3439 = vmatprep.subr.mxu0 0.0
        %3440 = vmatpush1.msra.mxu0 0.0
        %3441 = vmatprep.subr.mxu0 0.0
        %3442 = vmatpush1.msra.mxu0 0.0
        %3443 = vmatprep.subr.mxu0 0.0
        %3444 = vmatpush1.msra.mxu0 0.0
        %3445 = vmatprep.mubr.f32.mxu0 0.0
        %3446 = vmatmul.mubr.f32.gmra.mrb[0].mxu0 %v2305
        %v3447 = vpop.f32.mrb[0].mxu0
        %v3448 = vadd.f32 %v3223, %v3447
        %v3449 = vpop.f32.mrb[0].mxu0
        %3450 = vmatprep.mubr.f32.mxu0 0.0
        %3451 = vmatmul.mubr.f32.gmra.mrb[0].mxu0 %v2306
        %v3452 = vpop.f32.mrb[0].mxu0
        %v3453 = vadd.f32 %v3228, %v3452
        %v3454 = vpop.f32.mrb[0].mxu0
        %3455 = vmatprep.mubr.f32.mxu0 0.0
        %3456 = vmatmul.mubr.f32.gmra.mrb[0].mxu0 %v2307
        %v3457 = vpop.f32.mrb[0].mxu0
        %v3458 = vadd.f32 %v3233, %v3457
        %v3459 = vpop.f32.mrb[0].mxu0
        %3460 = vmatprep.mubr.f32.mxu0 0.0
        %3461 = vmatmul.mubr.f32.gmra.mrb[0].mxu0 %v2308
        %v3462 = vpop.f32.mrb[0].mxu0
        %v3463 = vadd.f32 %v3238, %v3462
        %v3464 = vpop.f32.mrb[0].mxu0
        %3465 = vmatprep.mubr.f32.mxu0 0.0
        %3466 = vmatmul.mubr.f32.gmra.mrb[0].mxu0 %v2309
        %v3467 = vpop.f32.mrb[0].mxu0
        %v3468 = vadd.f32 %v3243, %v3467
        %v3469 = vpop.f32.mrb[0].mxu0
        %3470 = vmatprep.mubr.f32.mxu0 0.0
        %3471 = vmatmul.mubr.f32.gmra.mrb[0].mxu0 %v2310
        %v3472 = vpop.f32.mrb[0].mxu0
        %v3473 = vadd.f32 %v3248, %v3472
        %v3474 = vpop.f32.mrb[0].mxu0
        %3475 = vmatprep.mubr.f32.mxu0 0.0
        %3476 = vmatmul.mubr.f32.gmra.mrb[0].mxu0 %v2311
        %v3477 = vpop.f32.mrb[0].mxu0
        %v3478 = vadd.f32 %v3253, %v3477
        %v3479 = vpop.f32.mrb[0].mxu0
        %3480 = vmatprep.mubr.f32.mxu0 0.0
        %3481 = vmatmul.mubr.f32.gmra.mrb[0].mxu0 %v2312
        %v3482 = vpop.f32.mrb[0].mxu0
        %v3483 = vadd.f32 %v3258, %v3482
        %v3484 = vpop.f32.mrb[0].mxu0
        %3485 = vmatprep.mubr.f32.mxu0 0.0
        %3486 = vmatmul.mubr.f32.gmra.mrb[0].mxu0 %v2313
        %v3487 = vpop.f32.mrb[0].mxu0
        %v3488 = vadd.f32 %v3263, %v3487
        %v3489 = vpop.f32.mrb[0].mxu0
        %3490 = vmatprep.mubr.f32.mxu0 0.0
        %3491 = vmatmul.mubr.f32.gmra.mrb[0].mxu0 %v2314
        %v3492 = vpop.f32.mrb[0].mxu0
        %v3493 = vadd.f32 %v3268, %v3492
        %v3494 = vpop.f32.mrb[0].mxu0
        %3495 = vmatprep.mubr.f32.mxu0 0.0
        %3496 = vmatmul.mubr.f32.gmra.mrb[0].mxu0 %v2315
        %v3497 = vpop.f32.mrb[0].mxu0
        %v3498 = vadd.f32 %v3273, %v3497
        %v3499 = vpop.f32.mrb[0].mxu0
        %3500 = vmatprep.mubr.f32.mxu0 0.0
        %3501 = vmatmul.mubr.f32.gmra.mrb[0].mxu0 %v2316
        %v3502 = vpop.f32.mrb[0].mxu0
        %v3503 = vadd.f32 %v3278, %v3502
        %v3504 = vpop.f32.mrb[0].mxu0
        %3505 = vmatprep.mubr.f32.mxu0 0.0
        %3506 = vmatmul.mubr.f32.gmra.mrb[0].mxu0 %v2317
        %v3507 = vpop.f32.mrb[0].mxu0
        %v3508 = vadd.f32 %v3283, %v3507
        %v3509 = vpop.f32.mrb[0].mxu0
        %3510 = vmatprep.mubr.f32.mxu0 0.0
        %3511 = vmatmul.mubr.f32.gmra.mrb[0].mxu0 %v2318
        %v3512 = vpop.f32.mrb[0].mxu0
        %v3513 = vadd.f32 %v3288, %v3512
        %v3514 = vpop.f32.mrb[0].mxu0
        %3515 = vmatprep.mubr.f32.mxu0 0.0
        %3516 = vmatmul.mubr.f32.gmra.mrb[0].mxu0 %v2319
        %v3517 = vpop.f32.mrb[0].mxu0
        %v3518 = vadd.f32 %v3293, %v3517
        %v3519 = vpop.f32.mrb[0].mxu0
        %3520 = vmatprep.mubr.f32.mxu0 0.0
        %3521 = vmatmul.mubr.f32.gmra.mrb[0].mxu0 %v2320
        %v3522 = vpop.f32.mrb[0].mxu0
        %v3523 = vadd.f32 %v3298, %v3522
        %v3524 = vpop.f32.mrb[0].mxu0
        %3525 = vmatprep.mubr.f32.mxu0 0.0
        %3526 = vmatmul.mubr.f32.gmra.mrb[0].mxu0 %v2321
        %v3527 = vpop.f32.mrb[0].mxu0
        %v3528 = vadd.f32 %v3303, %v3527
        %v3529 = vpop.f32.mrb[0].mxu0
        %3530 = vmatprep.mubr.f32.mxu0 0.0
        %3531 = vmatmul.mubr.f32.gmra.mrb[0].mxu0 %v2322
        %v3532 = vpop.f32.mrb[0].mxu0
        %v3533 = vadd.f32 %v3308, %v3532
        %v3534 = vpop.f32.mrb[0].mxu0
        %3535 = vmatprep.mubr.f32.mxu0 0.0
        %3536 = vmatmul.mubr.f32.gmra.mrb[0].mxu0 %v2323
        %v3537 = vpop.f32.mrb[0].mxu0
        %v3538 = vadd.f32 %v3313, %v3537
        %v3539 = vpop.f32.mrb[0].mxu0
        %3540 = vmatprep.mubr.f32.mxu0 0.0
        %3541 = vmatmul.mubr.f32.gmra.mrb[0].mxu0 %v2324
        %v3542 = vpop.f32.mrb[0].mxu0
        %v3543 = vadd.f32 %v3318, %v3542
        %v3544 = vpop.f32.mrb[0].mxu0
        %3545 = vmatprep.mubr.f32.mxu0 0.0
        %3546 = vmatmul.mubr.f32.gmra.mrb[0].mxu0 %v2325
        %v3547 = vpop.f32.mrb[0].mxu0
        %v3548 = vadd.f32 %v3323, %v3547
        %v3549 = vpop.f32.mrb[0].mxu0
        %3550 = vmatprep.mubr.f32.mxu0 0.0
        %3551 = vmatmul.mubr.f32.gmra.mrb[0].mxu0 %v2326
        %v3552 = vpop.f32.mrb[0].mxu0
        %v3553 = vadd.f32 %v3328, %v3552
        %v3554 = vpop.f32.mrb[0].mxu0
        %3555 = vmatprep.mubr.f32.mxu0 0.0
        %3556 = vmatmul.mubr.f32.gmra.mrb[0].mxu0 %v2327
        %v3557 = vpop.f32.mrb[0].mxu0
        %v3558 = vadd.f32 %v3333, %v3557
        %v3559 = vpop.f32.mrb[0].mxu0
        %3560 = vmatprep.mubr.f32.mxu0 0.0
        %3561 = vmatmul.mubr.f32.gmra.mrb[0].mxu0 %v2328
        %v3562 = vpop.f32.mrb[0].mxu0
        %v3563 = vadd.f32 %v3338, %v3562
        %v3564 = vpop.f32.mrb[0].mxu0
        %3565 = vmatprep.mubr.f32.mxu0 0.0
        %3566 = vmatmul.mubr.f32.gmra.mrb[0].mxu0 %v2329
        %v3567 = vpop.f32.mrb[0].mxu0
        %v3568 = vadd.f32 %v3343, %v3567
        %v3569 = vpop.f32.mrb[0].mxu0
        %3570 = vmatprep.mubr.f32.mxu0 0.0
        %3571 = vmatmul.mubr.f32.gmra.mrb[0].mxu0 %v2330
        %v3572 = vpop.f32.mrb[0].mxu0
        %v3573 = vadd.f32 %v3348, %v3572
        %v3574 = vpop.f32.mrb[0].mxu0
        %3575 = vmatprep.mubr.f32.mxu0 0.0
        %3576 = vmatmul.mubr.f32.gmra.mrb[0].mxu0 %v2331
        %v3577 = vpop.f32.mrb[0].mxu0
        %v3578 = vadd.f32 %v3353, %v3577
        %v3579 = vpop.f32.mrb[0].mxu0
        %3580 = vmatprep.mubr.f32.mxu0 0.0
        %3581 = vmatmul.mubr.f32.gmra.mrb[0].mxu0 %v2332
        %v3582 = vpop.f32.mrb[0].mxu0
        %v3583 = vadd.f32 %v3358, %v3582
        %v3584 = vpop.f32.mrb[0].mxu0
        %3585 = vmatprep.mubr.f32.mxu0 0.0
        %3586 = vmatmul.mubr.f32.gmra.mrb[0].mxu0 %v2333
        %v3587 = vpop.f32.mrb[0].mxu0
        %v3588 = vadd.f32 %v3363, %v3587
        %v3589 = vpop.f32.mrb[0].mxu0
        %3590 = vmatprep.mubr.f32.mxu0 0.0
        %3591 = vmatmul.mubr.f32.gmra.mrb[0].mxu0 %v2334
        %v3592 = vpop.f32.mrb[0].mxu0
        %v3593 = vadd.f32 %v3368, %v3592
        %v3594 = vpop.f32.mrb[0].mxu0
        %3595 = vmatprep.mubr.f32.mxu0 0.0
        %3596 = vmatmul.mubr.f32.gmra.mrb[0].mxu0 %v2335
        %v3597 = vpop.f32.mrb[0].mxu0
        %v3598 = vadd.f32 %v3373, %v3597
        %v3599 = vpop.f32.mrb[0].mxu0
        %3600 = vmatprep.mubr.f32.mxu0 0.0
        %3601 = vmatmul.mubr.f32.gmra.mrb[0].mxu0 %v2336
        %v3602 = vpop.f32.mrb[0].mxu0
        %v3603 = vadd.f32 %v3378, %v3602
        %v3604 = vpop.f32.mrb[0].mxu0
        %3605 = vdwg.mxu0
        %v3606 = vld [vmem:[%s5] sm:$0x1]
        %v3608 = vlaneseq
        %v3609 = vshrl.u32 %v3608, 7
        %v3610 = vsub.s32 0, %v3609
        %v3611 = vrot.slane %v3606, %v3610
        %v3613 = vmul.f32 %v3448, %v3611
        %v3614 = vmul.f32 %v3453, %v3611
        %v3615 = vmul.f32 %v3458, %v3611
        %v3616 = vmul.f32 %v3463, %v3611
        %v3617 = vmul.f32 %v3468, %v3611
        %v3618 = vmul.f32 %v3473, %v3611
        %v3619 = vmul.f32 %v3478, %v3611
        %v3620 = vmul.f32 %v3483, %v3611
        %v3621 = vmul.f32 %v3488, %v3611
        %v3622 = vmul.f32 %v3493, %v3611
        %v3623 = vmul.f32 %v3498, %v3611
        %v3624 = vmul.f32 %v3503, %v3611
        %v3625 = vmul.f32 %v3508, %v3611
        %v3626 = vmul.f32 %v3513, %v3611
        %v3627 = vmul.f32 %v3518, %v3611
        %v3628 = vmul.f32 %v3523, %v3611
        %v3629 = vmul.f32 %v3528, %v3611
        %v3630 = vmul.f32 %v3533, %v3611
        %v3631 = vmul.f32 %v3538, %v3611
        %v3632 = vmul.f32 %v3543, %v3611
        %v3633 = vmul.f32 %v3548, %v3611
        %v3634 = vmul.f32 %v3553, %v3611
        %v3635 = vmul.f32 %v3558, %v3611
        %v3636 = vmul.f32 %v3563, %v3611
        %v3637 = vmul.f32 %v3568, %v3611
        %v3638 = vmul.f32 %v3573, %v3611
        %v3639 = vmul.f32 %v3578, %v3611
        %v3640 = vmul.f32 %v3583, %v3611
        %v3641 = vmul.f32 %v3588, %v3611
        %v3642 = vmul.f32 %v3593, %v3611
        %v3643 = vmul.f32 %v3598, %v3611
        %v3644 = vmul.f32 %v3603, %v3611
        %v3645 = vld [vmem:[%s6] sm:$0x1]
        %v3647 = vlaneseq
        %v3648 = vshrl.u32 %v3647, 7
        %v3649 = vsub.s32 0, %v3648
        %v3650 = vrot.slane %v3645, %v3649
        %v3652 = vadd.f32 %v3613, %v3650
        %v3653 = vadd.f32 %v3614, %v3650
        %v3654 = vadd.f32 %v3615, %v3650
        %v3655 = vadd.f32 %v3616, %v3650
        %v3656 = vadd.f32 %v3617, %v3650
        %v3657 = vadd.f32 %v3618, %v3650
        %v3658 = vadd.f32 %v3619, %v3650
        %v3659 = vadd.f32 %v3620, %v3650
        %v3660 = vadd.f32 %v3621, %v3650
        %v3661 = vadd.f32 %v3622, %v3650
        %v3662 = vadd.f32 %v3623, %v3650
        %v3663 = vadd.f32 %v3624, %v3650
        %v3664 = vadd.f32 %v3625, %v3650
        %v3665 = vadd.f32 %v3626, %v3650
        %v3666 = vadd.f32 %v3627, %v3650
        %v3667 = vadd.f32 %v3628, %v3650
        %v3668 = vadd.f32 %v3629, %v3650
        %v3669 = vadd.f32 %v3630, %v3650
        %v3670 = vadd.f32 %v3631, %v3650
        %v3671 = vadd.f32 %v3632, %v3650
        %v3672 = vadd.f32 %v3633, %v3650
        %v3673 = vadd.f32 %v3634, %v3650
        %v3674 = vadd.f32 %v3635, %v3650
        %v3675 = vadd.f32 %v3636, %v3650
        %v3676 = vadd.f32 %v3637, %v3650
        %v3677 = vadd.f32 %v3638, %v3650
        %v3678 = vadd.f32 %v3639, %v3650
        %v3679 = vadd.f32 %v3640, %v3650
        %v3680 = vadd.f32 %v3641, %v3650
        %v3681 = vadd.f32 %v3642, %v3650
        %v3682 = vadd.f32 %v3643, %v3650
        %v3683 = vadd.f32 %v3644, %v3650
        %v3684 = vadd.f32 %v3652, %v421
        %v3685 = vadd.f32 %v3653, %v422
        %v3686 = vadd.f32 %v3654, %v423
        %v3687 = vadd.f32 %v3655, %v424
        %v3688 = vadd.f32 %v3656, %v425
        %v3689 = vadd.f32 %v3657, %v426
        %v3690 = vadd.f32 %v3658, %v427
        %v3691 = vadd.f32 %v3659, %v428
        %v3692 = vadd.f32 %v3660, %v429
        %v3693 = vadd.f32 %v3661, %v430
        %v3694 = vadd.f32 %v3662, %v431
        %v3695 = vadd.f32 %v3663, %v432
        %v3696 = vadd.f32 %v3664, %v433
        %v3697 = vadd.f32 %v3665, %v434
        %v3698 = vadd.f32 %v3666, %v435
        %v3699 = vadd.f32 %v3667, %v436
        %v3700 = vadd.f32 %v3668, %v437
        %v3701 = vadd.f32 %v3669, %v438
        %v3702 = vadd.f32 %v3670, %v439
        %v3703 = vadd.f32 %v3671, %v440
        %v3704 = vadd.f32 %v3672, %v441
        %v3705 = vadd.f32 %v3673, %v442
        %v3706 = vadd.f32 %v3674, %v443
        %v3707 = vadd.f32 %v3675, %v444
        %v3708 = vadd.f32 %v3676, %v445
        %v3709 = vadd.f32 %v3677, %v446
        %v3710 = vadd.f32 %v3678, %v447
        %v3711 = vadd.f32 %v3679, %v448
        %v3712 = vadd.f32 %v3680, %v449
        %v3713 = vadd.f32 %v3681, %v450
        %v3714 = vadd.f32 %v3682, %v451
        %v3715 = vadd.f32 %v3683, %v452
        %v3716 = vmax.f32 %v3684, 0.0
        %v3717 = vmax.f32 %v3685, 0.0
        %v3718 = vmax.f32 %v3686, 0.0
        %v3719 = vmax.f32 %v3687, 0.0
        %v3720 = vmax.f32 %v3688, 0.0
        %v3721 = vmax.f32 %v3689, 0.0
        %v3722 = vmax.f32 %v3690, 0.0
        %v3723 = vmax.f32 %v3691, 0.0
        %v3724 = vmax.f32 %v3692, 0.0
        %v3725 = vmax.f32 %v3693, 0.0
        %v3726 = vmax.f32 %v3694, 0.0
        %v3727 = vmax.f32 %v3695, 0.0
        %v3728 = vmax.f32 %v3696, 0.0
        %v3729 = vmax.f32 %v3697, 0.0
        %v3730 = vmax.f32 %v3698, 0.0
        %v3731 = vmax.f32 %v3699, 0.0
        %v3732 = vmax.f32 %v3700, 0.0
        %v3733 = vmax.f32 %v3701, 0.0
        %v3734 = vmax.f32 %v3702, 0.0
        %v3735 = vmax.f32 %v3703, 0.0
        %v3736 = vmax.f32 %v3704, 0.0
        %v3737 = vmax.f32 %v3705, 0.0
        %v3738 = vmax.f32 %v3706, 0.0
        %v3739 = vmax.f32 %v3707, 0.0
        %v3740 = vmax.f32 %v3708, 0.0
        %v3741 = vmax.f32 %v3709, 0.0
        %v3742 = vmax.f32 %v3710, 0.0
        %v3743 = vmax.f32 %v3711, 0.0
        %v3744 = vmax.f32 %v3712, 0.0
        %v3745 = vmax.f32 %v3713, 0.0
        %v3746 = vmax.f32 %v3714, 0.0
        %v3747 = vmax.f32 %v3715, 0.0
        %3748 = vst [vmem:[%s286] sm:$0xff] %v3716
        %3749 = vst [vmem:[%s286 + $0x8] sm:$0xff] %v3717
        %3750 = vst [vmem:[%s286 + $0x10] sm:$0xff] %v3718
        %3751 = vst [vmem:[%s286 + $0x18] sm:$0xff] %v3719
        %3752 = vst [vmem:[%s286 + $0x20] sm:$0xff] %v3720
        %3753 = vst [vmem:[%s286 + $0x28] sm:$0xff] %v3721
        %3754 = vst [vmem:[%s286 + $0x30] sm:$0xff] %v3722
        %3755 = vst [vmem:[%s286 + $0x38] sm:$0xff] %v3723
        %3756 = vst [vmem:[%s286 + $0x40] sm:$0xff] %v3724
        %3757 = vst [vmem:[%s286 + $0x48] sm:$0xff] %v3725
        %3758 = vst [vmem:[%s286 + $0x50] sm:$0xff] %v3726
        %3759 = vst [vmem:[%s286 + $0x58] sm:$0xff] %v3727
        %3760 = vst [vmem:[%s286 + $0x60] sm:$0xff] %v3728
        %3761 = vst [vmem:[%s286 + $0x68] sm:$0xff] %v3729
        %3762 = vst [vmem:[%s286 + $0x70] sm:$0xff] %v3730
        %3763 = vst [vmem:[%s286 + $0x78] sm:$0xff] %v3731
        %3764 = vst [vmem:[%s286 + $0x80] sm:$0xff] %v3732
        %3765 = vst [vmem:[%s286 + $0x88] sm:$0xff] %v3733
        %3766 = vst [vmem:[%s286 + $0x90] sm:$0xff] %v3734
        %3767 = vst [vmem:[%s286 + $0x98] sm:$0xff] %v3735
        %3768 = vst [vmem:[%s286 + $0xa0] sm:$0xff] %v3736
        %3769 = vst [vmem:[%s286 + $0xa8] sm:$0xff] %v3737
        %3770 = vst [vmem:[%s286 + $0xb0] sm:$0xff] %v3738
        %3771 = vst [vmem:[%s286 + $0xb8] sm:$0xff] %v3739
        %3772 = vst [vmem:[%s286 + $0xc0] sm:$0xff] %v3740
        %3773 = vst [vmem:[%s286 + $0xc8] sm:$0xff] %v3741
        %3774 = vst [vmem:[%s286 + $0xd0] sm:$0xff] %v3742
        %3775 = vst [vmem:[%s286 + $0xd8] sm:$0xff] %v3743
        %3776 = vst [vmem:[%s286 + $0xe0] sm:$0xff] %v3744
        %3777 = vst [vmem:[%s286 + $0xe8] sm:$0xff] %v3745
        %3778 = vst [vmem:[%s286 + $0xf0] sm:$0xff] %v3746
        %3779 = vst [vmem:[%s286 + $0xf8] sm:$0xff] %v3747
        %s3780 = sand.u32 %s182, 1
        %s3781 = scalar_lea.sflag [#allocation5], %s3780
        %s3782 = sand.u32 %s182, 1
        %s3783 = smul.addr %s3782, 256
        %s3784 = scalar_lea.vmem [#allocation6], %s3783
        // Predicated region
        $region53: #{tpu_custom_call.1} parent=47 // pred_check
          %p3785 = pneg %p192
        $region54: #{tpu_custom_call.1} parent=47 // pred_check_branch
          %3787 = sbr.rel (%p3785) target = $region56
        $region55: #{tpu_custom_call.1} parent=47 // pred_region
          %s3789 = ssub.s32 4096, 4096
          %3790 = vsyncadd %s3781, %s3789
          %s3791 = smul.addr %s22, 32
          %s3792 = smul.addr %s3791, 128
          %s3793 = scalar_lea.hbm %s7, %s3792
          %s3794 = sshll.u32 %s3784, 4
          %s3795 = int_to_ptr.vmem [resolvable:$true] %s3794
          %3800 = dma.vmem_to_hbm [thread:$0]  %s3795, 4096, %s3793, %s3781, 128, 128, 8
        $region56: #{tpu_custom_call.1} parent=47 // pred_fallthru
          _
      $region48: #{tpu_custom_call.1} parent=5 // pred_fallthru
        _
      %p3801 = scmp.le.s32.totalorder 2, %s17
      // Predicated region
      $region57: #{tpu_custom_call.1} parent=5 // pred_check
        %p3802 = pneg %p3801
      $region58: #{tpu_custom_call.1} parent=5 // pred_check_branch
        %3804 = sbr.rel (%p3802) target = $region60
      $region59: #{tpu_custom_call.1} parent=5 // pred_region
        %s3805 = ssub.s32 %s17, 2
        // Predicated region
        $region61: #{tpu_custom_call.1} parent=59 // pred_check
          %p3806 = pneg %p198
        $region62: #{tpu_custom_call.1} parent=59 // pred_check_branch
          %3808 = sbr.rel (%p3806) target = $region64
        $region63: #{tpu_custom_call.1} parent=59 // pred_region
          %s3809 = sand.u32 %s183, 1
          %s3810 = scalar_lea.sflag [#allocation5], %s3809
          %s3811 = sand.u32 %s183, 1
          %s3812 = smul.addr %s3811, 256
          %s3813 = scalar_lea.vmem [#allocation6], %s3812
          %3814 = dma.done %s3810, 4096
        $region64: #{tpu_custom_call.1} parent=59 // pred_fallthru
          _
      $region60: #{tpu_custom_call.1} parent=5 // pred_fallthru
        _
    $region6: #{tpu_custom_call.1} parent=1 // loop_footer
      %s21 = sadd.s32 1, %s17
    $region7: #{tpu_custom_call.1} parent=1 // loop_footer_branch
      %16 = sbr.rel target = $region3
    $region8: #{tpu_custom_call.1} parent=1 // loop_exit
      _
    %3815 = vsyncpa [#allocation4], 1
    %s3816 = scalar_lea.sflag [#allocation4], 1
    %3817 = vsyncpa %s3816, 1
    %3818 = vsyncpa [#allocation5], 1
    %s3819 = scalar_lea.sflag [#allocation5], 1
    %3820 = vsyncpa %s3819, 1

</llo_original>
